<compile_context>
chip_gen: v7x
topology: tpu7x:2x2x1
jax: 0.10.0
libtpu: 0.0.40
codegen_flags: <defaults>
</compile_context>

<pallas_src>
import jax
import jax.numpy as jnp
import numpy as np
from jax.experimental import pallas as pl
from jax.experimental.pallas import tpu as pltpu


# ----------------------- Pallas kernels (hot path) -----------------------

def conv_block_kernel(quads_ref, w_ref, shift_ref, o_ref):
    # Fused conv(k=2, lowered to im2col matmul) + folded bias/BN + ReLU +
    # 2x2 max-pool.  quads_ref: (4, M, K) -- one im2col matrix per pooling
    # position, so the pool is just an elementwise max of 4 matmul results.
    w = w_ref[...]
    shift = shift_ref[...]

    def pos(k):
        z = jnp.dot(quads_ref[k], w, preferred_element_type=jnp.float32)
        return jnp.maximum(z + shift, 0.0)

    o_ref[...] = jnp.maximum(jnp.maximum(pos(0), pos(1)),
                             jnp.maximum(pos(2), pos(3)))


def head_kernel(x_ref, w1_ref, shift1_ref, w2_ref, b2_ref, o_ref):
    # fc1 (bias + eval-BN folded into w1/shift1) + ReLU + fc2, fused.
    h = jnp.dot(x_ref[...], w1_ref[...], preferred_element_type=jnp.float32)
    h = jnp.maximum(h + shift1_ref[...], 0.0)
    o_ref[...] = jnp.dot(h, w2_ref[...], preferred_element_type=jnp.float32) + b2_ref[...]


def _pallas_full(kernel, out_shape, *args, cost=None):
    # Everything is tiny (<< VMEM), so each call uses full-array blocks, no grid.
    return pl.pallas_call(
        kernel,
        out_shape=out_shape,
        in_specs=[pl.BlockSpec(memory_space=pltpu.MemorySpace.VMEM)] * len(args),
        out_specs=pl.BlockSpec(memory_space=pltpu.MemorySpace.VMEM),
        cost_estimate=cost,
    )(*args)


# ------------------------------- JAX glue -------------------------------

def quad_im2col(x, Hp, Wp):
    """x: (B, H, W, C) NHWC -> (4, B*Hp*Wp, 4*C).

    quads[py*2+px] is the im2col matrix whose row (b, p, q) holds the 2x2
    input patch feeding conv output (2p+py, 2q+px), i.e. pooling position
    (py, px).  Column order is (ky, kx, C), matching the repacked weight.
    """
    B, H, W, C = x.shape
    quads = []
    for py in (0, 1):
        for px in (0, 1):
            patches = []
            for ky in (0, 1):
                for kx in (0, 1):
                    s = x[:, py + ky::2, px + kx::2, :][:, :Hp, :Wp, :]
                    patches.append(s)
            q = jnp.concatenate(patches, axis=-1).reshape(B * Hp * Wp, 4 * C)
            quads.append(q)
    return jnp.stack(quads, axis=0)


def init_params(key):
    eps = 1e-5
    ks = iter(jax.random.split(key, 32))

    def xavier(k, fan_in, fan_out, shape):
        std = (2.0 / (fan_in + fan_out)) ** 0.5
        return std * jax.random.normal(k, shape, jnp.float32)

    def bn(cout):
        # eval-mode BN represented as per-channel scale/shift
        gamma = 1.0 + 0.1 * jax.random.normal(next(ks), (1, cout), jnp.float32)
        beta = 0.1 * jax.random.normal(next(ks), (1, cout), jnp.float32)
        mean = 0.1 * jax.random.normal(next(ks), (1, cout), jnp.float32)
        var = jax.random.uniform(next(ks), (1, cout), jnp.float32, minval=0.5, maxval=1.5)
        scale = gamma / jnp.sqrt(var + eps)
        shift = beta - mean * scale
        return scale, shift

    def conv_block(cin, cout):
        # PyTorch conv weight layout (cout, cin, 2, 2) with xavier_normal_,
        # repacked to the im2col matmul layout (4*cin, cout) in (ky, kx, C) order.
        w_t = xavier(next(ks), cin * 4, cout * 4, (cout, cin, 2, 2))
        w = jnp.transpose(w_t, (2, 3, 1, 0)).reshape(4 * cin, cout)
        b = (jax.random.uniform(next(ks), (1, cout), jnp.float32) - 0.5) / np.sqrt(cin * 4.0)
        scale, shift = bn(cout)
        return dict(w=w, b=b, scale=scale, shift=shift)

    params = {
        "conv1": conv_block(3, 16),
        "conv2": conv_block(16, 32),
        "conv3": conv_block(32, 64),
    }
    w1 = xavier(next(ks), 576, 120, (576, 120))
    b1 = (jax.random.uniform(next(ks), (1, 120), jnp.float32) - 0.5) / np.sqrt(576.0)
    s1, t1 = bn(120)
    w2 = xavier(next(ks), 120, 10, (120, 10))
    b2 = (jax.random.uniform(next(ks), (1, 10), jnp.float32) - 0.5) / np.sqrt(120.0)
    params["head"] = dict(w1=w1, b1=b1, scale=s1, shift=t1, w2=w2, b2=b2)
    return params


def fold_params(params):
    """Fold conv/fc bias + eval-mode BN into the matmul weights (W' = W*scale,
    shift' = b*scale + shift), and permute fc1 rows from torch's NCHW-flatten
    order to the NHWC-flatten order the kernels produce."""
    fused = {}
    for name in ("conv1", "conv2", "conv3"):
        p = params[name]
        fused[name] = dict(w=p["w"] * p["scale"],
                           shift=p["b"] * p["scale"] + p["shift"])
    h = params["head"]
    c = jnp.arange(64)
    j = jnp.arange(9)                                  # spatial index p*3+q
    perm = (c[None, :] * 9 + j[:, None]).reshape(-1)   # hwc row -> chw row
    w1_hwc = h["w1"][perm, :]
    fused["head"] = dict(w1=w1_hwc * h["scale"],
                         shift1=h["b1"] * h["scale"] + h["shift"],
                         w2=h["w2"], b2=h["b2"])
    return fused


@jax.jit
def convnet_forward(x_nchw, fused):
    x = jnp.transpose(x_nchw, (0, 2, 3, 1)).astype(jnp.float32)  # NCHW -> NHWC
    B = x.shape[0]
    for name in ("conv1", "conv2", "conv3"):
        p = fused[name]
        cout = p["w"].shape[1]
        _, H, W, _ = x.shape
        Hp, Wp = (H - 1) // 2, (W - 1) // 2            # conv(k=2) then pool(2,2), floor
        quads = quad_im2col(x, Hp, Wp)                 # (4, M, 4*Cin)
        M = B * Hp * Wp
        flops = 2 * 4 * M * quads.shape[2] * cout
        nbytes = 4 * (quads.size + p["w"].size + p["shift"].size + M * cout)
        y = _pallas_full(conv_block_kernel,
                         jax.ShapeDtypeStruct((M, cout), jnp.float32),
                         quads, p["w"], p["shift"],
                         cost=pl.CostEstimate(flops=flops, transcendentals=0,
                                              bytes_accessed=nbytes))
        x = y.reshape(B, Hp, Wp, cout)
        # nn.Dropout(0.2): identity at inference time.
    flat = x.reshape(B, -1)        # NHWC flatten; head w1 rows are pre-permuted for this
    h = fused["head"]
    K, N1, N2 = flat.shape[1], h["w1"].shape[1], h["w2"].shape[1]
    flops = 2 * B * K * N1 + 2 * B * N1 * N2
    nbytes = 4 * (flat.size + h["w1"].size + h["shift1"].size
                  + h["w2"].size + h["b2"].size + B * N2)
    return _pallas_full(head_kernel,
                        jax.ShapeDtypeStruct((B, N2), jnp.float32),
                        flat, h["w1"], h["shift1"], h["w2"], h["b2"],
                        cost=pl.CostEstimate(flops=flops, transcendentals=0,
                                             bytes_accessed=nbytes))


def reference_forward(x_nchw, params):
    # Pure-JAX reference (torch semantics) used only to check the Pallas path.
    x = jnp.transpose(x_nchw, (0, 2, 3, 1)).astype(jnp.float32)
    for name in ("conv1", "conv2", "conv3"):
        p = params[name]
        cin = p["w"].shape[0] // 4
        cout = p["w"].shape[1]
        w_hwio = p["w"].reshape(2, 2, cin, cout)
        x = jax.lax.conv_general_dilated(
            x, w_hwio, window_strides=(1, 1), padding="VALID",
            dimension_numbers=("NHWC", "HWIO", "NHWC"),
            precision=jax.lax.Precision.HIGHEST) + p["b"][0]
        x = jnp.maximum(x * p["scale"][0] + p["shift"][0], 0.0)
        x = jax.lax.reduce_window(x, -jnp.inf, jax.lax.max,
                                  (1, 2, 2, 1), (1, 2, 2, 1), "VALID")
    B = x.shape[0]
    flat = jnp.transpose(x, (0, 3, 1, 2)).reshape(B, -1)   # torch's NCHW flatten
    h = params["head"]
    z = flat @ h["w1"] + h["b1"]
    z = jnp.maximum(z * h["scale"] + h["shift"], 0.0)
    return z @ h["w2"] + h["b2"]


if __name__ == "__main__":
    key = jax.random.PRNGKey(0)
    pkey, xkey = jax.random.split(key)
    params = init_params(pkey)
    fused = fold_params(params)
    # Input implied by the module: 64*3*3 flatten after 3 (conv k=2 -> pool 2x2)
    # stages requires 32x32 spatial; batch=2, 3 input channels (NCHW like torch).
    x = jax.random.normal(xkey, (2, 3, 32, 32), jnp.float32)

    out = convnet_forward(x, fused)
    out = jax.block_until_ready(out)
    assert out.shape == (2, 10), out.shape

    ref = reference_forward(x, params)
    np.testing.assert_allclose(np.asarray(out), np.asarray(ref), rtol=2e-2, atol=2e-2)

    print("KERNEL_OK")
</pallas_src>

<mosaic_0001>
module attributes {stable_mosaic.version = 11 : i64} {
  func.func @conv_block_kernel(%arg0: memref<4x450x12xf32, #tpu.memory_space<vmem>>, %arg1: memref<12x16xf32, #tpu.memory_space<vmem>>, %arg2: memref<1x16xf32, #tpu.memory_space<vmem>>, %arg3: memref<450x16xf32, #tpu.memory_space<vmem>>) attributes {dimension_semantics = [], scalar_prefetch = 0 : i64, scratch_operands = 0 : i64, tpu.core_type = #tpu.core_type<tc>} {
    %c0 = arith.constant 0 : index
    %c0_0 = arith.constant 0 : index
    %0 = vector.load %arg1[%c0, %c0_0] : memref<12x16xf32, #tpu.memory_space<vmem>>, vector<12x16xf32>
    %c0_1 = arith.constant 0 : index
    %c0_2 = arith.constant 0 : index
    %1 = vector.load %arg2[%c0_1, %c0_2] : memref<1x16xf32, #tpu.memory_space<vmem>>, vector<1x16xf32>
    %c0_3 = arith.constant 0 : index
    %c0_4 = arith.constant 0 : index
    %c0_5 = arith.constant 0 : index
    %2 = vector.load %arg0[%c0_3, %c0_4, %c0_5] : memref<4x450x12xf32, #tpu.memory_space<vmem>>, vector<1x450x12xf32>
    %3 = vector.shape_cast %2 : vector<1x450x12xf32> to vector<450x12xf32>
    %cst = arith.constant dense<0.000000e+00> : vector<450x16xf32>
    %4 = tpu.matmul %3, %0, %cst {dimension_numbers = #tpu.dot_dimension_numbers<[1], [0], [0], [1], [0, 0, 1, 1], [], []>} : vector<450x12xf32>, vector<12x16xf32>, vector<450x16xf32> -> vector<450x16xf32>
    %5 = vector.broadcast %1 : vector<1x16xf32> to vector<450x16xf32>
    %6 = arith.addf %4, %5 : vector<450x16xf32>
    %cst_6 = arith.constant 0.000000e+00 : f32
    %7 = vector.broadcast %cst_6 : f32 to vector<450x16xf32>
    %8 = arith.maximumf %6, %7 : vector<450x16xf32>
    %c1 = arith.constant 1 : index
    %c0_7 = arith.constant 0 : index
    %c0_8 = arith.constant 0 : index
    %9 = vector.load %arg0[%c1, %c0_7, %c0_8] : memref<4x450x12xf32, #tpu.memory_space<vmem>>, vector<1x450x12xf32>
    %10 = vector.shape_cast %9 : vector<1x450x12xf32> to vector<450x12xf32>
    %cst_9 = arith.constant dense<0.000000e+00> : vector<450x16xf32>
    %11 = tpu.matmul %10, %0, %cst_9 {dimension_numbers = #tpu.dot_dimension_numbers<[1], [0], [0], [1], [0, 0, 1, 1], [], []>} : vector<450x12xf32>, vector<12x16xf32>, vector<450x16xf32> -> vector<450x16xf32>
    %12 = vector.broadcast %1 : vector<1x16xf32> to vector<450x16xf32>
    %13 = arith.addf %11, %12 : vector<450x16xf32>
    %cst_10 = arith.constant 0.000000e+00 : f32
    %14 = vector.broadcast %cst_10 : f32 to vector<450x16xf32>
    %15 = arith.maximumf %13, %14 : vector<450x16xf32>
    %16 = arith.maximumf %8, %15 : vector<450x16xf32>
    %c2 = arith.constant 2 : index
    %c0_11 = arith.constant 0 : index
    %c0_12 = arith.constant 0 : index
    %17 = vector.load %arg0[%c2, %c0_11, %c0_12] : memref<4x450x12xf32, #tpu.memory_space<vmem>>, vector<1x450x12xf32>
    %18 = vector.shape_cast %17 : vector<1x450x12xf32> to vector<450x12xf32>
    %cst_13 = arith.constant dense<0.000000e+00> : vector<450x16xf32>
    %19 = tpu.matmul %18, %0, %cst_13 {dimension_numbers = #tpu.dot_dimension_numbers<[1], [0], [0], [1], [0, 0, 1, 1], [], []>} : vector<450x12xf32>, vector<12x16xf32>, vector<450x16xf32> -> vector<450x16xf32>
    %20 = vector.broadcast %1 : vector<1x16xf32> to vector<450x16xf32>
    %21 = arith.addf %19, %20 : vector<450x16xf32>
    %cst_14 = arith.constant 0.000000e+00 : f32
    %22 = vector.broadcast %cst_14 : f32 to vector<450x16xf32>
    %23 = arith.maximumf %21, %22 : vector<450x16xf32>
    %c3 = arith.constant 3 : index
    %c0_15 = arith.constant 0 : index
    %c0_16 = arith.constant 0 : index
    %24 = vector.load %arg0[%c3, %c0_15, %c0_16] : memref<4x450x12xf32, #tpu.memory_space<vmem>>, vector<1x450x12xf32>
    %25 = vector.shape_cast %24 : vector<1x450x12xf32> to vector<450x12xf32>
    %cst_17 = arith.constant dense<0.000000e+00> : vector<450x16xf32>
    %26 = tpu.matmul %25, %0, %cst_17 {dimension_numbers = #tpu.dot_dimension_numbers<[1], [0], [0], [1], [0, 0, 1, 1], [], []>} : vector<450x12xf32>, vector<12x16xf32>, vector<450x16xf32> -> vector<450x16xf32>
    %27 = vector.broadcast %1 : vector<1x16xf32> to vector<450x16xf32>
    %28 = arith.addf %26, %27 : vector<450x16xf32>
    %cst_18 = arith.constant 0.000000e+00 : f32
    %29 = vector.broadcast %cst_18 : f32 to vector<450x16xf32>
    %30 = arith.maximumf %28, %29 : vector<450x16xf32>
    %31 = arith.maximumf %23, %30 : vector<450x16xf32>
    %32 = arith.maximumf %16, %31 : vector<450x16xf32>
    %c0_19 = arith.constant 0 : index
    %c0_20 = arith.constant 0 : index
    %33 = vector.load %arg3[%c0_19, %c0_20] : memref<450x16xf32, #tpu.memory_space<vmem>>, vector<450x16xf32>
    tpu.vector_store %arg3[%c0_19, %c0_20], %32 {strides = array<i32>} : memref<450x16xf32, #tpu.memory_space<vmem>>, vector<450x16xf32>,
    return
  }
}

module attributes {stable_mosaic.version = 11 : i64} {
  func.func @conv_block_kernel(%arg0: memref<4x98x64xf32, #tpu.memory_space<vmem>>, %arg1: memref<64x32xf32, #tpu.memory_space<vmem>>, %arg2: memref<1x32xf32, #tpu.memory_space<vmem>>, %arg3: memref<98x32xf32, #tpu.memory_space<vmem>>) attributes {dimension_semantics = [], scalar_prefetch = 0 : i64, scratch_operands = 0 : i64, tpu.core_type = #tpu.core_type<tc>} {
    %c0 = arith.constant 0 : index
    %c0_0 = arith.constant 0 : index
    %0 = vector.load %arg1[%c0, %c0_0] : memref<64x32xf32, #tpu.memory_space<vmem>>, vector<64x32xf32>
    %c0_1 = arith.constant 0 : index
    %c0_2 = arith.constant 0 : index
    %1 = vector.load %arg2[%c0_1, %c0_2] : memref<1x32xf32, #tpu.memory_space<vmem>>, vector<1x32xf32>
    %c0_3 = arith.constant 0 : index
    %c0_4 = arith.constant 0 : index
    %c0_5 = arith.constant 0 : index
    %2 = vector.load %arg0[%c0_3, %c0_4, %c0_5] : memref<4x98x64xf32, #tpu.memory_space<vmem>>, vector<1x98x64xf32>
    %3 = vector.shape_cast %2 : vector<1x98x64xf32> to vector<98x64xf32>
    %cst = arith.constant dense<0.000000e+00> : vector<98x32xf32>
    %4 = tpu.matmul %3, %0, %cst {dimension_numbers = #tpu.dot_dimension_numbers<[1], [0], [0], [1], [0, 0, 1, 1], [], []>} : vector<98x64xf32>, vector<64x32xf32>, vector<98x32xf32> -> vector<98x32xf32>
    %5 = vector.broadcast %1 : vector<1x32xf32> to vector<98x32xf32>
    %6 = arith.addf %4, %5 : vector<98x32xf32>
    %cst_6 = arith.constant 0.000000e+00 : f32
    %7 = vector.broadcast %cst_6 : f32 to vector<98x32xf32>
    %8 = arith.maximumf %6, %7 : vector<98x32xf32>
    %c1 = arith.constant 1 : index
    %c0_7 = arith.constant 0 : index
    %c0_8 = arith.constant 0 : index
    %9 = vector.load %arg0[%c1, %c0_7, %c0_8] : memref<4x98x64xf32, #tpu.memory_space<vmem>>, vector<1x98x64xf32>
    %10 = vector.shape_cast %9 : vector<1x98x64xf32> to vector<98x64xf32>
    %cst_9 = arith.constant dense<0.000000e+00> : vector<98x32xf32>
    %11 = tpu.matmul %10, %0, %cst_9 {dimension_numbers = #tpu.dot_dimension_numbers<[1], [0], [0], [1], [0, 0, 1, 1], [], []>} : vector<98x64xf32>, vector<64x32xf32>, vector<98x32xf32> -> vector<98x32xf32>
    %12 = vector.broadcast %1 : vector<1x32xf32> to vector<98x32xf32>
    %13 = arith.addf %11, %12 : vector<98x32xf32>
    %cst_10 = arith.constant 0.000000e+00 : f32
    %14 = vector.broadcast %cst_10 : f32 to vector<98x32xf32>
    %15 = arith.maximumf %13, %14 : vector<98x32xf32>
    %16 = arith.maximumf %8, %15 : vector<98x32xf32>
    %c2 = arith.constant 2 : index
    %c0_11 = arith.constant 0 : index
    %c0_12 = arith.constant 0 : index
    %17 = vector.load %arg0[%c2, %c0_11, %c0_12] : memref<4x98x64xf32, #tpu.memory_space<vmem>>, vector<1x98x64xf32>
    %18 = vector.shape_cast %17 : vector<1x98x64xf32> to vector<98x64xf32>
    %cst_13 = arith.constant dense<0.000000e+00> : vector<98x32xf32>
    %19 = tpu.matmul %18, %0, %cst_13 {dimension_numbers = #tpu.dot_dimension_numbers<[1], [0], [0], [1], [0, 0, 1, 1], [], []>} : vector<98x64xf32>, vector<64x32xf32>, vector<98x32xf32> -> vector<98x32xf32>
    %20 = vector.broadcast %1 : vector<1x32xf32> to vector<98x32xf32>
    %21 = arith.addf %19, %20 : vector<98x32xf32>
    %cst_14 = arith.constant 0.000000e+00 : f32
    %22 = vector.broadcast %cst_14 : f32 to vector<98x32xf32>
    %23 = arith.maximumf %21, %22 : vector<98x32xf32>
    %c3 = arith.constant 3 : index
    %c0_15 = arith.constant 0 : index
    %c0_16 = arith.constant 0 : index
    %24 = vector.load %arg0[%c3, %c0_15, %c0_16] : memref<4x98x64xf32, #tpu.memory_space<vmem>>, vector<1x98x64xf32>
    %25 = vector.shape_cast %24 : vector<1x98x64xf32> to vector<98x64xf32>
    %cst_17 = arith.constant dense<0.000000e+00> : vector<98x32xf32>
    %26 = tpu.matmul %25, %0, %cst_17 {dimension_numbers = #tpu.dot_dimension_numbers<[1], [0], [0], [1], [0, 0, 1, 1], [], []>} : vector<98x64xf32>, vector<64x32xf32>, vector<98x32xf32> -> vector<98x32xf32>
    %27 = vector.broadcast %1 : vector<1x32xf32> to vector<98x32xf32>
    %28 = arith.addf %26, %27 : vector<98x32xf32>
    %cst_18 = arith.constant 0.000000e+00 : f32
    %29 = vector.broadcast %cst_18 : f32 to vector<98x32xf32>
    %30 = arith.maximumf %28, %29 : vector<98x32xf32>
    %31 = arith.maximumf %23, %30 : vector<98x32xf32>
    %32 = arith.maximumf %16, %31 : vector<98x32xf32>
    %c0_19 = arith.constant 0 : index
    %c0_20 = arith.constant 0 : index
    %33 = vector.load %arg3[%c0_19, %c0_20] : memref<98x32xf32, #tpu.memory_space<vmem>>, vector<98x32xf32>
    tpu.vector_store %arg3[%c0_19, %c0_20], %32 {strides = array<i32>} : memref<98x32xf32, #tpu.memory_space<vmem>>, vector<98x32xf32>,
    return
  }
}

module attributes {stable_mosaic.version = 11 : i64} {
  func.func @conv_block_kernel(%arg0: memref<4x18x128xf32, #tpu.memory_space<vmem>>, %arg1: memref<128x64xf32, #tpu.memory_space<vmem>>, %arg2: memref<1x64xf32, #tpu.memory_space<vmem>>, %arg3: memref<18x64xf32, #tpu.memory_space<vmem>>) attributes {dimension_semantics = [], scalar_prefetch = 0 : i64, scratch_operands = 0 : i64, tpu.core_type = #tpu.core_type<tc>} {
    %c0 = arith.constant 0 : index
    %c0_0 = arith.constant 0 : index
    %0 = vector.load %arg1[%c0, %c0_0] : memref<128x64xf32, #tpu.memory_space<vmem>>, vector<128x64xf32>
    %c0_1 = arith.constant 0 : index
    %c0_2 = arith.constant 0 : index
    %1 = vector.load %arg2[%c0_1, %c0_2] : memref<1x64xf32, #tpu.memory_space<vmem>>, vector<1x64xf32>
    %c0_3 = arith.constant 0 : index
    %c0_4 = arith.constant 0 : index
    %c0_5 = arith.constant 0 : index
    %2 = vector.load %arg0[%c0_3, %c0_4, %c0_5] : memref<4x18x128xf32, #tpu.memory_space<vmem>>, vector<1x18x128xf32>
    %3 = vector.shape_cast %2 : vector<1x18x128xf32> to vector<18x128xf32>
    %cst = arith.constant dense<0.000000e+00> : vector<18x64xf32>
    %4 = tpu.matmul %3, %0, %cst {dimension_numbers = #tpu.dot_dimension_numbers<[1], [0], [0], [1], [0, 0, 1, 1], [], []>} : vector<18x128xf32>, vector<128x64xf32>, vector<18x64xf32> -> vector<18x64xf32>
    %5 = vector.broadcast %1 : vector<1x64xf32> to vector<18x64xf32>
    %6 = arith.addf %4, %5 : vector<18x64xf32>
    %cst_6 = arith.constant 0.000000e+00 : f32
    %7 = vector.broadcast %cst_6 : f32 to vector<18x64xf32>
    %8 = arith.maximumf %6, %7 : vector<18x64xf32>
    %c1 = arith.constant 1 : index
    %c0_7 = arith.constant 0 : index
    %c0_8 = arith.constant 0 : index
    %9 = vector.load %arg0[%c1, %c0_7, %c0_8] : memref<4x18x128xf32, #tpu.memory_space<vmem>>, vector<1x18x128xf32>
    %10 = vector.shape_cast %9 : vector<1x18x128xf32> to vector<18x128xf32>
    %cst_9 = arith.constant dense<0.000000e+00> : vector<18x64xf32>
    %11 = tpu.matmul %10, %0, %cst_9 {dimension_numbers = #tpu.dot_dimension_numbers<[1], [0], [0], [1], [0, 0, 1, 1], [], []>} : vector<18x128xf32>, vector<128x64xf32>, vector<18x64xf32> -> vector<18x64xf32>
    %12 = vector.broadcast %1 : vector<1x64xf32> to vector<18x64xf32>
    %13 = arith.addf %11, %12 : vector<18x64xf32>
    %cst_10 = arith.constant 0.000000e+00 : f32
    %14 = vector.broadcast %cst_10 : f32 to vector<18x64xf32>
    %15 = arith.maximumf %13, %14 : vector<18x64xf32>
    %16 = arith.maximumf %8, %15 : vector<18x64xf32>
    %c2 = arith.constant 2 : index
    %c0_11 = arith.constant 0 : index
    %c0_12 = arith.constant 0 : index
    %17 = vector.load %arg0[%c2, %c0_11, %c0_12] : memref<4x18x128xf32, #tpu.memory_space<vmem>>, vector<1x18x128xf32>
    %18 = vector.shape_cast %17 : vector<1x18x128xf32> to vector<18x128xf32>
    %cst_13 = arith.constant dense<0.000000e+00> : vector<18x64xf32>
    %19 = tpu.matmul %18, %0, %cst_13 {dimension_numbers = #tpu.dot_dimension_numbers<[1], [0], [0], [1], [0, 0, 1, 1], [], []>} : vector<18x128xf32>, vector<128x64xf32>, vector<18x64xf32> -> vector<18x64xf32>
    %20 = vector.broadcast %1 : vector<1x64xf32> to vector<18x64xf32>
    %21 = arith.addf %19, %20 : vector<18x64xf32>
    %cst_14 = arith.constant 0.000000e+00 : f32
    %22 = vector.broadcast %cst_14 : f32 to vector<18x64xf32>
    %23 = arith.maximumf %21, %22 : vector<18x64xf32>
    %c3 = arith.constant 3 : index
    %c0_15 = arith.constant 0 : index
    %c0_16 = arith.constant 0 : index
    %24 = vector.load %arg0[%c3, %c0_15, %c0_16] : memref<4x18x128xf32, #tpu.memory_space<vmem>>, vector<1x18x128xf32>
    %25 = vector.shape_cast %24 : vector<1x18x128xf32> to vector<18x128xf32>
    %cst_17 = arith.constant dense<0.000000e+00> : vector<18x64xf32>
    %26 = tpu.matmul %25, %0, %cst_17 {dimension_numbers = #tpu.dot_dimension_numbers<[1], [0], [0], [1], [0, 0, 1, 1], [], []>} : vector<18x128xf32>, vector<128x64xf32>, vector<18x64xf32> -> vector<18x64xf32>
    %27 = vector.broadcast %1 : vector<1x64xf32> to vector<18x64xf32>
    %28 = arith.addf %26, %27 : vector<18x64xf32>
    %cst_18 = arith.constant 0.000000e+00 : f32
    %29 = vector.broadcast %cst_18 : f32 to vector<18x64xf32>
    %30 = arith.maximumf %28, %29 : vector<18x64xf32>
    %31 = arith.maximumf %23, %30 : vector<18x64xf32>
    %32 = arith.maximumf %16, %31 : vector<18x64xf32>
    %c0_19 = arith.constant 0 : index
    %c0_20 = arith.constant 0 : index
    %33 = vector.load %arg3[%c0_19, %c0_20] : memref<18x64xf32, #tpu.memory_space<vmem>>, vector<18x64xf32>
    tpu.vector_store %arg3[%c0_19, %c0_20], %32 {strides = array<i32>} : memref<18x64xf32, #tpu.memory_space<vmem>>, vector<18x64xf32>,
    return
  }
}

module attributes {stable_mosaic.version = 11 : i64} {
  func.func @head_kernel(%arg0: memref<2x576xf32, #tpu.memory_space<vmem>>, %arg1: memref<576x120xf32, #tpu.memory_space<vmem>>, %arg2: memref<1x120xf32, #tpu.memory_space<vmem>>, %arg3: memref<120x10xf32, #tpu.memory_space<vmem>>, %arg4: memref<1x10xf32, #tpu.memory_space<vmem>>, %arg5: memref<2x10xf32, #tpu.memory_space<vmem>>) attributes {dimension_semantics = [], scalar_prefetch = 0 : i64, scratch_operands = 0 : i64, tpu.core_type = #tpu.core_type<tc>} {
    %c0 = arith.constant 0 : index
    %c0_0 = arith.constant 0 : index
    %0 = vector.load %arg0[%c0, %c0_0] : memref<2x576xf32, #tpu.memory_space<vmem>>, vector<2x576xf32>
    %c0_1 = arith.constant 0 : index
    %c0_2 = arith.constant 0 : index
    %1 = vector.load %arg1[%c0_1, %c0_2] : memref<576x120xf32, #tpu.memory_space<vmem>>, vector<576x120xf32>
    %cst = arith.constant dense<0.000000e+00> : vector<2x120xf32>
    %2 = tpu.matmul %0, %1, %cst {dimension_numbers = #tpu.dot_dimension_numbers<[1], [0], [0], [1], [0, 0, 1, 1], [], []>} : vector<2x576xf32>, vector<576x120xf32>, vector<2x120xf32> -> vector<2x120xf32>
    %c0_3 = arith.constant 0 : index
    %c0_4 = arith.constant 0 : index
    %3 = vector.load %arg2[%c0_3, %c0_4] : memref<1x120xf32, #tpu.memory_space<vmem>>, vector<1x120xf32>
    %4 = vector.broadcast %3 : vector<1x120xf32> to vector<2x120xf32>
    %5 = arith.addf %2, %4 : vector<2x120xf32>
    %cst_5 = arith.constant 0.000000e+00 : f32
    %6 = vector.broadcast %cst_5 : f32 to vector<2x120xf32>
    %7 = arith.maximumf %5, %6 : vector<2x120xf32>
    %c0_6 = arith.constant 0 : index
    %c0_7 = arith.constant 0 : index
    %8 = vector.load %arg3[%c0_6, %c0_7] : memref<120x10xf32, #tpu.memory_space<vmem>>, vector<120x10xf32>
    %cst_8 = arith.constant dense<0.000000e+00> : vector<2x10xf32>
    %9 = tpu.matmul %7, %8, %cst_8 {dimension_numbers = #tpu.dot_dimension_numbers<[1], [0], [0], [1], [0, 0, 1, 1], [], []>} : vector<2x120xf32>, vector<120x10xf32>, vector<2x10xf32> -> vector<2x10xf32>
    %c0_9 = arith.constant 0 : index
    %c0_10 = arith.constant 0 : index
    %10 = vector.load %arg4[%c0_9, %c0_10] : memref<1x10xf32, #tpu.memory_space<vmem>>, vector<1x10xf32>
    %11 = vector.broadcast %10 : vector<1x10xf32> to vector<2x10xf32>
    %12 = arith.addf %9, %11 : vector<2x10xf32>
    %c0_11 = arith.constant 0 : index
    %c0_12 = arith.constant 0 : index
    %13 = vector.load %arg5[%c0_11, %c0_12] : memref<2x10xf32, #tpu.memory_space<vmem>>, vector<2x10xf32>
    tpu.vector_store %arg5[%c0_11, %c0_12], %12 {strides = array<i32>} : memref<2x10xf32, #tpu.memory_space<vmem>>, vector<2x10xf32>,
    return
  }
}

</mosaic_0001>

<llo_original>
// kernel: convnet_forward.4
$region0: #{convnet_forward.4}
  #allocation0 [shape = 'u32[]', space=smem, size = 0x4, offset = 0x4, fixed_abs, tag = 'smem constant byte address 0x4 - core index']
  #allocation1 [shape = 'u32[144,128]{1,0:T(1,128)}', space=vmem, size = 0x12000, scoped, tag = 'internal scratch']
  %s0 = inlined_call_operand.vmem [shape: f32[4,450,12], index: 0, kind: input, shape index: {}]
  %s1 = inlined_call_operand.vmem [shape: f32[12,16], index: 1, kind: input, shape index: {}]
  %s2 = inlined_call_operand.vmem [shape: f32[1,16], index: 2, kind: input, shape index: {}]
  %s3 = inlined_call_operand.vmem [shape: f32[450,16], index: 3, kind: output, shape index: {}]
  %s4 = sld [smem:[#allocation0]]
  $region22: #{convnet_forward.4} parent=0
    _
  %s6 = ssub.s32 1, %s4
  %s7 = scalar_select 0, %s6, %s4
  // Predicated region
  $region2: #{convnet_forward.4} parent=0 // pred_check
    _
  $region3: #{convnet_forward.4} parent=0 // pred_check_branch
    %9 = sbr.rel (0) target = $region5
  $region4: #{convnet_forward.4} parent=0 // pred_region
    _
  $region5: #{convnet_forward.4} parent=0 // pred_fallthru
    _
  // Predicated region
  $region6: #{convnet_forward.4} parent=0 // pred_check
    _
  $region7: #{convnet_forward.4} parent=0 // pred_check_branch
    %11 = sbr.rel (0) target = $region9
  $region8: #{convnet_forward.4} parent=0 // pred_region
    _
  $region9: #{convnet_forward.4} parent=0 // pred_fallthru
    _
  // Predicated region
  $region10: #{convnet_forward.4} parent=0 // pred_check
    _
  $region11: #{convnet_forward.4} parent=0 // pred_check_branch
    %13 = sbr.rel (0) target = $region13
  $region12: #{convnet_forward.4} parent=0 // pred_region
    _
  $region13: #{convnet_forward.4} parent=0 // pred_fallthru
    _
  %v14 = vld [vmem:[%s1] sm:$0xff]
  %v15 = vld [vmem:[%s1 + $0x8] sm:$0xf]
  %v16 = vld [vmem:[%s2] sm:$0x1]
  %v17 = vld [vmem:[%s0] sm:$0xff]
  %v18 = vld [vmem:[%s0 + $0x8] sm:$0xff]
  %v19 = vld [vmem:[%s0 + $0x10] sm:$0xff]
  %v20 = vld [vmem:[%s0 + $0x18] sm:$0xff]
  %v21 = vld [vmem:[%s0 + $0x20] sm:$0xff]
  %v22 = vld [vmem:[%s0 + $0x28] sm:$0xff]
  %v23 = vld [vmem:[%s0 + $0x30] sm:$0xff]
  %v24 = vld [vmem:[%s0 + $0x38] sm:$0xff]
  %v25 = vld [vmem:[%s0 + $0x40] sm:$0xff]
  %v26 = vld [vmem:[%s0 + $0x48] sm:$0xff]
  %v27 = vld [vmem:[%s0 + $0x50] sm:$0xff]
  %v28 = vld [vmem:[%s0 + $0x58] sm:$0xff]
  %v29 = vld [vmem:[%s0 + $0x60] sm:$0xff]
  %v30 = vld [vmem:[%s0 + $0x68] sm:$0xff]
  %v31 = vld [vmem:[%s0 + $0x70] sm:$0xff]
  %v32 = vld [vmem:[%s0 + $0x78] sm:$0xff]
  %v33 = vld [vmem:[%s0 + $0x80] sm:$0xff]
  %v34 = vld [vmem:[%s0 + $0x88] sm:$0xff]
  %v35 = vld [vmem:[%s0 + $0x90] sm:$0xff]
  %v36 = vld [vmem:[%s0 + $0x98] sm:$0xff]
  %v37 = vld [vmem:[%s0 + $0xa0] sm:$0xff]
  %v38 = vld [vmem:[%s0 + $0xa8] sm:$0xff]
  %v39 = vld [vmem:[%s0 + $0xb0] sm:$0xff]
  %v40 = vld [vmem:[%s0 + $0xb8] sm:$0xff]
  %v41 = vld [vmem:[%s0 + $0xc0] sm:$0xff]
  %v42 = vld [vmem:[%s0 + $0xc8] sm:$0xff]
  %v43 = vld [vmem:[%s0 + $0xd0] sm:$0xff]
  %v44 = vld [vmem:[%s0 + $0xd8] sm:$0xff]
  %v45 = vld [vmem:[%s0 + $0xe0] sm:$0xff]
  %v46 = vld [vmem:[%s0 + $0xe8] sm:$0xff]
  %v47 = vld [vmem:[%s0 + $0xf0] sm:$0xff]
  %v48 = vld [vmem:[%s0 + $0xf8] sm:$0xff]
  %v49 = vld [vmem:[%s0 + $0x100] sm:$0xff]
  %v50 = vld [vmem:[%s0 + $0x108] sm:$0xff]
  %v51 = vld [vmem:[%s0 + $0x110] sm:$0xff]
  %v52 = vld [vmem:[%s0 + $0x118] sm:$0xff]
  %v53 = vld [vmem:[%s0 + $0x120] sm:$0xff]
  %v54 = vld [vmem:[%s0 + $0x128] sm:$0xff]
  %v55 = vld [vmem:[%s0 + $0x130] sm:$0xff]
  %v56 = vld [vmem:[%s0 + $0x138] sm:$0xff]
  %v57 = vld [vmem:[%s0 + $0x140] sm:$0xff]
  %v58 = vld [vmem:[%s0 + $0x148] sm:$0xff]
  %v59 = vld [vmem:[%s0 + $0x150] sm:$0xff]
  %v60 = vld [vmem:[%s0 + $0x158] sm:$0xff]
  %v61 = vld [vmem:[%s0 + $0x160] sm:$0xff]
  %v62 = vld [vmem:[%s0 + $0x168] sm:$0xff]
  %v63 = vld [vmem:[%s0 + $0x170] sm:$0xff]
  %v64 = vld [vmem:[%s0 + $0x178] sm:$0xff]
  %v65 = vld [vmem:[%s0 + $0x180] sm:$0xff]
  %v66 = vld [vmem:[%s0 + $0x188] sm:$0xff]
  %v67 = vld [vmem:[%s0 + $0x190] sm:$0xff]
  %v68 = vld [vmem:[%s0 + $0x198] sm:$0xff]
  %v69 = vld [vmem:[%s0 + $0x1a0] sm:$0xff]
  %v70 = vld [vmem:[%s0 + $0x1a8] sm:$0xff]
  %v71 = vld [vmem:[%s0 + $0x1b0] sm:$0xff]
  %v72 = vld [vmem:[%s0 + $0x1b8] sm:$0xff]
  %v73 = vld [vmem:[%s0 + $0x1c0] sm:$0x3]
  %v75 = vlaneseq
  %v76 = vshrl.u32 %v75, 7
  %v77 = vsub.s32 0, %v76
  %v78 = vrot.slane %v16, %v77
  %vm80 = vcmask 97280
  %v82 = vsel %vm80, %v17, 0
  %v85 = vsel %vm80, %v18, 0
  %v88 = vsel %vm80, %v19, 0
  %v91 = vsel %vm80, %v20, 0
  %v94 = vsel %vm80, %v21, 0
  %v97 = vsel %vm80, %v22, 0
  %v100 = vsel %vm80, %v23, 0
  %v103 = vsel %vm80, %v24, 0
  %v106 = vsel %vm80, %v25, 0
  %v109 = vsel %vm80, %v26, 0
  %v112 = vsel %vm80, %v27, 0
  %v115 = vsel %vm80, %v28, 0
  %v118 = vsel %vm80, %v29, 0
  %v121 = vsel %vm80, %v30, 0
  %v124 = vsel %vm80, %v31, 0
  %v127 = vsel %vm80, %v32, 0
  %v130 = vsel %vm80, %v33, 0
  %v133 = vsel %vm80, %v34, 0
  %v136 = vsel %vm80, %v35, 0
  %v139 = vsel %vm80, %v36, 0
  %v142 = vsel %vm80, %v37, 0
  %v145 = vsel %vm80, %v38, 0
  %v148 = vsel %vm80, %v39, 0
  %v151 = vsel %vm80, %v40, 0
  %v154 = vsel %vm80, %v41, 0
  %v157 = vsel %vm80, %v42, 0
  %v160 = vsel %vm80, %v43, 0
  %v163 = vsel %vm80, %v44, 0
  %v166 = vsel %vm80, %v45, 0
  %v169 = vsel %vm80, %v46, 0
  %v172 = vsel %vm80, %v47, 0
  %v175 = vsel %vm80, %v48, 0
  %v178 = vsel %vm80, %v49, 0
  %v181 = vsel %vm80, %v50, 0
  %v184 = vsel %vm80, %v51, 0
  %v187 = vsel %vm80, %v52, 0
  %v190 = vsel %vm80, %v53, 0
  %v193 = vsel %vm80, %v54, 0
  %v196 = vsel %vm80, %v55, 0
  %v199 = vsel %vm80, %v56, 0
  %v202 = vsel %vm80, %v57, 0
  %v205 = vsel %vm80, %v58, 0
  %v208 = vsel %vm80, %v59, 0
  %v211 = vsel %vm80, %v60, 0
  %v214 = vsel %vm80, %v61, 0
  %v217 = vsel %vm80, %v62, 0
  %v220 = vsel %vm80, %v63, 0
  %v223 = vsel %vm80, %v64, 0
  %v226 = vsel %vm80, %v65, 0
  %v229 = vsel %vm80, %v66, 0
  %v232 = vsel %vm80, %v67, 0
  %v235 = vsel %vm80, %v68, 0
  %v238 = vsel %vm80, %v69, 0
  %v241 = vsel %vm80, %v70, 0
  %v244 = vsel %vm80, %v71, 0
  %v247 = vsel %vm80, %v72, 0
  %v250 = vsel %vm80, %v73, 0
  %vm252 = vcmask 1043456
  %v254 = vsel %vm252, %v15, 0
  %256 = vmatprep.subr.mxu0 0.0
  %257 = vmatpush1.msra.mxu0 %v14
  %258 = vmatprep.subr.mxu0 0.0
  %259 = vmatpush1.msra.mxu0 %v254
  %260 = vmatprep.subr.mxu0 0.0
  %261 = vmatpush1.msra.mxu0 0.0
  %262 = vmatprep.subr.mxu0 0.0
  %263 = vmatpush1.msra.mxu0 0.0
  %264 = vmatprep.subr.mxu0 0.0
  %265 = vmatpush1.msra.mxu0 0.0
  %266 = vmatprep.subr.mxu0 0.0
  %267 = vmatpush1.msra.mxu0 0.0
  %268 = vmatprep.subr.mxu0 0.0
  %269 = vmatpush1.msra.mxu0 0.0
  %270 = vmatprep.subr.mxu0 0.0
  %271 = vmatpush1.msra.mxu0 0.0
  %272 = vmatprep.subr.mxu0 0.0
  %273 = vmatpush1.msra.mxu0 0.0
  %274 = vmatprep.subr.mxu0 0.0
  %275 = vmatpush1.msra.mxu0 0.0
  %276 = vmatprep.subr.mxu0 0.0
  %277 = vmatpush1.msra.mxu0 0.0
  %278 = vmatprep.subr.mxu0 0.0
  %279 = vmatpush1.msra.mxu0 0.0
  %280 = vmatprep.subr.mxu0 0.0
  %281 = vmatpush1.msra.mxu0 0.0
  %282 = vmatprep.subr.mxu0 0.0
  %283 = vmatpush1.msra.mxu0 0.0
  %284 = vmatprep.subr.mxu0 0.0
  %285 = vmatpush1.msra.mxu0 0.0
  %286 = vmatprep.subr.mxu0 0.0
  %287 = vmatpush1.msra.mxu0 0.0
  %288 = vmatprep.subr.mxu0 0.0
  %289 = vmatpush1.msra.mxu0 0.0
  %290 = vmatprep.subr.mxu0 0.0
  %291 = vmatpush1.msra.mxu0 0.0
  %292 = vmatprep.subr.mxu0 0.0
  %293 = vmatpush1.msra.mxu0 0.0
  %294 = vmatprep.subr.mxu0 0.0
  %295 = vmatpush1.msra.mxu0 0.0
  %296 = vmatprep.subr.mxu0 0.0
  %297 = vmatpush1.msra.mxu0 0.0
  %298 = vmatprep.subr.mxu0 0.0
  %299 = vmatpush1.msra.mxu0 0.0
  %300 = vmatprep.subr.mxu0 0.0
  %301 = vmatpush1.msra.mxu0 0.0
  %302 = vmatprep.subr.mxu0 0.0
  %303 = vmatpush1.msra.mxu0 0.0
  %304 = vmatprep.subr.mxu0 0.0
  %305 = vmatpush1.msra.mxu0 0.0
  %306 = vmatprep.subr.mxu0 0.0
  %307 = vmatpush1.msra.mxu0 0.0
  %308 = vmatprep.subr.mxu0 0.0
  %309 = vmatpush1.msra.mxu0 0.0
  %310 = vmatprep.subr.mxu0 0.0
  %311 = vmatpush1.msra.mxu0 0.0
  %312 = vmatprep.subr.mxu0 0.0
  %313 = vmatpush1.msra.mxu0 0.0
  %314 = vmatprep.subr.mxu0 0.0
  %315 = vmatpush1.msra.mxu0 0.0
  %316 = vmatprep.subr.mxu0 0.0
  %317 = vmatpush1.msra.mxu0 0.0
  %318 = vmatprep.subr.mxu0 0.0
  %319 = vmatpush1.msra.mxu0 0.0
  %320 = vmatprep.mubr.f32.mxu0 0.0
  %321 = vmatmul.mubr.f32.gmra.mrb[0].mxu0 %v82
  %v322 = vpop.f32.mrb[0].mxu0
  %v323 = vadd.f32 %v78, %v322
  %v324 = vpop.f32.mrb[0].mxu0
  %325 = vmatprep.mubr.f32.mxu0 0.0
  %326 = vmatmul.mubr.f32.gmra.mrb[0].mxu0 %v85
  %v327 = vpop.f32.mrb[0].mxu0
  %v328 = vadd.f32 %v78, %v327
  %v329 = vpop.f32.mrb[0].mxu0
  %330 = vmatprep.mubr.f32.mxu0 0.0
  %331 = vmatmul.mubr.f32.gmra.mrb[0].mxu0 %v88
  %v332 = vpop.f32.mrb[0].mxu0
  %v333 = vadd.f32 %v78, %v332
  %v334 = vpop.f32.mrb[0].mxu0
  %335 = vmatprep.mubr.f32.mxu0 0.0
  %336 = vmatmul.mubr.f32.gmra.mrb[0].mxu0 %v91
  %v337 = vpop.f32.mrb[0].mxu0
  %v338 = vadd.f32 %v78, %v337
  %v339 = vpop.f32.mrb[0].mxu0
  %340 = vmatprep.mubr.f32.mxu0 0.0
  %341 = vmatmul.mubr.f32.gmra.mrb[0].mxu0 %v94
  %v342 = vpop.f32.mrb[0].mxu0
  %v343 = vadd.f32 %v78, %v342
  %v344 = vpop.f32.mrb[0].mxu0
  %345 = vmatprep.mubr.f32.mxu0 0.0
  %346 = vmatmul.mubr.f32.gmra.mrb[0].mxu0 %v97
  %v347 = vpop.f32.mrb[0].mxu0
  %v348 = vadd.f32 %v78, %v347
  %v349 = vpop.f32.mrb[0].mxu0
  %350 = vmatprep.mubr.f32.mxu0 0.0
  %351 = vmatmul.mubr.f32.gmra.mrb[0].mxu0 %v100
  %v352 = vpop.f32.mrb[0].mxu0
  %v353 = vadd.f32 %v78, %v352
  %v354 = vpop.f32.mrb[0].mxu0
  %355 = vmatprep.mubr.f32.mxu0 0.0
  %356 = vmatmul.mubr.f32.gmra.mrb[0].mxu0 %v103
  %v357 = vpop.f32.mrb[0].mxu0
  %v358 = vadd.f32 %v78, %v357
  %v359 = vpop.f32.mrb[0].mxu0
  %360 = vmatprep.mubr.f32.mxu0 0.0
  %361 = vmatmul.mubr.f32.gmra.mrb[0].mxu0 %v106
  %v362 = vpop.f32.mrb[0].mxu0
  %v363 = vadd.f32 %v78, %v362
  %v364 = vpop.f32.mrb[0].mxu0
  %365 = vmatprep.mubr.f32.mxu0 0.0
  %366 = vmatmul.mubr.f32.gmra.mrb[0].mxu0 %v109
  %v367 = vpop.f32.mrb[0].mxu0
  %v368 = vadd.f32 %v78, %v367
  %v369 = vpop.f32.mrb[0].mxu0
  %370 = vmatprep.mubr.f32.mxu0 0.0
  %371 = vmatmul.mubr.f32.gmra.mrb[0].mxu0 %v112
  %v372 = vpop.f32.mrb[0].mxu0
  %v373 = vadd.f32 %v78, %v372
  %v374 = vpop.f32.mrb[0].mxu0
  %375 = vmatprep.mubr.f32.mxu0 0.0
  %376 = vmatmul.mubr.f32.gmra.mrb[0].mxu0 %v115
  %v377 = vpop.f32.mrb[0].mxu0
  %v378 = vadd.f32 %v78, %v377
  %v379 = vpop.f32.mrb[0].mxu0
  %380 = vmatprep.mubr.f32.mxu0 0.0
  %381 = vmatmul.mubr.f32.gmra.mrb[0].mxu0 %v118
  %v382 = vpop.f32.mrb[0].mxu0
  %v383 = vadd.f32 %v78, %v382
  %v384 = vpop.f32.mrb[0].mxu0
  %385 = vmatprep.mubr.f32.mxu0 0.0
  %386 = vmatmul.mubr.f32.gmra.mrb[0].mxu0 %v121
  %v387 = vpop.f32.mrb[0].mxu0
  %v388 = vadd.f32 %v78, %v387
  %v389 = vpop.f32.mrb[0].mxu0
  %390 = vmatprep.mubr.f32.mxu0 0.0
  %391 = vmatmul.mubr.f32.gmra.mrb[0].mxu0 %v124
  %v392 = vpop.f32.mrb[0].mxu0
  %v393 = vadd.f32 %v78, %v392
  %v394 = vpop.f32.mrb[0].mxu0
  %395 = vmatprep.mubr.f32.mxu0 0.0
  %396 = vmatmul.mubr.f32.gmra.mrb[0].mxu0 %v127
  %v397 = vpop.f32.mrb[0].mxu0
  %v398 = vadd.f32 %v78, %v397
  %v399 = vpop.f32.mrb[0].mxu0
  %400 = vmatprep.mubr.f32.mxu0 0.0
  %401 = vmatmul.mubr.f32.gmra.mrb[0].mxu0 %v130
  %v402 = vpop.f32.mrb[0].mxu0
  %v403 = vadd.f32 %v78, %v402
  %v404 = vpop.f32.mrb[0].mxu0
  %405 = vmatprep.mubr.f32.mxu0 0.0
  %406 = vmatmul.mubr.f32.gmra.mrb[0].mxu0 %v133
  %v407 = vpop.f32.mrb[0].mxu0
  %v408 = vadd.f32 %v78, %v407
  %v409 = vpop.f32.mrb[0].mxu0
  %410 = vmatprep.mubr.f32.mxu0 0.0
  %411 = vmatmul.mubr.f32.gmra.mrb[0].mxu0 %v136
  %v412 = vpop.f32.mrb[0].mxu0
  %v413 = vadd.f32 %v78, %v412
  %v414 = vpop.f32.mrb[0].mxu0
  %415 = vmatprep.mubr.f32.mxu0 0.0
  %416 = vmatmul.mubr.f32.gmra.mrb[0].mxu0 %v139
  %v417 = vpop.f32.mrb[0].mxu0
  %v418 = vadd.f32 %v78, %v417
  %v419 = vpop.f32.mrb[0].mxu0
  %420 = vmatprep.mubr.f32.mxu0 0.0
  %421 = vmatmul.mubr.f32.gmra.mrb[0].mxu0 %v142
  %v422 = vpop.f32.mrb[0].mxu0
  %v423 = vadd.f32 %v78, %v422
  %v424 = vpop.f32.mrb[0].mxu0
  %425 = vmatprep.mubr.f32.mxu0 0.0
  %426 = vmatmul.mubr.f32.gmra.mrb[0].mxu0 %v145
  %v427 = vpop.f32.mrb[0].mxu0
  %v428 = vadd.f32 %v78, %v427
  %v429 = vpop.f32.mrb[0].mxu0
  %430 = vmatprep.mubr.f32.mxu0 0.0
  %431 = vmatmul.mubr.f32.gmra.mrb[0].mxu0 %v148
  %v432 = vpop.f32.mrb[0].mxu0
  %v433 = vadd.f32 %v78, %v432
  %v434 = vpop.f32.mrb[0].mxu0
  %435 = vmatprep.mubr.f32.mxu0 0.0
  %436 = vmatmul.mubr.f32.gmra.mrb[0].mxu0 %v151
  %v437 = vpop.f32.mrb[0].mxu0
  %v438 = vadd.f32 %v78, %v437
  %v439 = vpop.f32.mrb[0].mxu0
  %440 = vmatprep.mubr.f32.mxu0 0.0
  %441 = vmatmul.mubr.f32.gmra.mrb[0].mxu0 %v154
  %v442 = vpop.f32.mrb[0].mxu0
  %v443 = vadd.f32 %v78, %v442
  %v444 = vpop.f32.mrb[0].mxu0
  %445 = vmatprep.mubr.f32.mxu0 0.0
  %446 = vmatmul.mubr.f32.gmra.mrb[0].mxu0 %v157
  %v447 = vpop.f32.mrb[0].mxu0
  %v448 = vadd.f32 %v78, %v447
  %v449 = vpop.f32.mrb[0].mxu0
  %450 = vmatprep.mubr.f32.mxu0 0.0
  %451 = vmatmul.mubr.f32.gmra.mrb[0].mxu0 %v160
  %v452 = vpop.f32.mrb[0].mxu0
  %v453 = vadd.f32 %v78, %v452
  %v454 = vpop.f32.mrb[0].mxu0
  %455 = vmatprep.mubr.f32.mxu0 0.0
  %456 = vmatmul.mubr.f32.gmra.mrb[0].mxu0 %v163
  %v457 = vpop.f32.mrb[0].mxu0
  %v458 = vadd.f32 %v78, %v457
  %v459 = vpop.f32.mrb[0].mxu0
  %460 = vmatprep.mubr.f32.mxu0 0.0
  %461 = vmatmul.mubr.f32.gmra.mrb[0].mxu0 %v166
  %v462 = vpop.f32.mrb[0].mxu0
  %v463 = vadd.f32 %v78, %v462
  %v464 = vpop.f32.mrb[0].mxu0
  %465 = vmatprep.mubr.f32.mxu0 0.0
  %466 = vmatmul.mubr.f32.gmra.mrb[0].mxu0 %v169
  %v467 = vpop.f32.mrb[0].mxu0
  %v468 = vadd.f32 %v78, %v467
  %v469 = vpop.f32.mrb[0].mxu0
  %470 = vmatprep.mubr.f32.mxu0 0.0
  %471 = vmatmul.mubr.f32.gmra.mrb[0].mxu0 %v172
  %v472 = vpop.f32.mrb[0].mxu0
  %v473 = vadd.f32 %v78, %v472
  %v474 = vpop.f32.mrb[0].mxu0
  %475 = vmatprep.mubr.f32.mxu0 0.0
  %476 = vmatmul.mubr.f32.gmra.mrb[0].mxu0 %v175
  %v477 = vpop.f32.mrb[0].mxu0
  %v478 = vadd.f32 %v78, %v477
  %v479 = vpop.f32.mrb[0].mxu0
  %480 = vmatprep.mubr.f32.mxu0 0.0
  %481 = vmatmul.mubr.f32.gmra.mrb[0].mxu0 %v178
  %v482 = vpop.f32.mrb[0].mxu0
  %v483 = vadd.f32 %v78, %v482
  %v484 = vpop.f32.mrb[0].mxu0
  %485 = vmatprep.mubr.f32.mxu0 0.0
  %486 = vmatmul.mubr.f32.gmra.mrb[0].mxu0 %v181
  %v487 = vpop.f32.mrb[0].mxu0
  %v488 = vadd.f32 %v78, %v487
  %v489 = vpop.f32.mrb[0].mxu0
  %490 = vmatprep.mubr.f32.mxu0 0.0
  %491 = vmatmul.mubr.f32.gmra.mrb[0].mxu0 %v184
  %v492 = vpop.f32.mrb[0].mxu0
  %v493 = vadd.f32 %v78, %v492
  %v494 = vpop.f32.mrb[0].mxu0
  %495 = vmatprep.mubr.f32.mxu0 0.0
  %496 = vmatmul.mubr.f32.gmra.mrb[0].mxu0 %v187
  %v497 = vpop.f32.mrb[0].mxu0
  %v498 = vadd.f32 %v78, %v497
  %v499 = vpop.f32.mrb[0].mxu0
  %500 = vmatprep.mubr.f32.mxu0 0.0
  %501 = vmatmul.mubr.f32.gmra.mrb[0].mxu0 %v190
  %v502 = vpop.f32.mrb[0].mxu0
  %v503 = vadd.f32 %v78, %v502
  %v504 = vpop.f32.mrb[0].mxu0
  %505 = vmatprep.mubr.f32.mxu0 0.0
  %506 = vmatmul.mubr.f32.gmra.mrb[0].mxu0 %v193
  %v507 = vpop.f32.mrb[0].mxu0
  %v508 = vadd.f32 %v78, %v507
  %v509 = vpop.f32.mrb[0].mxu0
  %510 = vmatprep.mubr.f32.mxu0 0.0
  %511 = vmatmul.mubr.f32.gmra.mrb[0].mxu0 %v196
  %v512 = vpop.f32.mrb[0].mxu0
  %v513 = vadd.f32 %v78, %v512
  %v514 = vpop.f32.mrb[0].mxu0
  %515 = vmatprep.mubr.f32.mxu0 0.0
  %516 = vmatmul.mubr.f32.gmra.mrb[0].mxu0 %v199
  %v517 = vpop.f32.mrb[0].mxu0
  %v518 = vadd.f32 %v78, %v517
  %v519 = vpop.f32.mrb[0].mxu0
  %520 = vmatprep.mubr.f32.mxu0 0.0
  %521 = vmatmul.mubr.f32.gmra.mrb[0].mxu0 %v202
  %v522 = vpop.f32.mrb[0].mxu0
  %v523 = vadd.f32 %v78, %v522
  %v524 = vpop.f32.mrb[0].mxu0
  %525 = vmatprep.mubr.f32.mxu0 0.0
  %526 = vmatmul.mubr.f32.gmra.mrb[0].mxu0 %v205
  %v527 = vpop.f32.mrb[0].mxu0
  %v528 = vadd.f32 %v78, %v527
  %v529 = vpop.f32.mrb[0].mxu0
  %530 = vmatprep.mubr.f32.mxu0 0.0
  %531 = vmatmul.mubr.f32.gmra.mrb[0].mxu0 %v208
  %v532 = vpop.f32.mrb[0].mxu0
  %v533 = vadd.f32 %v78, %v532
  %v534 = vpop.f32.mrb[0].mxu0
  %535 = vmatprep.mubr.f32.mxu0 0.0
  %536 = vmatmul.mubr.f32.gmra.mrb[0].mxu0 %v211
  %v537 = vpop.f32.mrb[0].mxu0
  %v538 = vadd.f32 %v78, %v537
  %v539 = vpop.f32.mrb[0].mxu0
  %540 = vmatprep.mubr.f32.mxu0 0.0
  %541 = vmatmul.mubr.f32.gmra.mrb[0].mxu0 %v214
  %v542 = vpop.f32.mrb[0].mxu0
  %v543 = vadd.f32 %v78, %v542
  %v544 = vpop.f32.mrb[0].mxu0
  %545 = vmatprep.mubr.f32.mxu0 0.0
  %546 = vmatmul.mubr.f32.gmra.mrb[0].mxu0 %v217
  %v547 = vpop.f32.mrb[0].mxu0
  %v548 = vadd.f32 %v78, %v547
  %v549 = vpop.f32.mrb[0].mxu0
  %550 = vmatprep.mubr.f32.mxu0 0.0
  %551 = vmatmul.mubr.f32.gmra.mrb[0].mxu0 %v220
  %v552 = vpop.f32.mrb[0].mxu0
  %v553 = vadd.f32 %v78, %v552
  %v554 = vpop.f32.mrb[0].mxu0
  %555 = vmatprep.mubr.f32.mxu0 0.0
  %556 = vmatmul.mubr.f32.gmra.mrb[0].mxu0 %v223
  %v557 = vpop.f32.mrb[0].mxu0
  %v558 = vadd.f32 %v78, %v557
  %v559 = vpop.f32.mrb[0].mxu0
  %560 = vmatprep.mubr.f32.mxu0 0.0
  %561 = vmatmul.mubr.f32.gmra.mrb[0].mxu0 %v226
  %v562 = vpop.f32.mrb[0].mxu0
  %v563 = vadd.f32 %v78, %v562
  %v564 = vpop.f32.mrb[0].mxu0
  %565 = vmatprep.mubr.f32.mxu0 0.0
  %566 = vmatmul.mubr.f32.gmra.mrb[0].mxu0 %v229
  %v567 = vpop.f32.mrb[0].mxu0
  %v568 = vadd.f32 %v78, %v567
  %v569 = vpop.f32.mrb[0].mxu0
  %570 = vmatprep.mubr.f32.mxu0 0.0
  %571 = vmatmul.mubr.f32.gmra.mrb[0].mxu0 %v232
  %v572 = vpop.f32.mrb[0].mxu0
  %v573 = vadd.f32 %v78, %v572
  %v574 = vpop.f32.mrb[0].mxu0
  %575 = vmatprep.mubr.f32.mxu0 0.0
  %576 = vmatmul.mubr.f32.gmra.mrb[0].mxu0 %v235
  %v577 = vpop.f32.mrb[0].mxu0
  %v578 = vadd.f32 %v78, %v577
  %v579 = vpop.f32.mrb[0].mxu0
  %580 = vmatprep.mubr.f32.mxu0 0.0
  %581 = vmatmul.mubr.f32.gmra.mrb[0].mxu0 %v238
  %v582 = vpop.f32.mrb[0].mxu0
  %v583 = vadd.f32 %v78, %v582
  %v584 = vpop.f32.mrb[0].mxu0
  %585 = vmatprep.mubr.f32.mxu0 0.0
  %586 = vmatmul.mubr.f32.gmra.mrb[0].mxu0 %v241
  %v587 = vpop.f32.mrb[0].mxu0
  %v588 = vadd.f32 %v78, %v587
  %v589 = vpop.f32.mrb[0].mxu0
  %590 = vmatprep.mubr.f32.mxu0 0.0
  %591 = vmatmul.mubr.f32.gmra.mrb[0].mxu0 %v244
  %v592 = vpop.f32.mrb[0].mxu0
  %v593 = vadd.f32 %v78, %v592
  %v594 = vpop.f32.mrb[0].mxu0
  %595 = vmatprep.mubr.f32.mxu0 0.0
  %596 = vmatmul.mubr.f32.gmra.mrb[0].mxu0 %v247
  %v597 = vpop.f32.mrb[0].mxu0
  %v598 = vadd.f32 %v78, %v597
  %v599 = vpop.f32.mrb[0].mxu0
  %600 = vmatprep.mubr.f32.mxu0 0.0
  %601 = vmatmul.mubr.f32.gmra.mrb[0].mxu0 %v250
  %v602 = vpop.f32.mrb[0].mxu0
  %v603 = vadd.f32 %v78, %v602
  %v604 = vpop.f32.mrb[0].mxu0
  %605 = vdwg.mxu0
  %v606 = vmax.f32 %v323, 0.0
  %v607 = vmax.f32 %v328, 0.0
  %v608 = vmax.f32 %v333, 0.0
  %v609 = vmax.f32 %v338, 0.0
  %v610 = vmax.f32 %v343, 0.0
  %v611 = vmax.f32 %v348, 0.0
  %v612 = vmax.f32 %v353, 0.0
  %v613 = vmax.f32 %v358, 0.0
  %v614 = vmax.f32 %v363, 0.0
  %v615 = vmax.f32 %v368, 0.0
  %v616 = vmax.f32 %v373, 0.0
  %v617 = vmax.f32 %v378, 0.0
  %v618 = vmax.f32 %v383, 0.0
  %v619 = vmax.f32 %v388, 0.0
  %v620 = vmax.f32 %v393, 0.0
  %v621 = vmax.f32 %v398, 0.0
  %v622 = vmax.f32 %v403, 0.0
  %v623 = vmax.f32 %v408, 0.0
  %v624 = vmax.f32 %v413, 0.0
  %v625 = vmax.f32 %v418, 0.0
  %v626 = vmax.f32 %v423, 0.0
  %v627 = vmax.f32 %v428, 0.0
  %v628 = vmax.f32 %v433, 0.0
  %v629 = vmax.f32 %v438, 0.0
  %v630 = vmax.f32 %v443, 0.0
  %v631 = vmax.f32 %v448, 0.0
  %v632 = vmax.f32 %v453, 0.0
  %v633 = vmax.f32 %v458, 0.0
  %v634 = vmax.f32 %v463, 0.0
  %v635 = vmax.f32 %v468, 0.0
  %v636 = vmax.f32 %v473, 0.0
  %v637 = vmax.f32 %v478, 0.0
  %v638 = vmax.f32 %v483, 0.0
  %v639 = vmax.f32 %v488, 0.0
  %v640 = vmax.f32 %v493, 0.0
  %v641 = vmax.f32 %v498, 0.0
  %v642 = vmax.f32 %v503, 0.0
  %v643 = vmax.f32 %v508, 0.0
  %v644 = vmax.f32 %v513, 0.0
  %v645 = vmax.f32 %v518, 0.0
  %v646 = vmax.f32 %v523, 0.0
  %v647 = vmax.f32 %v528, 0.0
  %v648 = vmax.f32 %v533, 0.0
  %v649 = vmax.f32 %v538, 0.0
  %v650 = vmax.f32 %v543, 0.0
  %v651 = vmax.f32 %v548, 0.0
  %v652 = vmax.f32 %v553, 0.0
  %v653 = vmax.f32 %v558, 0.0
  %v654 = vmax.f32 %v563, 0.0
  %v655 = vmax.f32 %v568, 0.0
  %v656 = vmax.f32 %v573, 0.0
  %v657 = vmax.f32 %v578, 0.0
  %v658 = vmax.f32 %v583, 0.0
  %v659 = vmax.f32 %v588, 0.0
  %v660 = vmax.f32 %v593, 0.0
  %v661 = vmax.f32 %v598, 0.0
  %v662 = vmax.f32 %v603, 0.0
  %s663 = scalar_lea.vmem %s0, 456
  %v664 = vld [vmem:[%s663] sm:$0xff]
  %v665 = vld [vmem:[%s663 + $0x8] sm:$0xff]
  %v666 = vld [vmem:[%s663 + $0x10] sm:$0xff]
  %v667 = vld [vmem:[%s663 + $0x18] sm:$0xff]
  %v668 = vld [vmem:[%s663 + $0x20] sm:$0xff]
  %v669 = vld [vmem:[%s663 + $0x28] sm:$0xff]
  %v670 = vld [vmem:[%s663 + $0x30] sm:$0xff]
  %v671 = vld [vmem:[%s663 + $0x38] sm:$0xff]
  %v672 = vld [vmem:[%s663 + $0x40] sm:$0xff]
  %v673 = vld [vmem:[%s663 + $0x48] sm:$0xff]
  %v674 = vld [vmem:[%s663 + $0x50] sm:$0xff]
  %v675 = vld [vmem:[%s663 + $0x58] sm:$0xff]
  %v676 = vld [vmem:[%s663 + $0x60] sm:$0xff]
  %v677 = vld [vmem:[%s663 + $0x68] sm:$0xff]
  %v678 = vld [vmem:[%s663 + $0x70] sm:$0xff]
  %v679 = vld [vmem:[%s663 + $0x78] sm:$0xff]
  %v680 = vld [vmem:[%s663 + $0x80] sm:$0xff]
  %v681 = vld [vmem:[%s663 + $0x88] sm:$0xff]
  %v682 = vld [vmem:[%s663 + $0x90] sm:$0xff]
  %v683 = vld [vmem:[%s663 + $0x98] sm:$0xff]
  %v684 = vld [vmem:[%s663 + $0xa0] sm:$0xff]
  %v685 = vld [vmem:[%s663 + $0xa8] sm:$0xff]
  %v686 = vld [vmem:[%s663 + $0xb0] sm:$0xff]
  %v687 = vld [vmem:[%s663 + $0xb8] sm:$0xff]
  %v688 = vld [vmem:[%s663 + $0xc0] sm:$0xff]
  %v689 = vld [vmem:[%s663 + $0xc8] sm:$0xff]
  %v690 = vld [vmem:[%s663 + $0xd0] sm:$0xff]
  %v691 = vld [vmem:[%s663 + $0xd8] sm:$0xff]
  %v692 = vld [vmem:[%s663 + $0xe0] sm:$0xff]
  %v693 = vld [vmem:[%s663 + $0xe8] sm:$0xff]
  %v694 = vld [vmem:[%s663 + $0xf0] sm:$0xff]
  %v695 = vld [vmem:[%s663 + $0xf8] sm:$0xff]
  %v696 = vld [vmem:[%s663 + $0x100] sm:$0xff]
  %v697 = vld [vmem:[%s663 + $0x108] sm:$0xff]
  %v698 = vld [vmem:[%s663 + $0x110] sm:$0xff]
  %v699 = vld [vmem:[%s663 + $0x118] sm:$0xff]
  %v700 = vld [vmem:[%s663 + $0x120] sm:$0xff]
  %v701 = vld [vmem:[%s663 + $0x128] sm:$0xff]
  %v702 = vld [vmem:[%s663 + $0x130] sm:$0xff]
  %v703 = vld [vmem:[%s663 + $0x138] sm:$0xff]
  %v704 = vld [vmem:[%s663 + $0x140] sm:$0xff]
  %v705 = vld [vmem:[%s663 + $0x148] sm:$0xff]
  %v706 = vld [vmem:[%s663 + $0x150] sm:$0xff]
  %v707 = vld [vmem:[%s663 + $0x158] sm:$0xff]
  %v708 = vld [vmem:[%s663 + $0x160] sm:$0xff]
  %v709 = vld [vmem:[%s663 + $0x168] sm:$0xff]
  %v710 = vld [vmem:[%s663 + $0x170] sm:$0xff]
  %v711 = vld [vmem:[%s663 + $0x178] sm:$0xff]
  %v712 = vld [vmem:[%s663 + $0x180] sm:$0xff]
  %v713 = vld [vmem:[%s663 + $0x188] sm:$0xff]
  %v714 = vld [vmem:[%s663 + $0x190] sm:$0xff]
  %v715 = vld [vmem:[%s663 + $0x198] sm:$0xff]
  %v716 = vld [vmem:[%s663 + $0x1a0] sm:$0xff]
  %v717 = vld [vmem:[%s663 + $0x1a8] sm:$0xff]
  %v718 = vld [vmem:[%s663 + $0x1b0] sm:$0xff]
  %v719 = vld [vmem:[%s663 + $0x1b8] sm:$0xff]
  %v720 = vld [vmem:[%s663 + $0x1c0] sm:$0x3]
  %v722 = vsel %vm80, %v664, 0
  %v725 = vsel %vm80, %v665, 0
  %v728 = vsel %vm80, %v666, 0
  %v731 = vsel %vm80, %v667, 0
  %v734 = vsel %vm80, %v668, 0
  %v737 = vsel %vm80, %v669, 0
  %v740 = vsel %vm80, %v670, 0
  %v743 = vsel %vm80, %v671, 0
  %v746 = vsel %vm80, %v672, 0
  %v749 = vsel %vm80, %v673, 0
  %v752 = vsel %vm80, %v674, 0
  %v755 = vsel %vm80, %v675, 0
  %v758 = vsel %vm80, %v676, 0
  %v761 = vsel %vm80, %v677, 0
  %v764 = vsel %vm80, %v678, 0
  %v767 = vsel %vm80, %v679, 0
  %v770 = vsel %vm80, %v680, 0
  %v773 = vsel %vm80, %v681, 0
  %v776 = vsel %vm80, %v682, 0
  %v779 = vsel %vm80, %v683, 0
  %v782 = vsel %vm80, %v684, 0
  %v785 = vsel %vm80, %v685, 0
  %v788 = vsel %vm80, %v686, 0
  %v791 = vsel %vm80, %v687, 0
  %v794 = vsel %vm80, %v688, 0
  %v797 = vsel %vm80, %v689, 0
  %v800 = vsel %vm80, %v690, 0
  %v803 = vsel %vm80, %v691, 0
  %v806 = vsel %vm80, %v692, 0
  %v809 = vsel %vm80, %v693, 0
  %v812 = vsel %vm80, %v694, 0
  %v815 = vsel %vm80, %v695, 0
  %v818 = vsel %vm80, %v696, 0
  %v821 = vsel %vm80, %v697, 0
  %v824 = vsel %vm80, %v698, 0
  %v827 = vsel %vm80, %v699, 0
  %v830 = vsel %vm80, %v700, 0
  %v833 = vsel %vm80, %v701, 0
  %v836 = vsel %vm80, %v702, 0
  %v839 = vsel %vm80, %v703, 0
  %v842 = vsel %vm80, %v704, 0
  %v845 = vsel %vm80, %v705, 0
  %v848 = vsel %vm80, %v706, 0
  %v851 = vsel %vm80, %v707, 0
  %v854 = vsel %vm80, %v708, 0
  %v857 = vsel %vm80, %v709, 0
  %v860 = vsel %vm80, %v710, 0
  %v863 = vsel %vm80, %v711, 0
  %v866 = vsel %vm80, %v712, 0
  %v869 = vsel %vm80, %v713, 0
  %v872 = vsel %vm80, %v714, 0
  %v875 = vsel %vm80, %v715, 0
  %v878 = vsel %vm80, %v716, 0
  %v881 = vsel %vm80, %v717, 0
  %v884 = vsel %vm80, %v718, 0
  %v887 = vsel %vm80, %v719, 0
  %v890 = vsel %vm80, %v720, 0
  %892 = vmatprep.subr.mxu0 0.0
  %893 = vmatpush1.msra.mxu0 %v14
  %894 = vmatprep.subr.mxu0 0.0
  %895 = vmatpush1.msra.mxu0 %v254
  %896 = vmatprep.subr.mxu0 0.0
  %897 = vmatpush1.msra.mxu0 0.0
  %898 = vmatprep.subr.mxu0 0.0
  %899 = vmatpush1.msra.mxu0 0.0
  %900 = vmatprep.subr.mxu0 0.0
  %901 = vmatpush1.msra.mxu0 0.0
  %902 = vmatprep.subr.mxu0 0.0
  %903 = vmatpush1.msra.mxu0 0.0
  %904 = vmatprep.subr.mxu0 0.0
  %905 = vmatpush1.msra.mxu0 0.0
  %906 = vmatprep.subr.mxu0 0.0
  %907 = vmatpush1.msra.mxu0 0.0
  %908 = vmatprep.subr.mxu0 0.0
  %909 = vmatpush1.msra.mxu0 0.0
  %910 = vmatprep.subr.mxu0 0.0
  %911 = vmatpush1.msra.mxu0 0.0
  %912 = vmatprep.subr.mxu0 0.0
  %913 = vmatpush1.msra.mxu0 0.0
  %914 = vmatprep.subr.mxu0 0.0
  %915 = vmatpush1.msra.mxu0 0.0
  %916 = vmatprep.subr.mxu0 0.0
  %917 = vmatpush1.msra.mxu0 0.0
  %918 = vmatprep.subr.mxu0 0.0
  %919 = vmatpush1.msra.mxu0 0.0
  %920 = vmatprep.subr.mxu0 0.0
  %921 = vmatpush1.msra.mxu0 0.0
  %922 = vmatprep.subr.mxu0 0.0
  %923 = vmatpush1.msra.mxu0 0.0
  %924 = vmatprep.subr.mxu0 0.0
  %925 = vmatpush1.msra.mxu0 0.0
  %926 = vmatprep.subr.mxu0 0.0
  %927 = vmatpush1.msra.mxu0 0.0
  %928 = vmatprep.subr.mxu0 0.0
  %929 = vmatpush1.msra.mxu0 0.0
  %930 = vmatprep.subr.mxu0 0.0
  %931 = vmatpush1.msra.mxu0 0.0
  %932 = vmatprep.subr.mxu0 0.0
  %933 = vmatpush1.msra.mxu0 0.0
  %934 = vmatprep.subr.mxu0 0.0
  %935 = vmatpush1.msra.mxu0 0.0
  %936 = vmatprep.subr.mxu0 0.0
  %937 = vmatpush1.msra.mxu0 0.0
  %938 = vmatprep.subr.mxu0 0.0
  %939 = vmatpush1.msra.mxu0 0.0
  %940 = vmatprep.subr.mxu0 0.0
  %941 = vmatpush1.msra.mxu0 0.0
  %942 = vmatprep.subr.mxu0 0.0
  %943 = vmatpush1.msra.mxu0 0.0
  %944 = vmatprep.subr.mxu0 0.0
  %945 = vmatpush1.msra.mxu0 0.0
  %946 = vmatprep.subr.mxu0 0.0
  %947 = vmatpush1.msra.mxu0 0.0
  %948 = vmatprep.subr.mxu0 0.0
  %949 = vmatpush1.msra.mxu0 0.0
  %950 = vmatprep.subr.mxu0 0.0
  %951 = vmatpush1.msra.mxu0 0.0
  %952 = vmatprep.subr.mxu0 0.0
  %953 = vmatpush1.msra.mxu0 0.0
  %954 = vmatprep.subr.mxu0 0.0
  %955 = vmatpush1.msra.mxu0 0.0
  %956 = vmatprep.mubr.f32.mxu0 0.0
  %957 = vmatmul.mubr.f32.gmra.mrb[0].mxu0 %v722
  %v958 = vpop.f32.mrb[0].mxu0
  %v959 = vadd.f32 %v78, %v958
  %v960 = vpop.f32.mrb[0].mxu0
  %961 = vmatprep.mubr.f32.mxu0 0.0
  %962 = vmatmul.mubr.f32.gmra.mrb[0].mxu0 %v725
  %v963 = vpop.f32.mrb[0].mxu0
  %v964 = vadd.f32 %v78, %v963
  %v965 = vpop.f32.mrb[0].mxu0
  %966 = vmatprep.mubr.f32.mxu0 0.0
  %967 = vmatmul.mubr.f32.gmra.mrb[0].mxu0 %v728
  %v968 = vpop.f32.mrb[0].mxu0
  %v969 = vadd.f32 %v78, %v968
  %v970 = vpop.f32.mrb[0].mxu0
  %971 = vmatprep.mubr.f32.mxu0 0.0
  %972 = vmatmul.mubr.f32.gmra.mrb[0].mxu0 %v731
  %v973 = vpop.f32.mrb[0].mxu0
  %v974 = vadd.f32 %v78, %v973
  %v975 = vpop.f32.mrb[0].mxu0
  %976 = vmatprep.mubr.f32.mxu0 0.0
  %977 = vmatmul.mubr.f32.gmra.mrb[0].mxu0 %v734
  %v978 = vpop.f32.mrb[0].mxu0
  %v979 = vadd.f32 %v78, %v978
  %v980 = vpop.f32.mrb[0].mxu0
  %981 = vmatprep.mubr.f32.mxu0 0.0
  %982 = vmatmul.mubr.f32.gmra.mrb[0].mxu0 %v737
  %v983 = vpop.f32.mrb[0].mxu0
  %v984 = vadd.f32 %v78, %v983
  %v985 = vpop.f32.mrb[0].mxu0
  %986 = vmatprep.mubr.f32.mxu0 0.0
  %987 = vmatmul.mubr.f32.gmra.mrb[0].mxu0 %v740
  %v988 = vpop.f32.mrb[0].mxu0
  %v989 = vadd.f32 %v78, %v988
  %v990 = vpop.f32.mrb[0].mxu0
  %991 = vmatprep.mubr.f32.mxu0 0.0
  %992 = vmatmul.mubr.f32.gmra.mrb[0].mxu0 %v743
  %v993 = vpop.f32.mrb[0].mxu0
  %v994 = vadd.f32 %v78, %v993
  %v995 = vpop.f32.mrb[0].mxu0
  %996 = vmatprep.mubr.f32.mxu0 0.0
  %997 = vmatmul.mubr.f32.gmra.mrb[0].mxu0 %v746
  %v998 = vpop.f32.mrb[0].mxu0
  %v999 = vadd.f32 %v78, %v998
  %v1000 = vpop.f32.mrb[0].mxu0
  %1001 = vmatprep.mubr.f32.mxu0 0.0
  %1002 = vmatmul.mubr.f32.gmra.mrb[0].mxu0 %v749
  %v1003 = vpop.f32.mrb[0].mxu0
  %v1004 = vadd.f32 %v78, %v1003
  %v1005 = vpop.f32.mrb[0].mxu0
  %1006 = vmatprep.mubr.f32.mxu0 0.0
  %1007 = vmatmul.mubr.f32.gmra.mrb[0].mxu0 %v752
  %v1008 = vpop.f32.mrb[0].mxu0
  %v1009 = vadd.f32 %v78, %v1008
  %v1010 = vpop.f32.mrb[0].mxu0
  %1011 = vmatprep.mubr.f32.mxu0 0.0
  %1012 = vmatmul.mubr.f32.gmra.mrb[0].mxu0 %v755
  %v1013 = vpop.f32.mrb[0].mxu0
  %v1014 = vadd.f32 %v78, %v1013
  %v1015 = vpop.f32.mrb[0].mxu0
  %1016 = vmatprep.mubr.f32.mxu0 0.0
  %1017 = vmatmul.mubr.f32.gmra.mrb[0].mxu0 %v758
  %v1018 = vpop.f32.mrb[0].mxu0
  %v1019 = vadd.f32 %v78, %v1018
  %v1020 = vpop.f32.mrb[0].mxu0
  %1021 = vmatprep.mubr.f32.mxu0 0.0
  %1022 = vmatmul.mubr.f32.gmra.mrb[0].mxu0 %v761
  %v1023 = vpop.f32.mrb[0].mxu0
  %v1024 = vadd.f32 %v78, %v1023
  %v1025 = vpop.f32.mrb[0].mxu0
  %1026 = vmatprep.mubr.f32.mxu0 0.0
  %1027 = vmatmul.mubr.f32.gmra.mrb[0].mxu0 %v764
  %v1028 = vpop.f32.mrb[0].mxu0
  %v1029 = vadd.f32 %v78, %v1028
  %v1030 = vpop.f32.mrb[0].mxu0
  %1031 = vmatprep.mubr.f32.mxu0 0.0
  %1032 = vmatmul.mubr.f32.gmra.mrb[0].mxu0 %v767
  %v1033 = vpop.f32.mrb[0].mxu0
  %v1034 = vadd.f32 %v78, %v1033
  %v1035 = vpop.f32.mrb[0].mxu0
  %1036 = vmatprep.mubr.f32.mxu0 0.0
  %1037 = vmatmul.mubr.f32.gmra.mrb[0].mxu0 %v770
  %v1038 = vpop.f32.mrb[0].mxu0
  %v1039 = vadd.f32 %v78, %v1038
  %v1040 = vpop.f32.mrb[0].mxu0
  %1041 = vmatprep.mubr.f32.mxu0 0.0
  %1042 = vmatmul.mubr.f32.gmra.mrb[0].mxu0 %v773
  %v1043 = vpop.f32.mrb[0].mxu0
  %v1044 = vadd.f32 %v78, %v1043
  %v1045 = vpop.f32.mrb[0].mxu0
  %1046 = vmatprep.mubr.f32.mxu0 0.0
  %1047 = vmatmul.mubr.f32.gmra.mrb[0].mxu0 %v776
  %v1048 = vpop.f32.mrb[0].mxu0
  %v1049 = vadd.f32 %v78, %v1048
  %v1050 = vpop.f32.mrb[0].mxu0
  %1051 = vmatprep.mubr.f32.mxu0 0.0
  %1052 = vmatmul.mubr.f32.gmra.mrb[0].mxu0 %v779
  %v1053 = vpop.f32.mrb[0].mxu0
  %v1054 = vadd.f32 %v78, %v1053
  %v1055 = vpop.f32.mrb[0].mxu0
  %1056 = vmatprep.mubr.f32.mxu0 0.0
  %1057 = vmatmul.mubr.f32.gmra.mrb[0].mxu0 %v782
  %v1058 = vpop.f32.mrb[0].mxu0
  %v1059 = vadd.f32 %v78, %v1058
  %v1060 = vpop.f32.mrb[0].mxu0
  %1061 = vmatprep.mubr.f32.mxu0 0.0
  %1062 = vmatmul.mubr.f32.gmra.mrb[0].mxu0 %v785
  %v1063 = vpop.f32.mrb[0].mxu0
  %v1064 = vadd.f32 %v78, %v1063
  %v1065 = vpop.f32.mrb[0].mxu0
  %1066 = vmatprep.mubr.f32.mxu0 0.0
  %1067 = vmatmul.mubr.f32.gmra.mrb[0].mxu0 %v788
  %v1068 = vpop.f32.mrb[0].mxu0
  %v1069 = vadd.f32 %v78, %v1068
  %v1070 = vpop.f32.mrb[0].mxu0
  %1071 = vmatprep.mubr.f32.mxu0 0.0
  %1072 = vmatmul.mubr.f32.gmra.mrb[0].mxu0 %v791
  %v1073 = vpop.f32.mrb[0].mxu0
  %v1074 = vadd.f32 %v78, %v1073
  %v1075 = vpop.f32.mrb[0].mxu0
  %1076 = vmatprep.mubr.f32.mxu0 0.0
  %1077 = vmatmul.mubr.f32.gmra.mrb[0].mxu0 %v794
  %v1078 = vpop.f32.mrb[0].mxu0
  %v1079 = vadd.f32 %v78, %v1078
  %v1080 = vpop.f32.mrb[0].mxu0
  %1081 = vmatprep.mubr.f32.mxu0 0.0
  %1082 = vmatmul.mubr.f32.gmra.mrb[0].mxu0 %v797
  %v1083 = vpop.f32.mrb[0].mxu0
  %v1084 = vadd.f32 %v78, %v1083
  %v1085 = vpop.f32.mrb[0].mxu0
  %1086 = vmatprep.mubr.f32.mxu0 0.0
  %1087 = vmatmul.mubr.f32.gmra.mrb[0].mxu0 %v800
  %v1088 = vpop.f32.mrb[0].mxu0
  %v1089 = vadd.f32 %v78, %v1088
  %v1090 = vpop.f32.mrb[0].mxu0
  %1091 = vmatprep.mubr.f32.mxu0 0.0
  %1092 = vmatmul.mubr.f32.gmra.mrb[0].mxu0 %v803
  %v1093 = vpop.f32.mrb[0].mxu0
  %v1094 = vadd.f32 %v78, %v1093
  %v1095 = vpop.f32.mrb[0].mxu0
  %1096 = vmatprep.mubr.f32.mxu0 0.0
  %1097 = vmatmul.mubr.f32.gmra.mrb[0].mxu0 %v806
  %v1098 = vpop.f32.mrb[0].mxu0
  %v1099 = vadd.f32 %v78, %v1098
  %v1100 = vpop.f32.mrb[0].mxu0
  %1101 = vmatprep.mubr.f32.mxu0 0.0
  %1102 = vmatmul.mubr.f32.gmra.mrb[0].mxu0 %v809
  %v1103 = vpop.f32.mrb[0].mxu0
  %v1104 = vadd.f32 %v78, %v1103
  %v1105 = vpop.f32.mrb[0].mxu0
  %1106 = vmatprep.mubr.f32.mxu0 0.0
  %1107 = vmatmul.mubr.f32.gmra.mrb[0].mxu0 %v812
  %v1108 = vpop.f32.mrb[0].mxu0
  %v1109 = vadd.f32 %v78, %v1108
  %v1110 = vpop.f32.mrb[0].mxu0
  %1111 = vmatprep.mubr.f32.mxu0 0.0
  %1112 = vmatmul.mubr.f32.gmra.mrb[0].mxu0 %v815
  %v1113 = vpop.f32.mrb[0].mxu0
  %v1114 = vadd.f32 %v78, %v1113
  %v1115 = vpop.f32.mrb[0].mxu0
  %1116 = vmatprep.mubr.f32.mxu0 0.0
  %1117 = vmatmul.mubr.f32.gmra.mrb[0].mxu0 %v818
  %v1118 = vpop.f32.mrb[0].mxu0
  %v1119 = vadd.f32 %v78, %v1118
  %v1120 = vpop.f32.mrb[0].mxu0
  %1121 = vmatprep.mubr.f32.mxu0 0.0
  %1122 = vmatmul.mubr.f32.gmra.mrb[0].mxu0 %v821
  %v1123 = vpop.f32.mrb[0].mxu0
  %v1124 = vadd.f32 %v78, %v1123
  %v1125 = vpop.f32.mrb[0].mxu0
  %1126 = vmatprep.mubr.f32.mxu0 0.0
  %1127 = vmatmul.mubr.f32.gmra.mrb[0].mxu0 %v824
  %v1128 = vpop.f32.mrb[0].mxu0
  %v1129 = vadd.f32 %v78, %v1128
  %v1130 = vpop.f32.mrb[0].mxu0
  %1131 = vmatprep.mubr.f32.mxu0 0.0
  %1132 = vmatmul.mubr.f32.gmra.mrb[0].mxu0 %v827
  %v1133 = vpop.f32.mrb[0].mxu0
  %v1134 = vadd.f32 %v78, %v1133
  %v1135 = vpop.f32.mrb[0].mxu0
  %1136 = vmatprep.mubr.f32.mxu0 0.0
  %1137 = vmatmul.mubr.f32.gmra.mrb[0].mxu0 %v830
  %v1138 = vpop.f32.mrb[0].mxu0
  %v1139 = vadd.f32 %v78, %v1138
  %v1140 = vpop.f32.mrb[0].mxu0
  %1141 = vmatprep.mubr.f32.mxu0 0.0
  %1142 = vmatmul.mubr.f32.gmra.mrb[0].mxu0 %v833
  %v1143 = vpop.f32.mrb[0].mxu0
  %v1144 = vadd.f32 %v78, %v1143
  %v1145 = vpop.f32.mrb[0].mxu0
  %1146 = vmatprep.mubr.f32.mxu0 0.0
  %1147 = vmatmul.mubr.f32.gmra.mrb[0].mxu0 %v836
  %v1148 = vpop.f32.mrb[0].mxu0
  %v1149 = vadd.f32 %v78, %v1148
  %v1150 = vpop.f32.mrb[0].mxu0
  %1151 = vmatprep.mubr.f32.mxu0 0.0
  %1152 = vmatmul.mubr.f32.gmra.mrb[0].mxu0 %v839
  %v1153 = vpop.f32.mrb[0].mxu0
  %v1154 = vadd.f32 %v78, %v1153
  %v1155 = vpop.f32.mrb[0].mxu0
  %1156 = vmatprep.mubr.f32.mxu0 0.0
  %1157 = vmatmul.mubr.f32.gmra.mrb[0].mxu0 %v842
  %v1158 = vpop.f32.mrb[0].mxu0
  %v1159 = vadd.f32 %v78, %v1158
  %v1160 = vpop.f32.mrb[0].mxu0
  %1161 = vmatprep.mubr.f32.mxu0 0.0
  %1162 = vmatmul.mubr.f32.gmra.mrb[0].mxu0 %v845
  %v1163 = vpop.f32.mrb[0].mxu0
  %v1164 = vadd.f32 %v78, %v1163
  %v1165 = vpop.f32.mrb[0].mxu0
  %1166 = vmatprep.mubr.f32.mxu0 0.0
  %1167 = vmatmul.mubr.f32.gmra.mrb[0].mxu0 %v848
  %v1168 = vpop.f32.mrb[0].mxu0
  %v1169 = vadd.f32 %v78, %v1168
  %v1170 = vpop.f32.mrb[0].mxu0
  %1171 = vmatprep.mubr.f32.mxu0 0.0
  %1172 = vmatmul.mubr.f32.gmra.mrb[0].mxu0 %v851
  %v1173 = vpop.f32.mrb[0].mxu0
  %v1174 = vadd.f32 %v78, %v1173
  %v1175 = vpop.f32.mrb[0].mxu0
  %1176 = vmatprep.mubr.f32.mxu0 0.0
  %1177 = vmatmul.mubr.f32.gmra.mrb[0].mxu0 %v854
  %v1178 = vpop.f32.mrb[0].mxu0
  %v1179 = vadd.f32 %v78, %v1178
  %v1180 = vpop.f32.mrb[0].mxu0
  %1181 = vmatprep.mubr.f32.mxu0 0.0
  %1182 = vmatmul.mubr.f32.gmra.mrb[0].mxu0 %v857
  %v1183 = vpop.f32.mrb[0].mxu0
  %v1184 = vadd.f32 %v78, %v1183
  %v1185 = vpop.f32.mrb[0].mxu0
  %1186 = vmatprep.mubr.f32.mxu0 0.0
  %1187 = vmatmul.mubr.f32.gmra.mrb[0].mxu0 %v860
  %v1188 = vpop.f32.mrb[0].mxu0
  %v1189 = vadd.f32 %v78, %v1188
  %v1190 = vpop.f32.mrb[0].mxu0
  %1191 = vmatprep.mubr.f32.mxu0 0.0
  %1192 = vmatmul.mubr.f32.gmra.mrb[0].mxu0 %v863
  %v1193 = vpop.f32.mrb[0].mxu0
  %v1194 = vadd.f32 %v78, %v1193
  %v1195 = vpop.f32.mrb[0].mxu0
  %1196 = vmatprep.mubr.f32.mxu0 0.0
  %1197 = vmatmul.mubr.f32.gmra.mrb[0].mxu0 %v866
  %v1198 = vpop.f32.mrb[0].mxu0
  %v1199 = vadd.f32 %v78, %v1198
  %v1200 = vpop.f32.mrb[0].mxu0
  %1201 = vmatprep.mubr.f32.mxu0 0.0
  %1202 = vmatmul.mubr.f32.gmra.mrb[0].mxu0 %v869
  %v1203 = vpop.f32.mrb[0].mxu0
  %v1204 = vadd.f32 %v78, %v1203
  %v1205 = vpop.f32.mrb[0].mxu0
  %1206 = vmatprep.mubr.f32.mxu0 0.0
  %1207 = vmatmul.mubr.f32.gmra.mrb[0].mxu0 %v872
  %v1208 = vpop.f32.mrb[0].mxu0
  %v1209 = vadd.f32 %v78, %v1208
  %v1210 = vpop.f32.mrb[0].mxu0
  %1211 = vmatprep.mubr.f32.mxu0 0.0
  %1212 = vmatmul.mubr.f32.gmra.mrb[0].mxu0 %v875
  %v1213 = vpop.f32.mrb[0].mxu0
  %v1214 = vadd.f32 %v78, %v1213
  %v1215 = vpop.f32.mrb[0].mxu0
  %1216 = vmatprep.mubr.f32.mxu0 0.0
  %1217 = vmatmul.mubr.f32.gmra.mrb[0].mxu0 %v878
  %v1218 = vpop.f32.mrb[0].mxu0
  %v1219 = vadd.f32 %v78, %v1218
  %v1220 = vpop.f32.mrb[0].mxu0
  %1221 = vmatprep.mubr.f32.mxu0 0.0
  %1222 = vmatmul.mubr.f32.gmra.mrb[0].mxu0 %v881
  %v1223 = vpop.f32.mrb[0].mxu0
  %v1224 = vadd.f32 %v78, %v1223
  %v1225 = vpop.f32.mrb[0].mxu0
  %1226 = vmatprep.mubr.f32.mxu0 0.0
  %1227 = vmatmul.mubr.f32.gmra.mrb[0].mxu0 %v884
  %v1228 = vpop.f32.mrb[0].mxu0
  %v1229 = vadd.f32 %v78, %v1228
  %v1230 = vpop.f32.mrb[0].mxu0
  %1231 = vmatprep.mubr.f32.mxu0 0.0
  %1232 = vmatmul.mubr.f32.gmra.mrb[0].mxu0 %v887
  %v1233 = vpop.f32.mrb[0].mxu0
  %v1234 = vadd.f32 %v78, %v1233
  %v1235 = vpop.f32.mrb[0].mxu0
  %1236 = vmatprep.mubr.f32.mxu0 0.0
  %1237 = vmatmul.mubr.f32.gmra.mrb[0].mxu0 %v890
  %v1238 = vpop.f32.mrb[0].mxu0
  %v1239 = vadd.f32 %v78, %v1238
  %v1240 = vpop.f32.mrb[0].mxu0
  %1241 = vdwg.mxu0
  %v1242 = vmax.f32 %v959, 0.0
  %v1243 = vmax.f32 %v964, 0.0
  %v1244 = vmax.f32 %v969, 0.0
  %v1245 = vmax.f32 %v974, 0.0
  %v1246 = vmax.f32 %v979, 0.0
  %v1247 = vmax.f32 %v984, 0.0
  %v1248 = vmax.f32 %v989, 0.0
  %v1249 = vmax.f32 %v994, 0.0
  %v1250 = vmax.f32 %v999, 0.0
  %v1251 = vmax.f32 %v1004, 0.0
  %v1252 = vmax.f32 %v1009, 0.0
  %v1253 = vmax.f32 %v1014, 0.0
  %v1254 = vmax.f32 %v1019, 0.0
  %v1255 = vmax.f32 %v1024, 0.0
  %v1256 = vmax.f32 %v1029, 0.0
  %v1257 = vmax.f32 %v1034, 0.0
  %v1258 = vmax.f32 %v1039, 0.0
  %v1259 = vmax.f32 %v1044, 0.0
  %v1260 = vmax.f32 %v1049, 0.0
  %v1261 = vmax.f32 %v1054, 0.0
  %v1262 = vmax.f32 %v1059, 0.0
  %v1263 = vmax.f32 %v1064, 0.0
  %v1264 = vmax.f32 %v1069, 0.0
  %v1265 = vmax.f32 %v1074, 0.0
  %v1266 = vmax.f32 %v1079, 0.0
  %v1267 = vmax.f32 %v1084, 0.0
  %v1268 = vmax.f32 %v1089, 0.0
  %v1269 = vmax.f32 %v1094, 0.0
  %v1270 = vmax.f32 %v1099, 0.0
  %v1271 = vmax.f32 %v1104, 0.0
  %v1272 = vmax.f32 %v1109, 0.0
  %v1273 = vmax.f32 %v1114, 0.0
  %v1274 = vmax.f32 %v1119, 0.0
  %v1275 = vmax.f32 %v1124, 0.0
  %v1276 = vmax.f32 %v1129, 0.0
  %v1277 = vmax.f32 %v1134, 0.0
  %v1278 = vmax.f32 %v1139, 0.0
  %v1279 = vmax.f32 %v1144, 0.0
  %v1280 = vmax.f32 %v1149, 0.0
  %v1281 = vmax.f32 %v1154, 0.0
  %v1282 = vmax.f32 %v1159, 0.0
  %v1283 = vmax.f32 %v1164, 0.0
  %v1284 = vmax.f32 %v1169, 0.0
  %v1285 = vmax.f32 %v1174, 0.0
  %v1286 = vmax.f32 %v1179, 0.0
  %v1287 = vmax.f32 %v1184, 0.0
  %v1288 = vmax.f32 %v1189, 0.0
  %v1289 = vmax.f32 %v1194, 0.0
  %v1290 = vmax.f32 %v1199, 0.0
  %v1291 = vmax.f32 %v1204, 0.0
  %v1292 = vmax.f32 %v1209, 0.0
  %v1293 = vmax.f32 %v1214, 0.0
  %v1294 = vmax.f32 %v1219, 0.0
  %v1295 = vmax.f32 %v1224, 0.0
  %v1296 = vmax.f32 %v1229, 0.0
  %v1297 = vmax.f32 %v1234, 0.0
  %v1298 = vmax.f32 %v1239, 0.0
  %v1299 = vmax.f32 %v606, %v1242
  %v1300 = vmax.f32 %v607, %v1243
  %v1301 = vmax.f32 %v608, %v1244
  %v1302 = vmax.f32 %v609, %v1245
  %v1303 = vmax.f32 %v610, %v1246
  %v1304 = vmax.f32 %v611, %v1247
  %v1305 = vmax.f32 %v612, %v1248
  %v1306 = vmax.f32 %v613, %v1249
  %v1307 = vmax.f32 %v614, %v1250
  %v1308 = vmax.f32 %v615, %v1251
  %v1309 = vmax.f32 %v616, %v1252
  %v1310 = vmax.f32 %v617, %v1253
  %v1311 = vmax.f32 %v618, %v1254
  %v1312 = vmax.f32 %v619, %v1255
  %v1313 = vmax.f32 %v620, %v1256
  %v1314 = vmax.f32 %v621, %v1257
  %v1315 = vmax.f32 %v622, %v1258
  %v1316 = vmax.f32 %v623, %v1259
  %v1317 = vmax.f32 %v624, %v1260
  %v1318 = vmax.f32 %v625, %v1261
  %v1319 = vmax.f32 %v626, %v1262
  %v1320 = vmax.f32 %v627, %v1263
  %v1321 = vmax.f32 %v628, %v1264
  %v1322 = vmax.f32 %v629, %v1265
  %v1323 = vmax.f32 %v630, %v1266
  %v1324 = vmax.f32 %v631, %v1267
  %v1325 = vmax.f32 %v632, %v1268
  %v1326 = vmax.f32 %v633, %v1269
  %v1327 = vmax.f32 %v634, %v1270
  %v1328 = vmax.f32 %v635, %v1271
  %v1329 = vmax.f32 %v636, %v1272
  %v1330 = vmax.f32 %v637, %v1273
  %v1331 = vmax.f32 %v638, %v1274
  %v1332 = vmax.f32 %v639, %v1275
  %v1333 = vmax.f32 %v640, %v1276
  %v1334 = vmax.f32 %v641, %v1277
  %v1335 = vmax.f32 %v642, %v1278
  %v1336 = vmax.f32 %v643, %v1279
  %v1337 = vmax.f32 %v644, %v1280
  %v1338 = vmax.f32 %v645, %v1281
  %v1339 = vmax.f32 %v646, %v1282
  %v1340 = vmax.f32 %v647, %v1283
  %v1341 = vmax.f32 %v648, %v1284
  %v1342 = vmax.f32 %v649, %v1285
  %v1343 = vmax.f32 %v650, %v1286
  %v1344 = vmax.f32 %v651, %v1287
  %v1345 = vmax.f32 %v652, %v1288
  %v1346 = vmax.f32 %v653, %v1289
  %v1347 = vmax.f32 %v654, %v1290
  %v1348 = vmax.f32 %v655, %v1291
  %v1349 = vmax.f32 %v656, %v1292
  %v1350 = vmax.f32 %v657, %v1293
  %v1351 = vmax.f32 %v658, %v1294
  %v1352 = vmax.f32 %v659, %v1295
  %v1353 = vmax.f32 %v660, %v1296
  %v1354 = vmax.f32 %v661, %v1297
  %v1355 = vmax.f32 %v662, %v1298
  %s1356 = scalar_lea.vmem %s0, 912
  %v1357 = vld [vmem:[%s1356] sm:$0xff]
  %v1358 = vld [vmem:[%s1356 + $0x8] sm:$0xff]
  %v1359 = vld [vmem:[%s1356 + $0x10] sm:$0xff]
  %v1360 = vld [vmem:[%s1356 + $0x18] sm:$0xff]
  %v1361 = vld [vmem:[%s1356 + $0x20] sm:$0xff]
  %v1362 = vld [vmem:[%s1356 + $0x28] sm:$0xff]
  %v1363 = vld [vmem:[%s1356 + $0x30] sm:$0xff]
  %v1364 = vld [vmem:[%s1356 + $0x38] sm:$0xff]
  %v1365 = vld [vmem:[%s1356 + $0x40] sm:$0xff]
  %v1366 = vld [vmem:[%s1356 + $0x48] sm:$0xff]
  %v1367 = vld [vmem:[%s1356 + $0x50] sm:$0xff]
  %v1368 = vld [vmem:[%s1356 + $0x58] sm:$0xff]
  %v1369 = vld [vmem:[%s1356 + $0x60] sm:$0xff]
  %v1370 = vld [vmem:[%s1356 + $0x68] sm:$0xff]
  %v1371 = vld [vmem:[%s1356 + $0x70] sm:$0xff]
  %v1372 = vld [vmem:[%s1356 + $0x78] sm:$0xff]
  %v1373 = vld [vmem:[%s1356 + $0x80] sm:$0xff]
  %v1374 = vld [vmem:[%s1356 + $0x88] sm:$0xff]
  %v1375 = vld [vmem:[%s1356 + $0x90] sm:$0xff]
  %v1376 = vld [vmem:[%s1356 + $0x98] sm:$0xff]
  %v1377 = vld [vmem:[%s1356 + $0xa0] sm:$0xff]
  %v1378 = vld [vmem:[%s1356 + $0xa8] sm:$0xff]
  %v1379 = vld [vmem:[%s1356 + $0xb0] sm:$0xff]
  %v1380 = vld [vmem:[%s1356 + $0xb8] sm:$0xff]
  %v1381 = vld [vmem:[%s1356 + $0xc0] sm:$0xff]
  %v1382 = vld [vmem:[%s1356 + $0xc8] sm:$0xff]
  %v1383 = vld [vmem:[%s1356 + $0xd0] sm:$0xff]
  %v1384 = vld [vmem:[%s1356 + $0xd8] sm:$0xff]
  %v1385 = vld [vmem:[%s1356 + $0xe0] sm:$0xff]
  %v1386 = vld [vmem:[%s1356 + $0xe8] sm:$0xff]
  %v1387 = vld [vmem:[%s1356 + $0xf0] sm:$0xff]
  %v1388 = vld [vmem:[%s1356 + $0xf8] sm:$0xff]
  %v1389 = vld [vmem:[%s1356 + $0x100] sm:$0xff]
  %v1390 = vld [vmem:[%s1356 + $0x108] sm:$0xff]
  %v1391 = vld [vmem:[%s1356 + $0x110] sm:$0xff]
  %v1392 = vld [vmem:[%s1356 + $0x118] sm:$0xff]
  %v1393 = vld [vmem:[%s1356 + $0x120] sm:$0xff]
  %v1394 = vld [vmem:[%s1356 + $0x128] sm:$0xff]
  %v1395 = vld [vmem:[%s1356 + $0x130] sm:$0xff]
  %v1396 = vld [vmem:[%s1356 + $0x138] sm:$0xff]
  %v1397 = vld [vmem:[%s1356 + $0x140] sm:$0xff]
  %v1398 = vld [vmem:[%s1356 + $0x148] sm:$0xff]
  %v1399 = vld [vmem:[%s1356 + $0x150] sm:$0xff]
  %v1400 = vld [vmem:[%s1356 + $0x158] sm:$0xff]
  %v1401 = vld [vmem:[%s1356 + $0x160] sm:$0xff]
  %v1402 = vld [vmem:[%s1356 + $0x168] sm:$0xff]
  %v1403 = vld [vmem:[%s1356 + $0x170] sm:$0xff]
  %v1404 = vld [vmem:[%s1356 + $0x178] sm:$0xff]
  %v1405 = vld [vmem:[%s1356 + $0x180] sm:$0xff]
  %v1406 = vld [vmem:[%s1356 + $0x188] sm:$0xff]
  %v1407 = vld [vmem:[%s1356 + $0x190] sm:$0xff]
  %v1408 = vld [vmem:[%s1356 + $0x198] sm:$0xff]
  %v1409 = vld [vmem:[%s1356 + $0x1a0] sm:$0xff]
  %v1410 = vld [vmem:[%s1356 + $0x1a8] sm:$0xff]
  %v1411 = vld [vmem:[%s1356 + $0x1b0] sm:$0xff]
  %v1412 = vld [vmem:[%s1356 + $0x1b8] sm:$0xff]
  %v1413 = vld [vmem:[%s1356 + $0x1c0] sm:$0x3]
  %v1415 = vsel %vm80, %v1357, 0
  %v1418 = vsel %vm80, %v1358, 0
  %v1421 = vsel %vm80, %v1359, 0
  %v1424 = vsel %vm80, %v1360, 0
  %v1427 = vsel %vm80, %v1361, 0
  %v1430 = vsel %vm80, %v1362, 0
  %v1433 = vsel %vm80, %v1363, 0
  %v1436 = vsel %vm80, %v1364, 0
  %v1439 = vsel %vm80, %v1365, 0
  %v1442 = vsel %vm80, %v1366, 0
  %v1445 = vsel %vm80, %v1367, 0
  %v1448 = vsel %vm80, %v1368, 0
  %v1451 = vsel %vm80, %v1369, 0
  %v1454 = vsel %vm80, %v1370, 0
  %v1457 = vsel %vm80, %v1371, 0
  %v1460 = vsel %vm80, %v1372, 0
  %v1463 = vsel %vm80, %v1373, 0
  %v1466 = vsel %vm80, %v1374, 0
  %v1469 = vsel %vm80, %v1375, 0
  %v1472 = vsel %vm80, %v1376, 0
  %v1475 = vsel %vm80, %v1377, 0
  %v1478 = vsel %vm80, %v1378, 0
  %v1481 = vsel %vm80, %v1379, 0
  %v1484 = vsel %vm80, %v1380, 0
  %v1487 = vsel %vm80, %v1381, 0
  %v1490 = vsel %vm80, %v1382, 0
  %v1493 = vsel %vm80, %v1383, 0
  %v1496 = vsel %vm80, %v1384, 0
  %v1499 = vsel %vm80, %v1385, 0
  %v1502 = vsel %vm80, %v1386, 0
  %v1505 = vsel %vm80, %v1387, 0
  %v1508 = vsel %vm80, %v1388, 0
  %v1511 = vsel %vm80, %v1389, 0
  %v1514 = vsel %vm80, %v1390, 0
  %v1517 = vsel %vm80, %v1391, 0
  %v1520 = vsel %vm80, %v1392, 0
  %v1523 = vsel %vm80, %v1393, 0
  %v1526 = vsel %vm80, %v1394, 0
  %v1529 = vsel %vm80, %v1395, 0
  %v1532 = vsel %vm80, %v1396, 0
  %v1535 = vsel %vm80, %v1397, 0
  %v1538 = vsel %vm80, %v1398, 0
  %v1541 = vsel %vm80, %v1399, 0
  %v1544 = vsel %vm80, %v1400, 0
  %v1547 = vsel %vm80, %v1401, 0
  %v1550 = vsel %vm80, %v1402, 0
  %v1553 = vsel %vm80, %v1403, 0
  %v1556 = vsel %vm80, %v1404, 0
  %v1559 = vsel %vm80, %v1405, 0
  %v1562 = vsel %vm80, %v1406, 0
  %v1565 = vsel %vm80, %v1407, 0
  %v1568 = vsel %vm80, %v1408, 0
  %v1571 = vsel %vm80, %v1409, 0
  %v1574 = vsel %vm80, %v1410, 0
  %v1577 = vsel %vm80, %v1411, 0
  %v1580 = vsel %vm80, %v1412, 0
  %v1583 = vsel %vm80, %v1413, 0
  %1585 = vmatprep.subr.mxu0 0.0
  %1586 = vmatpush1.msra.mxu0 %v14
  %1587 = vmatprep.subr.mxu0 0.0
  %1588 = vmatpush1.msra.mxu0 %v254
  %1589 = vmatprep.subr.mxu0 0.0
  %1590 = vmatpush1.msra.mxu0 0.0
  %1591 = vmatprep.subr.mxu0 0.0
  %1592 = vmatpush1.msra.mxu0 0.0
  %1593 = vmatprep.subr.mxu0 0.0
  %1594 = vmatpush1.msra.mxu0 0.0
  %1595 = vmatprep.subr.mxu0 0.0
  %1596 = vmatpush1.msra.mxu0 0.0
  %1597 = vmatprep.subr.mxu0 0.0
  %1598 = vmatpush1.msra.mxu0 0.0
  %1599 = vmatprep.subr.mxu0 0.0
  %1600 = vmatpush1.msra.mxu0 0.0
  %1601 = vmatprep.subr.mxu0 0.0
  %1602 = vmatpush1.msra.mxu0 0.0
  %1603 = vmatprep.subr.mxu0 0.0
  %1604 = vmatpush1.msra.mxu0 0.0
  %1605 = vmatprep.subr.mxu0 0.0
  %1606 = vmatpush1.msra.mxu0 0.0
  %1607 = vmatprep.subr.mxu0 0.0
  %1608 = vmatpush1.msra.mxu0 0.0
  %1609 = vmatprep.subr.mxu0 0.0
  %1610 = vmatpush1.msra.mxu0 0.0
  %1611 = vmatprep.subr.mxu0 0.0
  %1612 = vmatpush1.msra.mxu0 0.0
  %1613 = vmatprep.subr.mxu0 0.0
  %1614 = vmatpush1.msra.mxu0 0.0
  %1615 = vmatprep.subr.mxu0 0.0
  %1616 = vmatpush1.msra.mxu0 0.0
  %1617 = vmatprep.subr.mxu0 0.0
  %1618 = vmatpush1.msra.mxu0 0.0
  %1619 = vmatprep.subr.mxu0 0.0
  %1620 = vmatpush1.msra.mxu0 0.0
  %1621 = vmatprep.subr.mxu0 0.0
  %1622 = vmatpush1.msra.mxu0 0.0
  %1623 = vmatprep.subr.mxu0 0.0
  %1624 = vmatpush1.msra.mxu0 0.0
  %1625 = vmatprep.subr.mxu0 0.0
  %1626 = vmatpush1.msra.mxu0 0.0
  %1627 = vmatprep.subr.mxu0 0.0
  %1628 = vmatpush1.msra.mxu0 0.0
  %1629 = vmatprep.subr.mxu0 0.0
  %1630 = vmatpush1.msra.mxu0 0.0
  %1631 = vmatprep.subr.mxu0 0.0
  %1632 = vmatpush1.msra.mxu0 0.0
  %1633 = vmatprep.subr.mxu0 0.0
  %1634 = vmatpush1.msra.mxu0 0.0
  %1635 = vmatprep.subr.mxu0 0.0
  %1636 = vmatpush1.msra.mxu0 0.0
  %1637 = vmatprep.subr.mxu0 0.0
  %1638 = vmatpush1.msra.mxu0 0.0
  %1639 = vmatprep.subr.mxu0 0.0
  %1640 = vmatpush1.msra.mxu0 0.0
  %1641 = vmatprep.subr.mxu0 0.0
  %1642 = vmatpush1.msra.mxu0 0.0
  %1643 = vmatprep.subr.mxu0 0.0
  %1644 = vmatpush1.msra.mxu0 0.0
  %1645 = vmatprep.subr.mxu0 0.0
  %1646 = vmatpush1.msra.mxu0 0.0
  %1647 = vmatprep.subr.mxu0 0.0
  %1648 = vmatpush1.msra.mxu0 0.0
  %1649 = vmatprep.mubr.f32.mxu0 0.0
  %1650 = vmatmul.mubr.f32.gmra.mrb[0].mxu0 %v1415
  %v1651 = vpop.f32.mrb[0].mxu0
  %v1652 = vadd.f32 %v78, %v1651
  %v1653 = vpop.f32.mrb[0].mxu0
  %1654 = vmatprep.mubr.f32.mxu0 0.0
  %1655 = vmatmul.mubr.f32.gmra.mrb[0].mxu0 %v1418
  %v1656 = vpop.f32.mrb[0].mxu0
  %v1657 = vadd.f32 %v78, %v1656
  %v1658 = vpop.f32.mrb[0].mxu0
  %1659 = vmatprep.mubr.f32.mxu0 0.0
  %1660 = vmatmul.mubr.f32.gmra.mrb[0].mxu0 %v1421
  %v1661 = vpop.f32.mrb[0].mxu0
  %v1662 = vadd.f32 %v78, %v1661
  %v1663 = vpop.f32.mrb[0].mxu0
  %1664 = vmatprep.mubr.f32.mxu0 0.0
  %1665 = vmatmul.mubr.f32.gmra.mrb[0].mxu0 %v1424
  %v1666 = vpop.f32.mrb[0].mxu0
  %v1667 = vadd.f32 %v78, %v1666
  %v1668 = vpop.f32.mrb[0].mxu0
  %1669 = vmatprep.mubr.f32.mxu0 0.0
  %1670 = vmatmul.mubr.f32.gmra.mrb[0].mxu0 %v1427
  %v1671 = vpop.f32.mrb[0].mxu0
  %v1672 = vadd.f32 %v78, %v1671
  %v1673 = vpop.f32.mrb[0].mxu0
  %1674 = vmatprep.mubr.f32.mxu0 0.0
  %1675 = vmatmul.mubr.f32.gmra.mrb[0].mxu0 %v1430
  %v1676 = vpop.f32.mrb[0].mxu0
  %v1677 = vadd.f32 %v78, %v1676
  %v1678 = vpop.f32.mrb[0].mxu0
  %1679 = vmatprep.mubr.f32.mxu0 0.0
  %1680 = vmatmul.mubr.f32.gmra.mrb[0].mxu0 %v1433
  %v1681 = vpop.f32.mrb[0].mxu0
  %v1682 = vadd.f32 %v78, %v1681
  %v1683 = vpop.f32.mrb[0].mxu0
  %1684 = vmatprep.mubr.f32.mxu0 0.0
  %1685 = vmatmul.mubr.f32.gmra.mrb[0].mxu0 %v1436
  %v1686 = vpop.f32.mrb[0].mxu0
  %v1687 = vadd.f32 %v78, %v1686
  %v1688 = vpop.f32.mrb[0].mxu0
  %1689 = vmatprep.mubr.f32.mxu0 0.0
  %1690 = vmatmul.mubr.f32.gmra.mrb[0].mxu0 %v1439
  %v1691 = vpop.f32.mrb[0].mxu0
  %v1692 = vadd.f32 %v78, %v1691
  %v1693 = vpop.f32.mrb[0].mxu0
  %1694 = vmatprep.mubr.f32.mxu0 0.0
  %1695 = vmatmul.mubr.f32.gmra.mrb[0].mxu0 %v1442
  %v1696 = vpop.f32.mrb[0].mxu0
  %v1697 = vadd.f32 %v78, %v1696
  %v1698 = vpop.f32.mrb[0].mxu0
  %1699 = vmatprep.mubr.f32.mxu0 0.0
  %1700 = vmatmul.mubr.f32.gmra.mrb[0].mxu0 %v1445
  %v1701 = vpop.f32.mrb[0].mxu0
  %v1702 = vadd.f32 %v78, %v1701
  %v1703 = vpop.f32.mrb[0].mxu0
  %1704 = vmatprep.mubr.f32.mxu0 0.0
  %1705 = vmatmul.mubr.f32.gmra.mrb[0].mxu0 %v1448
  %v1706 = vpop.f32.mrb[0].mxu0
  %v1707 = vadd.f32 %v78, %v1706
  %v1708 = vpop.f32.mrb[0].mxu0
  %1709 = vmatprep.mubr.f32.mxu0 0.0
  %1710 = vmatmul.mubr.f32.gmra.mrb[0].mxu0 %v1451
  %v1711 = vpop.f32.mrb[0].mxu0
  %v1712 = vadd.f32 %v78, %v1711
  %v1713 = vpop.f32.mrb[0].mxu0
  %1714 = vmatprep.mubr.f32.mxu0 0.0
  %1715 = vmatmul.mubr.f32.gmra.mrb[0].mxu0 %v1454
  %v1716 = vpop.f32.mrb[0].mxu0
  %v1717 = vadd.f32 %v78, %v1716
  %v1718 = vpop.f32.mrb[0].mxu0
  %1719 = vmatprep.mubr.f32.mxu0 0.0
  %1720 = vmatmul.mubr.f32.gmra.mrb[0].mxu0 %v1457
  %v1721 = vpop.f32.mrb[0].mxu0
  %v1722 = vadd.f32 %v78, %v1721
  %v1723 = vpop.f32.mrb[0].mxu0
  %1724 = vmatprep.mubr.f32.mxu0 0.0
  %1725 = vmatmul.mubr.f32.gmra.mrb[0].mxu0 %v1460
  %v1726 = vpop.f32.mrb[0].mxu0
  %v1727 = vadd.f32 %v78, %v1726
  %v1728 = vpop.f32.mrb[0].mxu0
  %1729 = vmatprep.mubr.f32.mxu0 0.0
  %1730 = vmatmul.mubr.f32.gmra.mrb[0].mxu0 %v1463
  %v1731 = vpop.f32.mrb[0].mxu0
  %v1732 = vadd.f32 %v78, %v1731
  %v1733 = vpop.f32.mrb[0].mxu0
  %1734 = vmatprep.mubr.f32.mxu0 0.0
  %1735 = vmatmul.mubr.f32.gmra.mrb[0].mxu0 %v1466
  %v1736 = vpop.f32.mrb[0].mxu0
  %v1737 = vadd.f32 %v78, %v1736
  %v1738 = vpop.f32.mrb[0].mxu0
  %1739 = vmatprep.mubr.f32.mxu0 0.0
  %1740 = vmatmul.mubr.f32.gmra.mrb[0].mxu0 %v1469
  %v1741 = vpop.f32.mrb[0].mxu0
  %v1742 = vadd.f32 %v78, %v1741
  %v1743 = vpop.f32.mrb[0].mxu0
  %1744 = vmatprep.mubr.f32.mxu0 0.0
  %1745 = vmatmul.mubr.f32.gmra.mrb[0].mxu0 %v1472
  %v1746 = vpop.f32.mrb[0].mxu0
  %v1747 = vadd.f32 %v78, %v1746
  %v1748 = vpop.f32.mrb[0].mxu0
  %1749 = vmatprep.mubr.f32.mxu0 0.0
  %1750 = vmatmul.mubr.f32.gmra.mrb[0].mxu0 %v1475
  %v1751 = vpop.f32.mrb[0].mxu0
  %v1752 = vadd.f32 %v78, %v1751
  %v1753 = vpop.f32.mrb[0].mxu0
  %1754 = vmatprep.mubr.f32.mxu0 0.0
  %1755 = vmatmul.mubr.f32.gmra.mrb[0].mxu0 %v1478
  %v1756 = vpop.f32.mrb[0].mxu0
  %v1757 = vadd.f32 %v78, %v1756
  %v1758 = vpop.f32.mrb[0].mxu0
  %1759 = vmatprep.mubr.f32.mxu0 0.0
  %1760 = vmatmul.mubr.f32.gmra.mrb[0].mxu0 %v1481
  %v1761 = vpop.f32.mrb[0].mxu0
  %v1762 = vadd.f32 %v78, %v1761
  %v1763 = vpop.f32.mrb[0].mxu0
  %1764 = vmatprep.mubr.f32.mxu0 0.0
  %1765 = vmatmul.mubr.f32.gmra.mrb[0].mxu0 %v1484
  %v1766 = vpop.f32.mrb[0].mxu0
  %v1767 = vadd.f32 %v78, %v1766
  %v1768 = vpop.f32.mrb[0].mxu0
  %1769 = vmatprep.mubr.f32.mxu0 0.0
  %1770 = vmatmul.mubr.f32.gmra.mrb[0].mxu0 %v1487
  %v1771 = vpop.f32.mrb[0].mxu0
  %v1772 = vadd.f32 %v78, %v1771
  %v1773 = vpop.f32.mrb[0].mxu0
  %1774 = vmatprep.mubr.f32.mxu0 0.0
  %1775 = vmatmul.mubr.f32.gmra.mrb[0].mxu0 %v1490
  %v1776 = vpop.f32.mrb[0].mxu0
  %v1777 = vadd.f32 %v78, %v1776
  %v1778 = vpop.f32.mrb[0].mxu0
  %1779 = vmatprep.mubr.f32.mxu0 0.0
  %1780 = vmatmul.mubr.f32.gmra.mrb[0].mxu0 %v1493
  %v1781 = vpop.f32.mrb[0].mxu0
  %v1782 = vadd.f32 %v78, %v1781
  %v1783 = vpop.f32.mrb[0].mxu0
  %1784 = vmatprep.mubr.f32.mxu0 0.0
  %1785 = vmatmul.mubr.f32.gmra.mrb[0].mxu0 %v1496
  %v1786 = vpop.f32.mrb[0].mxu0
  %v1787 = vadd.f32 %v78, %v1786
  %v1788 = vpop.f32.mrb[0].mxu0
  %1789 = vmatprep.mubr.f32.mxu0 0.0
  %1790 = vmatmul.mubr.f32.gmra.mrb[0].mxu0 %v1499
  %v1791 = vpop.f32.mrb[0].mxu0
  %v1792 = vadd.f32 %v78, %v1791
  %v1793 = vpop.f32.mrb[0].mxu0
  %1794 = vmatprep.mubr.f32.mxu0 0.0
  %1795 = vmatmul.mubr.f32.gmra.mrb[0].mxu0 %v1502
  %v1796 = vpop.f32.mrb[0].mxu0
  %v1797 = vadd.f32 %v78, %v1796
  %v1798 = vpop.f32.mrb[0].mxu0
  %1799 = vmatprep.mubr.f32.mxu0 0.0
  %1800 = vmatmul.mubr.f32.gmra.mrb[0].mxu0 %v1505
  %v1801 = vpop.f32.mrb[0].mxu0
  %v1802 = vadd.f32 %v78, %v1801
  %v1803 = vpop.f32.mrb[0].mxu0
  %1804 = vmatprep.mubr.f32.mxu0 0.0
  %1805 = vmatmul.mubr.f32.gmra.mrb[0].mxu0 %v1508
  %v1806 = vpop.f32.mrb[0].mxu0
  %v1807 = vadd.f32 %v78, %v1806
  %v1808 = vpop.f32.mrb[0].mxu0
  %1809 = vmatprep.mubr.f32.mxu0 0.0
  %1810 = vmatmul.mubr.f32.gmra.mrb[0].mxu0 %v1511
  %v1811 = vpop.f32.mrb[0].mxu0
  %v1812 = vadd.f32 %v78, %v1811
  %v1813 = vpop.f32.mrb[0].mxu0
  %1814 = vmatprep.mubr.f32.mxu0 0.0
  %1815 = vmatmul.mubr.f32.gmra.mrb[0].mxu0 %v1514
  %v1816 = vpop.f32.mrb[0].mxu0
  %v1817 = vadd.f32 %v78, %v1816
  %v1818 = vpop.f32.mrb[0].mxu0
  %1819 = vmatprep.mubr.f32.mxu0 0.0
  %1820 = vmatmul.mubr.f32.gmra.mrb[0].mxu0 %v1517
  %v1821 = vpop.f32.mrb[0].mxu0
  %v1822 = vadd.f32 %v78, %v1821
  %v1823 = vpop.f32.mrb[0].mxu0
  %1824 = vmatprep.mubr.f32.mxu0 0.0
  %1825 = vmatmul.mubr.f32.gmra.mrb[0].mxu0 %v1520
  %v1826 = vpop.f32.mrb[0].mxu0
  %v1827 = vadd.f32 %v78, %v1826
  %v1828 = vpop.f32.mrb[0].mxu0
  %1829 = vmatprep.mubr.f32.mxu0 0.0
  %1830 = vmatmul.mubr.f32.gmra.mrb[0].mxu0 %v1523
  %v1831 = vpop.f32.mrb[0].mxu0
  %v1832 = vadd.f32 %v78, %v1831
  %v1833 = vpop.f32.mrb[0].mxu0
  %1834 = vmatprep.mubr.f32.mxu0 0.0
  %1835 = vmatmul.mubr.f32.gmra.mrb[0].mxu0 %v1526
  %v1836 = vpop.f32.mrb[0].mxu0
  %v1837 = vadd.f32 %v78, %v1836
  %v1838 = vpop.f32.mrb[0].mxu0
  %1839 = vmatprep.mubr.f32.mxu0 0.0
  %1840 = vmatmul.mubr.f32.gmra.mrb[0].mxu0 %v1529
  %v1841 = vpop.f32.mrb[0].mxu0
  %v1842 = vadd.f32 %v78, %v1841
  %v1843 = vpop.f32.mrb[0].mxu0
  %1844 = vmatprep.mubr.f32.mxu0 0.0
  %1845 = vmatmul.mubr.f32.gmra.mrb[0].mxu0 %v1532
  %v1846 = vpop.f32.mrb[0].mxu0
  %v1847 = vadd.f32 %v78, %v1846
  %v1848 = vpop.f32.mrb[0].mxu0
  %1849 = vmatprep.mubr.f32.mxu0 0.0
  %1850 = vmatmul.mubr.f32.gmra.mrb[0].mxu0 %v1535
  %v1851 = vpop.f32.mrb[0].mxu0
  %v1852 = vadd.f32 %v78, %v1851
  %v1853 = vpop.f32.mrb[0].mxu0
  %1854 = vmatprep.mubr.f32.mxu0 0.0
  %1855 = vmatmul.mubr.f32.gmra.mrb[0].mxu0 %v1538
  %v1856 = vpop.f32.mrb[0].mxu0
  %v1857 = vadd.f32 %v78, %v1856
  %v1858 = vpop.f32.mrb[0].mxu0
  %1859 = vmatprep.mubr.f32.mxu0 0.0
  %1860 = vmatmul.mubr.f32.gmra.mrb[0].mxu0 %v1541
  %v1861 = vpop.f32.mrb[0].mxu0
  %v1862 = vadd.f32 %v78, %v1861
  %v1863 = vpop.f32.mrb[0].mxu0
  %1864 = vmatprep.mubr.f32.mxu0 0.0
  %1865 = vmatmul.mubr.f32.gmra.mrb[0].mxu0 %v1544
  %v1866 = vpop.f32.mrb[0].mxu0
  %v1867 = vadd.f32 %v78, %v1866
  %v1868 = vpop.f32.mrb[0].mxu0
  %1869 = vmatprep.mubr.f32.mxu0 0.0
  %1870 = vmatmul.mubr.f32.gmra.mrb[0].mxu0 %v1547
  %v1871 = vpop.f32.mrb[0].mxu0
  %v1872 = vadd.f32 %v78, %v1871
  %v1873 = vpop.f32.mrb[0].mxu0
  %1874 = vmatprep.mubr.f32.mxu0 0.0
  %1875 = vmatmul.mubr.f32.gmra.mrb[0].mxu0 %v1550
  %v1876 = vpop.f32.mrb[0].mxu0
  %v1877 = vadd.f32 %v78, %v1876
  %v1878 = vpop.f32.mrb[0].mxu0
  %1879 = vmatprep.mubr.f32.mxu0 0.0
  %1880 = vmatmul.mubr.f32.gmra.mrb[0].mxu0 %v1553
  %v1881 = vpop.f32.mrb[0].mxu0
  %v1882 = vadd.f32 %v78, %v1881
  %v1883 = vpop.f32.mrb[0].mxu0
  %1884 = vmatprep.mubr.f32.mxu0 0.0
  %1885 = vmatmul.mubr.f32.gmra.mrb[0].mxu0 %v1556
  %v1886 = vpop.f32.mrb[0].mxu0
  %v1887 = vadd.f32 %v78, %v1886
  %v1888 = vpop.f32.mrb[0].mxu0
  %1889 = vmatprep.mubr.f32.mxu0 0.0
  %1890 = vmatmul.mubr.f32.gmra.mrb[0].mxu0 %v1559
  %v1891 = vpop.f32.mrb[0].mxu0
  %v1892 = vadd.f32 %v78, %v1891
  %v1893 = vpop.f32.mrb[0].mxu0
  %1894 = vmatprep.mubr.f32.mxu0 0.0
  %1895 = vmatmul.mubr.f32.gmra.mrb[0].mxu0 %v1562
  %v1896 = vpop.f32.mrb[0].mxu0
  %v1897 = vadd.f32 %v78, %v1896
  %v1898 = vpop.f32.mrb[0].mxu0
  %1899 = vmatprep.mubr.f32.mxu0 0.0
  %1900 = vmatmul.mubr.f32.gmra.mrb[0].mxu0 %v1565
  %v1901 = vpop.f32.mrb[0].mxu0
  %v1902 = vadd.f32 %v78, %v1901
  %v1903 = vpop.f32.mrb[0].mxu0
  %1904 = vmatprep.mubr.f32.mxu0 0.0
  %1905 = vmatmul.mubr.f32.gmra.mrb[0].mxu0 %v1568
  %v1906 = vpop.f32.mrb[0].mxu0
  %v1907 = vadd.f32 %v78, %v1906
  %v1908 = vpop.f32.mrb[0].mxu0
  %1909 = vmatprep.mubr.f32.mxu0 0.0
  %1910 = vmatmul.mubr.f32.gmra.mrb[0].mxu0 %v1571
  %v1911 = vpop.f32.mrb[0].mxu0
  %v1912 = vadd.f32 %v78, %v1911
  %v1913 = vpop.f32.mrb[0].mxu0
  %1914 = vmatprep.mubr.f32.mxu0 0.0
  %1915 = vmatmul.mubr.f32.gmra.mrb[0].mxu0 %v1574
  %v1916 = vpop.f32.mrb[0].mxu0
  %v1917 = vadd.f32 %v78, %v1916
  %v1918 = vpop.f32.mrb[0].mxu0
  %1919 = vmatprep.mubr.f32.mxu0 0.0
  %1920 = vmatmul.mubr.f32.gmra.mrb[0].mxu0 %v1577
  %v1921 = vpop.f32.mrb[0].mxu0
  %v1922 = vadd.f32 %v78, %v1921
  %v1923 = vpop.f32.mrb[0].mxu0
  %1924 = vmatprep.mubr.f32.mxu0 0.0
  %1925 = vmatmul.mubr.f32.gmra.mrb[0].mxu0 %v1580
  %v1926 = vpop.f32.mrb[0].mxu0
  %v1927 = vadd.f32 %v78, %v1926
  %v1928 = vpop.f32.mrb[0].mxu0
  %1929 = vmatprep.mubr.f32.mxu0 0.0
  %1930 = vmatmul.mubr.f32.gmra.mrb[0].mxu0 %v1583
  %v1931 = vpop.f32.mrb[0].mxu0
  %v1932 = vadd.f32 %v78, %v1931
  %v1933 = vpop.f32.mrb[0].mxu0
  %1934 = vdwg.mxu0
  %v1935 = vmax.f32 %v1652, 0.0
  %v1936 = vmax.f32 %v1657, 0.0
  %v1937 = vmax.f32 %v1662, 0.0
  %v1938 = vmax.f32 %v1667, 0.0
  %v1939 = vmax.f32 %v1672, 0.0
  %v1940 = vmax.f32 %v1677, 0.0
  %v1941 = vmax.f32 %v1682, 0.0
  %v1942 = vmax.f32 %v1687, 0.0
  %v1943 = vmax.f32 %v1692, 0.0
  %v1944 = vmax.f32 %v1697, 0.0
  %v1945 = vmax.f32 %v1702, 0.0
  %v1946 = vmax.f32 %v1707, 0.0
  %v1947 = vmax.f32 %v1712, 0.0
  %v1948 = vmax.f32 %v1717, 0.0
  %v1949 = vmax.f32 %v1722, 0.0
  %v1950 = vmax.f32 %v1727, 0.0
  %v1951 = vmax.f32 %v1732, 0.0
  %v1952 = vmax.f32 %v1737, 0.0
  %v1953 = vmax.f32 %v1742, 0.0
  %v1954 = vmax.f32 %v1747, 0.0
  %v1955 = vmax.f32 %v1752, 0.0
  %v1956 = vmax.f32 %v1757, 0.0
  %v1957 = vmax.f32 %v1762, 0.0
  %v1958 = vmax.f32 %v1767, 0.0
  %v1959 = vmax.f32 %v1772, 0.0
  %v1960 = vmax.f32 %v1777, 0.0
  %v1961 = vmax.f32 %v1782, 0.0
  %v1962 = vmax.f32 %v1787, 0.0
  %v1963 = vmax.f32 %v1792, 0.0
  %v1964 = vmax.f32 %v1797, 0.0
  %v1965 = vmax.f32 %v1802, 0.0
  %v1966 = vmax.f32 %v1807, 0.0
  %v1967 = vmax.f32 %v1812, 0.0
  %v1968 = vmax.f32 %v1817, 0.0
  %v1969 = vmax.f32 %v1822, 0.0
  %v1970 = vmax.f32 %v1827, 0.0
  %v1971 = vmax.f32 %v1832, 0.0
  %v1972 = vmax.f32 %v1837, 0.0
  %v1973 = vmax.f32 %v1842, 0.0
  %v1974 = vmax.f32 %v1847, 0.0
  %v1975 = vmax.f32 %v1852, 0.0
  %v1976 = vmax.f32 %v1857, 0.0
  %v1977 = vmax.f32 %v1862, 0.0
  %v1978 = vmax.f32 %v1867, 0.0
  %v1979 = vmax.f32 %v1872, 0.0
  %v1980 = vmax.f32 %v1877, 0.0
  %v1981 = vmax.f32 %v1882, 0.0
  %v1982 = vmax.f32 %v1887, 0.0
  %v1983 = vmax.f32 %v1892, 0.0
  %v1984 = vmax.f32 %v1897, 0.0
  %v1985 = vmax.f32 %v1902, 0.0
  %v1986 = vmax.f32 %v1907, 0.0
  %v1987 = vmax.f32 %v1912, 0.0
  %v1988 = vmax.f32 %v1917, 0.0
  %v1989 = vmax.f32 %v1922, 0.0
  %v1990 = vmax.f32 %v1927, 0.0
  %v1991 = vmax.f32 %v1932, 0.0
  %s1992 = scalar_lea.vmem %s0, 1368
  %v1993 = vld [vmem:[%s1992] sm:$0xff]
  %v1994 = vld [vmem:[%s1992 + $0x8] sm:$0xff]
  %v1995 = vld [vmem:[%s1992 + $0x10] sm:$0xff]
  %v1996 = vld [vmem:[%s1992 + $0x18] sm:$0xff]
  %v1997 = vld [vmem:[%s1992 + $0x20] sm:$0xff]
  %v1998 = vld [vmem:[%s1992 + $0x28] sm:$0xff]
  %v1999 = vld [vmem:[%s1992 + $0x30] sm:$0xff]
  %v2000 = vld [vmem:[%s1992 + $0x38] sm:$0xff]
  %v2001 = vld [vmem:[%s1992 + $0x40] sm:$0xff]
  %v2002 = vld [vmem:[%s1992 + $0x48] sm:$0xff]
  %v2003 = vld [vmem:[%s1992 + $0x50] sm:$0xff]
  %v2004 = vld [vmem:[%s1992 + $0x58] sm:$0xff]
  %v2005 = vld [vmem:[%s1992 + $0x60] sm:$0xff]
  %v2006 = vld [vmem:[%s1992 + $0x68] sm:$0xff]
  %v2007 = vld [vmem:[%s1992 + $0x70] sm:$0xff]
  %v2008 = vld [vmem:[%s1992 + $0x78] sm:$0xff]
  %v2009 = vld [vmem:[%s1992 + $0x80] sm:$0xff]
  %v2010 = vld [vmem:[%s1992 + $0x88] sm:$0xff]
  %v2011 = vld [vmem:[%s1992 + $0x90] sm:$0xff]
  %v2012 = vld [vmem:[%s1992 + $0x98] sm:$0xff]
  %v2013 = vld [vmem:[%s1992 + $0xa0] sm:$0xff]
  %v2014 = vld [vmem:[%s1992 + $0xa8] sm:$0xff]
  %v2015 = vld [vmem:[%s1992 + $0xb0] sm:$0xff]
  %v2016 = vld [vmem:[%s1992 + $0xb8] sm:$0xff]
  %v2017 = vld [vmem:[%s1992 + $0xc0] sm:$0xff]
  %v2018 = vld [vmem:[%s1992 + $0xc8] sm:$0xff]
  %v2019 = vld [vmem:[%s1992 + $0xd0] sm:$0xff]
  %v2020 = vld [vmem:[%s1992 + $0xd8] sm:$0xff]
  %v2021 = vld [vmem:[%s1992 + $0xe0] sm:$0xff]
  %v2022 = vld [vmem:[%s1992 + $0xe8] sm:$0xff]
  %v2023 = vld [vmem:[%s1992 + $0xf0] sm:$0xff]
  %v2024 = vld [vmem:[%s1992 + $0xf8] sm:$0xff]
  %v2025 = vld [vmem:[%s1992 + $0x100] sm:$0xff]
  %v2026 = vld [vmem:[%s1992 + $0x108] sm:$0xff]
  %v2027 = vld [vmem:[%s1992 + $0x110] sm:$0xff]
  %v2028 = vld [vmem:[%s1992 + $0x118] sm:$0xff]
  %v2029 = vld [vmem:[%s1992 + $0x120] sm:$0xff]
  %v2030 = vld [vmem:[%s1992 + $0x128] sm:$0xff]
  %v2031 = vld [vmem:[%s1992 + $0x130] sm:$0xff]
  %v2032 = vld [vmem:[%s1992 + $0x138] sm:$0xff]
  %v2033 = vld [vmem:[%s1992 + $0x140] sm:$0xff]
  %v2034 = vld [vmem:[%s1992 + $0x148] sm:$0xff]
  %v2035 = vld [vmem:[%s1992 + $0x150] sm:$0xff]
  %v2036 = vld [vmem:[%s1992 + $0x158] sm:$0xff]
  %v2037 = vld [vmem:[%s1992 + $0x160] sm:$0xff]
  %v2038 = vld [vmem:[%s1992 + $0x168] sm:$0xff]
  %v2039 = vld [vmem:[%s1992 + $0x170] sm:$0xff]
  %v2040 = vld [vmem:[%s1992 + $0x178] sm:$0xff]
  %v2041 = vld [vmem:[%s1992 + $0x180] sm:$0xff]
  %v2042 = vld [vmem:[%s1992 + $0x188] sm:$0xff]
  %v2043 = vld [vmem:[%s1992 + $0x190] sm:$0xff]
  %v2044 = vld [vmem:[%s1992 + $0x198] sm:$0xff]
  %v2045 = vld [vmem:[%s1992 + $0x1a0] sm:$0xff]
  %v2046 = vld [vmem:[%s1992 + $0x1a8] sm:$0xff]
  %v2047 = vld [vmem:[%s1992 + $0x1b0] sm:$0xff]
  %v2048 = vld [vmem:[%s1992 + $0x1b8] sm:$0xff]
  %v2049 = vld [vmem:[%s1992 + $0x1c0] sm:$0x3]
  %v2051 = vsel %vm80, %v1993, 0
  %v2054 = vsel %vm80, %v1994, 0
  %v2057 = vsel %vm80, %v1995, 0
  %v2060 = vsel %vm80, %v1996, 0
  %v2063 = vsel %vm80, %v1997, 0
  %v2066 = vsel %vm80, %v1998, 0
  %v2069 = vsel %vm80, %v1999, 0
  %v2072 = vsel %vm80, %v2000, 0
  %v2075 = vsel %vm80, %v2001, 0
  %v2078 = vsel %vm80, %v2002, 0
  %v2081 = vsel %vm80, %v2003, 0
  %v2084 = vsel %vm80, %v2004, 0
  %v2087 = vsel %vm80, %v2005, 0
  %v2090 = vsel %vm80, %v2006, 0
  %v2093 = vsel %vm80, %v2007, 0
  %v2096 = vsel %vm80, %v2008, 0
  %v2099 = vsel %vm80, %v2009, 0
  %v2102 = vsel %vm80, %v2010, 0
  %v2105 = vsel %vm80, %v2011, 0
  %v2108 = vsel %vm80, %v2012, 0
  %v2111 = vsel %vm80, %v2013, 0
  %v2114 = vsel %vm80, %v2014, 0
  %v2117 = vsel %vm80, %v2015, 0
  %v2120 = vsel %vm80, %v2016, 0
  %v2123 = vsel %vm80, %v2017, 0
  %v2126 = vsel %vm80, %v2018, 0
  %v2129 = vsel %vm80, %v2019, 0
  %v2132 = vsel %vm80, %v2020, 0
  %v2135 = vsel %vm80, %v2021, 0
  %v2138 = vsel %vm80, %v2022, 0
  %v2141 = vsel %vm80, %v2023, 0
  %v2144 = vsel %vm80, %v2024, 0
  %v2147 = vsel %vm80, %v2025, 0
  %v2150 = vsel %vm80, %v2026, 0
  %v2153 = vsel %vm80, %v2027, 0
  %v2156 = vsel %vm80, %v2028, 0
  %v2159 = vsel %vm80, %v2029, 0
  %v2162 = vsel %vm80, %v2030, 0
  %v2165 = vsel %vm80, %v2031, 0
  %v2168 = vsel %vm80, %v2032, 0
  %v2171 = vsel %vm80, %v2033, 0
  %v2174 = vsel %vm80, %v2034, 0
  %v2177 = vsel %vm80, %v2035, 0
  %v2180 = vsel %vm80, %v2036, 0
  %v2183 = vsel %vm80, %v2037, 0
  %v2186 = vsel %vm80, %v2038, 0
  %v2189 = vsel %vm80, %v2039, 0
  %v2192 = vsel %vm80, %v2040, 0
  %v2195 = vsel %vm80, %v2041, 0
  %v2198 = vsel %vm80, %v2042, 0
  %v2201 = vsel %vm80, %v2043, 0
  %v2204 = vsel %vm80, %v2044, 0
  %v2207 = vsel %vm80, %v2045, 0
  %v2210 = vsel %vm80, %v2046, 0
  %v2213 = vsel %vm80, %v2047, 0
  %v2216 = vsel %vm80, %v2048, 0
  %v2219 = vsel %vm80, %v2049, 0
  %2221 = vmatprep.subr.mxu0 0.0
  %2222 = vmatpush1.msra.mxu0 %v14
  %2223 = vmatprep.subr.mxu0 0.0
  %2224 = vmatpush1.msra.mxu0 %v254
  %2225 = vmatprep.subr.mxu0 0.0
  %2226 = vmatpush1.msra.mxu0 0.0
  %2227 = vmatprep.subr.mxu0 0.0
  %2228 = vmatpush1.msra.mxu0 0.0
  %2229 = vmatprep.subr.mxu0 0.0
  %2230 = vmatpush1.msra.mxu0 0.0
  %2231 = vmatprep.subr.mxu0 0.0
  %2232 = vmatpush1.msra.mxu0 0.0
  %2233 = vmatprep.subr.mxu0 0.0
  %2234 = vmatpush1.msra.mxu0 0.0
  %2235 = vmatprep.subr.mxu0 0.0
  %2236 = vmatpush1.msra.mxu0 0.0
  %2237 = vmatprep.subr.mxu0 0.0
  %2238 = vmatpush1.msra.mxu0 0.0
  %2239 = vmatprep.subr.mxu0 0.0
  %2240 = vmatpush1.msra.mxu0 0.0
  %2241 = vmatprep.subr.mxu0 0.0
  %2242 = vmatpush1.msra.mxu0 0.0
  %2243 = vmatprep.subr.mxu0 0.0
  %2244 = vmatpush1.msra.mxu0 0.0
  %2245 = vmatprep.subr.mxu0 0.0
  %2246 = vmatpush1.msra.mxu0 0.0
  %2247 = vmatprep.subr.mxu0 0.0
  %2248 = vmatpush1.msra.mxu0 0.0
  %2249 = vmatprep.subr.mxu0 0.0
  %2250 = vmatpush1.msra.mxu0 0.0
  %2251 = vmatprep.subr.mxu0 0.0
  %2252 = vmatpush1.msra.mxu0 0.0
  %2253 = vmatprep.subr.mxu0 0.0
  %2254 = vmatpush1.msra.mxu0 0.0
  %2255 = vmatprep.subr.mxu0 0.0
  %2256 = vmatpush1.msra.mxu0 0.0
  %2257 = vmatprep.subr.mxu0 0.0
  %2258 = vmatpush1.msra.mxu0 0.0
  %2259 = vmatprep.subr.mxu0 0.0
  %2260 = vmatpush1.msra.mxu0 0.0
  %2261 = vmatprep.subr.mxu0 0.0
  %2262 = vmatpush1.msra.mxu0 0.0
  %2263 = vmatprep.subr.mxu0 0.0
  %2264 = vmatpush1.msra.mxu0 0.0
  %2265 = vmatprep.subr.mxu0 0.0
  %2266 = vmatpush1.msra.mxu0 0.0
  %2267 = vmatprep.subr.mxu0 0.0
  %2268 = vmatpush1.msra.mxu0 0.0
  %2269 = vmatprep.subr.mxu0 0.0
  %2270 = vmatpush1.msra.mxu0 0.0
  %2271 = vmatprep.subr.mxu0 0.0
  %2272 = vmatpush1.msra.mxu0 0.0
  %2273 = vmatprep.subr.mxu0 0.0
  %2274 = vmatpush1.msra.mxu0 0.0
  %2275 = vmatprep.subr.mxu0 0.0
  %2276 = vmatpush1.msra.mxu0 0.0
  %2277 = vmatprep.subr.mxu0 0.0
  %2278 = vmatpush1.msra.mxu0 0.0
  %2279 = vmatprep.subr.mxu0 0.0
  %2280 = vmatpush1.msra.mxu0 0.0
  %2281 = vmatprep.subr.mxu0 0.0
  %2282 = vmatpush1.msra.mxu0 0.0
  %2283 = vmatprep.subr.mxu0 0.0
  %2284 = vmatpush1.msra.mxu0 0.0
  %2285 = vmatprep.mubr.f32.mxu0 0.0
  %2286 = vmatmul.mubr.f32.gmra.mrb[0].mxu0 %v2051
  %v2287 = vpop.f32.mrb[0].mxu0
  %v2288 = vadd.f32 %v78, %v2287
  %v2289 = vpop.f32.mrb[0].mxu0
  %2290 = vmatprep.mubr.f32.mxu0 0.0
  %2291 = vmatmul.mubr.f32.gmra.mrb[0].mxu0 %v2054
  %v2292 = vpop.f32.mrb[0].mxu0
  %v2293 = vadd.f32 %v78, %v2292
  %v2294 = vpop.f32.mrb[0].mxu0
  %2295 = vmatprep.mubr.f32.mxu0 0.0
  %2296 = vmatmul.mubr.f32.gmra.mrb[0].mxu0 %v2057
  %v2297 = vpop.f32.mrb[0].mxu0
  %v2298 = vadd.f32 %v78, %v2297
  %v2299 = vpop.f32.mrb[0].mxu0
  %2300 = vmatprep.mubr.f32.mxu0 0.0
  %2301 = vmatmul.mubr.f32.gmra.mrb[0].mxu0 %v2060
  %v2302 = vpop.f32.mrb[0].mxu0
  %v2303 = vadd.f32 %v78, %v2302
  %v2304 = vpop.f32.mrb[0].mxu0
  %2305 = vmatprep.mubr.f32.mxu0 0.0
  %2306 = vmatmul.mubr.f32.gmra.mrb[0].mxu0 %v2063
  %v2307 = vpop.f32.mrb[0].mxu0
  %v2308 = vadd.f32 %v78, %v2307
  %v2309 = vpop.f32.mrb[0].mxu0
  %2310 = vmatprep.mubr.f32.mxu0 0.0
  %2311 = vmatmul.mubr.f32.gmra.mrb[0].mxu0 %v2066
  %v2312 = vpop.f32.mrb[0].mxu0
  %v2313 = vadd.f32 %v78, %v2312
  %v2314 = vpop.f32.mrb[0].mxu0
  %2315 = vmatprep.mubr.f32.mxu0 0.0
  %2316 = vmatmul.mubr.f32.gmra.mrb[0].mxu0 %v2069
  %v2317 = vpop.f32.mrb[0].mxu0
  %v2318 = vadd.f32 %v78, %v2317
  %v2319 = vpop.f32.mrb[0].mxu0
  %2320 = vmatprep.mubr.f32.mxu0 0.0
  %2321 = vmatmul.mubr.f32.gmra.mrb[0].mxu0 %v2072
  %v2322 = vpop.f32.mrb[0].mxu0
  %v2323 = vadd.f32 %v78, %v2322
  %v2324 = vpop.f32.mrb[0].mxu0
  %2325 = vmatprep.mubr.f32.mxu0 0.0
  %2326 = vmatmul.mubr.f32.gmra.mrb[0].mxu0 %v2075
  %v2327 = vpop.f32.mrb[0].mxu0
  %v2328 = vadd.f32 %v78, %v2327
  %v2329 = vpop.f32.mrb[0].mxu0
  %2330 = vmatprep.mubr.f32.mxu0 0.0
  %2331 = vmatmul.mubr.f32.gmra.mrb[0].mxu0 %v2078
  %v2332 = vpop.f32.mrb[0].mxu0
  %v2333 = vadd.f32 %v78, %v2332
  %v2334 = vpop.f32.mrb[0].mxu0
  %2335 = vmatprep.mubr.f32.mxu0 0.0
  %2336 = vmatmul.mubr.f32.gmra.mrb[0].mxu0 %v2081
  %v2337 = vpop.f32.mrb[0].mxu0
  %v2338 = vadd.f32 %v78, %v2337
  %v2339 = vpop.f32.mrb[0].mxu0
  %2340 = vmatprep.mubr.f32.mxu0 0.0
  %2341 = vmatmul.mubr.f32.gmra.mrb[0].mxu0 %v2084
  %v2342 = vpop.f32.mrb[0].mxu0
  %v2343 = vadd.f32 %v78, %v2342
  %v2344 = vpop.f32.mrb[0].mxu0
  %2345 = vmatprep.mubr.f32.mxu0 0.0
  %2346 = vmatmul.mubr.f32.gmra.mrb[0].mxu0 %v2087
  %v2347 = vpop.f32.mrb[0].mxu0
  %v2348 = vadd.f32 %v78, %v2347
  %v2349 = vpop.f32.mrb[0].mxu0
  %2350 = vmatprep.mubr.f32.mxu0 0.0
  %2351 = vmatmul.mubr.f32.gmra.mrb[0].mxu0 %v2090
  %v2352 = vpop.f32.mrb[0].mxu0
  %v2353 = vadd.f32 %v78, %v2352
  %v2354 = vpop.f32.mrb[0].mxu0
  %2355 = vmatprep.mubr.f32.mxu0 0.0
  %2356 = vmatmul.mubr.f32.gmra.mrb[0].mxu0 %v2093
  %v2357 = vpop.f32.mrb[0].mxu0
  %v2358 = vadd.f32 %v78, %v2357
  %v2359 = vpop.f32.mrb[0].mxu0
  %2360 = vmatprep.mubr.f32.mxu0 0.0
  %2361 = vmatmul.mubr.f32.gmra.mrb[0].mxu0 %v2096
  %v2362 = vpop.f32.mrb[0].mxu0
  %v2363 = vadd.f32 %v78, %v2362
  %v2364 = vpop.f32.mrb[0].mxu0
  %2365 = vmatprep.mubr.f32.mxu0 0.0
  %2366 = vmatmul.mubr.f32.gmra.mrb[0].mxu0 %v2099
  %v2367 = vpop.f32.mrb[0].mxu0
  %v2368 = vadd.f32 %v78, %v2367
  %v2369 = vpop.f32.mrb[0].mxu0
  %2370 = vmatprep.mubr.f32.mxu0 0.0
  %2371 = vmatmul.mubr.f32.gmra.mrb[0].mxu0 %v2102
  %v2372 = vpop.f32.mrb[0].mxu0
  %v2373 = vadd.f32 %v78, %v2372
  %v2374 = vpop.f32.mrb[0].mxu0
  %2375 = vmatprep.mubr.f32.mxu0 0.0
  %2376 = vmatmul.mubr.f32.gmra.mrb[0].mxu0 %v2105
  %v2377 = vpop.f32.mrb[0].mxu0
  %v2378 = vadd.f32 %v78, %v2377
  %v2379 = vpop.f32.mrb[0].mxu0
  %2380 = vmatprep.mubr.f32.mxu0 0.0
  %2381 = vmatmul.mubr.f32.gmra.mrb[0].mxu0 %v2108
  %v2382 = vpop.f32.mrb[0].mxu0
  %v2383 = vadd.f32 %v78, %v2382
  %v2384 = vpop.f32.mrb[0].mxu0
  %2385 = vmatprep.mubr.f32.mxu0 0.0
  %2386 = vmatmul.mubr.f32.gmra.mrb[0].mxu0 %v2111
  %v2387 = vpop.f32.mrb[0].mxu0
  %v2388 = vadd.f32 %v78, %v2387
  %v2389 = vpop.f32.mrb[0].mxu0
  %2390 = vmatprep.mubr.f32.mxu0 0.0
  %2391 = vmatmul.mubr.f32.gmra.mrb[0].mxu0 %v2114
  %v2392 = vpop.f32.mrb[0].mxu0
  %v2393 = vadd.f32 %v78, %v2392
  %v2394 = vpop.f32.mrb[0].mxu0
  %2395 = vmatprep.mubr.f32.mxu0 0.0
  %2396 = vmatmul.mubr.f32.gmra.mrb[0].mxu0 %v2117
  %v2397 = vpop.f32.mrb[0].mxu0
  %v2398 = vadd.f32 %v78, %v2397
  %v2399 = vpop.f32.mrb[0].mxu0
  %2400 = vmatprep.mubr.f32.mxu0 0.0
  %2401 = vmatmul.mubr.f32.gmra.mrb[0].mxu0 %v2120
  %v2402 = vpop.f32.mrb[0].mxu0
  %v2403 = vadd.f32 %v78, %v2402
  %v2404 = vpop.f32.mrb[0].mxu0
  %2405 = vmatprep.mubr.f32.mxu0 0.0
  %2406 = vmatmul.mubr.f32.gmra.mrb[0].mxu0 %v2123
  %v2407 = vpop.f32.mrb[0].mxu0
  %v2408 = vadd.f32 %v78, %v2407
  %v2409 = vpop.f32.mrb[0].mxu0
  %2410 = vmatprep.mubr.f32.mxu0 0.0
  %2411 = vmatmul.mubr.f32.gmra.mrb[0].mxu0 %v2126
  %v2412 = vpop.f32.mrb[0].mxu0
  %v2413 = vadd.f32 %v78, %v2412
  %v2414 = vpop.f32.mrb[0].mxu0
  %2415 = vmatprep.mubr.f32.mxu0 0.0
  %2416 = vmatmul.mubr.f32.gmra.mrb[0].mxu0 %v2129
  %v2417 = vpop.f32.mrb[0].mxu0
  %v2418 = vadd.f32 %v78, %v2417
  %v2419 = vpop.f32.mrb[0].mxu0
  %2420 = vmatprep.mubr.f32.mxu0 0.0
  %2421 = vmatmul.mubr.f32.gmra.mrb[0].mxu0 %v2132
  %v2422 = vpop.f32.mrb[0].mxu0
  %v2423 = vadd.f32 %v78, %v2422
  %v2424 = vpop.f32.mrb[0].mxu0
  %2425 = vmatprep.mubr.f32.mxu0 0.0
  %2426 = vmatmul.mubr.f32.gmra.mrb[0].mxu0 %v2135
  %v2427 = vpop.f32.mrb[0].mxu0
  %v2428 = vadd.f32 %v78, %v2427
  %v2429 = vpop.f32.mrb[0].mxu0
  %2430 = vmatprep.mubr.f32.mxu0 0.0
  %2431 = vmatmul.mubr.f32.gmra.mrb[0].mxu0 %v2138
  %v2432 = vpop.f32.mrb[0].mxu0
  %v2433 = vadd.f32 %v78, %v2432
  %v2434 = vpop.f32.mrb[0].mxu0
  %2435 = vmatprep.mubr.f32.mxu0 0.0
  %2436 = vmatmul.mubr.f32.gmra.mrb[0].mxu0 %v2141
  %v2437 = vpop.f32.mrb[0].mxu0
  %v2438 = vadd.f32 %v78, %v2437
  %v2439 = vpop.f32.mrb[0].mxu0
  %2440 = vmatprep.mubr.f32.mxu0 0.0
  %2441 = vmatmul.mubr.f32.gmra.mrb[0].mxu0 %v2144
  %v2442 = vpop.f32.mrb[0].mxu0
  %v2443 = vadd.f32 %v78, %v2442
  %v2444 = vpop.f32.mrb[0].mxu0
  %2445 = vmatprep.mubr.f32.mxu0 0.0
  %2446 = vmatmul.mubr.f32.gmra.mrb[0].mxu0 %v2147
  %v2447 = vpop.f32.mrb[0].mxu0
  %v2448 = vadd.f32 %v78, %v2447
  %v2449 = vpop.f32.mrb[0].mxu0
  %2450 = vmatprep.mubr.f32.mxu0 0.0
  %2451 = vmatmul.mubr.f32.gmra.mrb[0].mxu0 %v2150
  %v2452 = vpop.f32.mrb[0].mxu0
  %v2453 = vadd.f32 %v78, %v2452
  %v2454 = vpop.f32.mrb[0].mxu0
  %2455 = vmatprep.mubr.f32.mxu0 0.0
  %2456 = vmatmul.mubr.f32.gmra.mrb[0].mxu0 %v2153
  %v2457 = vpop.f32.mrb[0].mxu0
  %v2458 = vadd.f32 %v78, %v2457
  %v2459 = vpop.f32.mrb[0].mxu0
  %2460 = vmatprep.mubr.f32.mxu0 0.0
  %2461 = vmatmul.mubr.f32.gmra.mrb[0].mxu0 %v2156
  %v2462 = vpop.f32.mrb[0].mxu0
  %v2463 = vadd.f32 %v78, %v2462
  %v2464 = vpop.f32.mrb[0].mxu0
  %2465 = vmatprep.mubr.f32.mxu0 0.0
  %2466 = vmatmul.mubr.f32.gmra.mrb[0].mxu0 %v2159
  %v2467 = vpop.f32.mrb[0].mxu0
  %v2468 = vadd.f32 %v78, %v2467
  %v2469 = vpop.f32.mrb[0].mxu0
  %2470 = vmatprep.mubr.f32.mxu0 0.0
  %2471 = vmatmul.mubr.f32.gmra.mrb[0].mxu0 %v2162
  %v2472 = vpop.f32.mrb[0].mxu0
  %v2473 = vadd.f32 %v78, %v2472
  %v2474 = vpop.f32.mrb[0].mxu0
  %2475 = vmatprep.mubr.f32.mxu0 0.0
  %2476 = vmatmul.mubr.f32.gmra.mrb[0].mxu0 %v2165
  %v2477 = vpop.f32.mrb[0].mxu0
  %v2478 = vadd.f32 %v78, %v2477
  %v2479 = vpop.f32.mrb[0].mxu0
  %2480 = vmatprep.mubr.f32.mxu0 0.0
  %2481 = vmatmul.mubr.f32.gmra.mrb[0].mxu0 %v2168
  %v2482 = vpop.f32.mrb[0].mxu0
  %v2483 = vadd.f32 %v78, %v2482
  %v2484 = vpop.f32.mrb[0].mxu0
  %2485 = vmatprep.mubr.f32.mxu0 0.0
  %2486 = vmatmul.mubr.f32.gmra.mrb[0].mxu0 %v2171
  %v2487 = vpop.f32.mrb[0].mxu0
  %v2488 = vadd.f32 %v78, %v2487
  %v2489 = vpop.f32.mrb[0].mxu0
  %2490 = vmatprep.mubr.f32.mxu0 0.0
  %2491 = vmatmul.mubr.f32.gmra.mrb[0].mxu0 %v2174
  %v2492 = vpop.f32.mrb[0].mxu0
  %v2493 = vadd.f32 %v78, %v2492
  %v2494 = vpop.f32.mrb[0].mxu0
  %2495 = vmatprep.mubr.f32.mxu0 0.0
  %2496 = vmatmul.mubr.f32.gmra.mrb[0].mxu0 %v2177
  %v2497 = vpop.f32.mrb[0].mxu0
  %v2498 = vadd.f32 %v78, %v2497
  %v2499 = vpop.f32.mrb[0].mxu0
  %2500 = vmatprep.mubr.f32.mxu0 0.0
  %2501 = vmatmul.mubr.f32.gmra.mrb[0].mxu0 %v2180
  %v2502 = vpop.f32.mrb[0].mxu0
  %v2503 = vadd.f32 %v78, %v2502
  %v2504 = vpop.f32.mrb[0].mxu0
  %2505 = vmatprep.mubr.f32.mxu0 0.0
  %2506 = vmatmul.mubr.f32.gmra.mrb[0].mxu0 %v2183
  %v2507 = vpop.f32.mrb[0].mxu0
  %v2508 = vadd.f32 %v78, %v2507
  %v2509 = vpop.f32.mrb[0].mxu0
  %2510 = vmatprep.mubr.f32.mxu0 0.0
  %2511 = vmatmul.mubr.f32.gmra.mrb[0].mxu0 %v2186
  %v2512 = vpop.f32.mrb[0].mxu0
  %v2513 = vadd.f32 %v78, %v2512
  %v2514 = vpop.f32.mrb[0].mxu0
  %2515 = vmatprep.mubr.f32.mxu0 0.0
  %2516 = vmatmul.mubr.f32.gmra.mrb[0].mxu0 %v2189
  %v2517 = vpop.f32.mrb[0].mxu0
  %v2518 = vadd.f32 %v78, %v2517
  %v2519 = vpop.f32.mrb[0].mxu0
  %2520 = vmatprep.mubr.f32.mxu0 0.0
  %2521 = vmatmul.mubr.f32.gmra.mrb[0].mxu0 %v2192
  %v2522 = vpop.f32.mrb[0].mxu0
  %v2523 = vadd.f32 %v78, %v2522
  %v2524 = vpop.f32.mrb[0].mxu0
  %2525 = vmatprep.mubr.f32.mxu0 0.0
  %2526 = vmatmul.mubr.f32.gmra.mrb[0].mxu0 %v2195
  %v2527 = vpop.f32.mrb[0].mxu0
  %v2528 = vadd.f32 %v78, %v2527
  %v2529 = vpop.f32.mrb[0].mxu0
  %2530 = vmatprep.mubr.f32.mxu0 0.0
  %2531 = vmatmul.mubr.f32.gmra.mrb[0].mxu0 %v2198
  %v2532 = vpop.f32.mrb[0].mxu0
  %v2533 = vadd.f32 %v78, %v2532
  %v2534 = vpop.f32.mrb[0].mxu0
  %2535 = vmatprep.mubr.f32.mxu0 0.0
  %2536 = vmatmul.mubr.f32.gmra.mrb[0].mxu0 %v2201
  %v2537 = vpop.f32.mrb[0].mxu0
  %v2538 = vadd.f32 %v78, %v2537
  %v2539 = vpop.f32.mrb[0].mxu0
  %2540 = vmatprep.mubr.f32.mxu0 0.0
  %2541 = vmatmul.mubr.f32.gmra.mrb[0].mxu0 %v2204
  %v2542 = vpop.f32.mrb[0].mxu0
  %v2543 = vadd.f32 %v78, %v2542
  %v2544 = vpop.f32.mrb[0].mxu0
  %2545 = vmatprep.mubr.f32.mxu0 0.0
  %2546 = vmatmul.mubr.f32.gmra.mrb[0].mxu0 %v2207
  %v2547 = vpop.f32.mrb[0].mxu0
  %v2548 = vadd.f32 %v78, %v2547
  %v2549 = vpop.f32.mrb[0].mxu0
  %2550 = vmatprep.mubr.f32.mxu0 0.0
  %2551 = vmatmul.mubr.f32.gmra.mrb[0].mxu0 %v2210
  %v2552 = vpop.f32.mrb[0].mxu0
  %v2553 = vadd.f32 %v78, %v2552
  %v2554 = vpop.f32.mrb[0].mxu0
  %2555 = vmatprep.mubr.f32.mxu0 0.0
  %2556 = vmatmul.mubr.f32.gmra.mrb[0].mxu0 %v2213
  %v2557 = vpop.f32.mrb[0].mxu0
  %v2558 = vadd.f32 %v78, %v2557
  %v2559 = vpop.f32.mrb[0].mxu0
  %2560 = vmatprep.mubr.f32.mxu0 0.0
  %2561 = vmatmul.mubr.f32.gmra.mrb[0].mxu0 %v2216
  %v2562 = vpop.f32.mrb[0].mxu0
  %v2563 = vadd.f32 %v78, %v2562
  %v2564 = vpop.f32.mrb[0].mxu0
  %2565 = vmatprep.mubr.f32.mxu0 0.0
  %2566 = vmatmul.mubr.f32.gmra.mrb[0].mxu0 %v2219
  %v2567 = vpop.f32.mrb[0].mxu0
  %v2568 = vadd.f32 %v78, %v2567
  %v2569 = vpop.f32.mrb[0].mxu0
  %2570 = vdwg.mxu0
  %v2571 = vmax.f32 %v2288, 0.0
  %v2572 = vmax.f32 %v2293, 0.0
  %v2573 = vmax.f32 %v2298, 0.0
  %v2574 = vmax.f32 %v2303, 0.0
  %v2575 = vmax.f32 %v2308, 0.0
  %v2576 = vmax.f32 %v2313, 0.0
  %v2577 = vmax.f32 %v2318, 0.0
  %v2578 = vmax.f32 %v2323, 0.0
  %v2579 = vmax.f32 %v2328, 0.0
  %v2580 = vmax.f32 %v2333, 0.0
  %v2581 = vmax.f32 %v2338, 0.0
  %v2582 = vmax.f32 %v2343, 0.0
  %v2583 = vmax.f32 %v2348, 0.0
  %v2584 = vmax.f32 %v2353, 0.0
  %v2585 = vmax.f32 %v2358, 0.0
  %v2586 = vmax.f32 %v2363, 0.0
  %v2587 = vmax.f32 %v2368, 0.0
  %v2588 = vmax.f32 %v2373, 0.0
  %v2589 = vmax.f32 %v2378, 0.0
  %v2590 = vmax.f32 %v2383, 0.0
  %v2591 = vmax.f32 %v2388, 0.0
  %v2592 = vmax.f32 %v2393, 0.0
  %v2593 = vmax.f32 %v2398, 0.0
  %v2594 = vmax.f32 %v2403, 0.0
  %v2595 = vmax.f32 %v2408, 0.0
  %v2596 = vmax.f32 %v2413, 0.0
  %v2597 = vmax.f32 %v2418, 0.0
  %v2598 = vmax.f32 %v2423, 0.0
  %v2599 = vmax.f32 %v2428, 0.0
  %v2600 = vmax.f32 %v2433, 0.0
  %v2601 = vmax.f32 %v2438, 0.0
  %v2602 = vmax.f32 %v2443, 0.0
  %v2603 = vmax.f32 %v2448, 0.0
  %v2604 = vmax.f32 %v2453, 0.0
  %v2605 = vmax.f32 %v2458, 0.0
  %v2606 = vmax.f32 %v2463, 0.0
  %v2607 = vmax.f32 %v2468, 0.0
  %v2608 = vmax.f32 %v2473, 0.0
  %v2609 = vmax.f32 %v2478, 0.0
  %v2610 = vmax.f32 %v2483, 0.0
  %v2611 = vmax.f32 %v2488, 0.0
  %v2612 = vmax.f32 %v2493, 0.0
  %v2613 = vmax.f32 %v2498, 0.0
  %v2614 = vmax.f32 %v2503, 0.0
  %v2615 = vmax.f32 %v2508, 0.0
  %v2616 = vmax.f32 %v2513, 0.0
  %v2617 = vmax.f32 %v2518, 0.0
  %v2618 = vmax.f32 %v2523, 0.0
  %v2619 = vmax.f32 %v2528, 0.0
  %v2620 = vmax.f32 %v2533, 0.0
  %v2621 = vmax.f32 %v2538, 0.0
  %v2622 = vmax.f32 %v2543, 0.0
  %v2623 = vmax.f32 %v2548, 0.0
  %v2624 = vmax.f32 %v2553, 0.0
  %v2625 = vmax.f32 %v2558, 0.0
  %v2626 = vmax.f32 %v2563, 0.0
  %v2627 = vmax.f32 %v2568, 0.0
  %v2628 = vmax.f32 %v1935, %v2571
  %v2629 = vmax.f32 %v1936, %v2572
  %v2630 = vmax.f32 %v1937, %v2573
  %v2631 = vmax.f32 %v1938, %v2574
  %v2632 = vmax.f32 %v1939, %v2575
  %v2633 = vmax.f32 %v1940, %v2576
  %v2634 = vmax.f32 %v1941, %v2577
  %v2635 = vmax.f32 %v1942, %v2578
  %v2636 = vmax.f32 %v1943, %v2579
  %v2637 = vmax.f32 %v1944, %v2580
  %v2638 = vmax.f32 %v1945, %v2581
  %v2639 = vmax.f32 %v1946, %v2582
  %v2640 = vmax.f32 %v1947, %v2583
  %v2641 = vmax.f32 %v1948, %v2584
  %v2642 = vmax.f32 %v1949, %v2585
  %v2643 = vmax.f32 %v1950, %v2586
  %v2644 = vmax.f32 %v1951, %v2587
  %v2645 = vmax.f32 %v1952, %v2588
  %v2646 = vmax.f32 %v1953, %v2589
  %v2647 = vmax.f32 %v1954, %v2590
  %v2648 = vmax.f32 %v1955, %v2591
  %v2649 = vmax.f32 %v1956, %v2592
  %v2650 = vmax.f32 %v1957, %v2593
  %v2651 = vmax.f32 %v1958, %v2594
  %v2652 = vmax.f32 %v1959, %v2595
  %v2653 = vmax.f32 %v1960, %v2596
  %v2654 = vmax.f32 %v1961, %v2597
  %v2655 = vmax.f32 %v1962, %v2598
  %v2656 = vmax.f32 %v1963, %v2599
  %v2657 = vmax.f32 %v1964, %v2600
  %v2658 = vmax.f32 %v1965, %v2601
  %v2659 = vmax.f32 %v1966, %v2602
  %v2660 = vmax.f32 %v1967, %v2603
  %v2661 = vmax.f32 %v1968, %v2604
  %v2662 = vmax.f32 %v1969, %v2605
  %v2663 = vmax.f32 %v1970, %v2606
  %v2664 = vmax.f32 %v1971, %v2607
  %v2665 = vmax.f32 %v1972, %v2608
  %v2666 = vmax.f32 %v1973, %v2609
  %v2667 = vmax.f32 %v1974, %v2610
  %v2668 = vmax.f32 %v1975, %v2611
  %v2669 = vmax.f32 %v1976, %v2612
  %v2670 = vmax.f32 %v1977, %v2613
  %v2671 = vmax.f32 %v1978, %v2614
  %v2672 = vmax.f32 %v1979, %v2615
  %v2673 = vmax.f32 %v1980, %v2616
  %v2674 = vmax.f32 %v1981, %v2617
  %v2675 = vmax.f32 %v1982, %v2618
  %v2676 = vmax.f32 %v1983, %v2619
  %v2677 = vmax.f32 %v1984, %v2620
  %v2678 = vmax.f32 %v1985, %v2621
  %v2679 = vmax.f32 %v1986, %v2622
  %v2680 = vmax.f32 %v1987, %v2623
  %v2681 = vmax.f32 %v1988, %v2624
  %v2682 = vmax.f32 %v1989, %v2625
  %v2683 = vmax.f32 %v1990, %v2626
  %v2684 = vmax.f32 %v1991, %v2627
  %v2685 = vmax.f32 %v1299, %v2628
  %v2686 = vmax.f32 %v1300, %v2629
  %v2687 = vmax.f32 %v1301, %v2630
  %v2688 = vmax.f32 %v1302, %v2631
  %v2689 = vmax.f32 %v1303, %v2632
  %v2690 = vmax.f32 %v1304, %v2633
  %v2691 = vmax.f32 %v1305, %v2634
  %v2692 = vmax.f32 %v1306, %v2635
  %v2693 = vmax.f32 %v1307, %v2636
  %v2694 = vmax.f32 %v1308, %v2637
  %v2695 = vmax.f32 %v1309, %v2638
  %v2696 = vmax.f32 %v1310, %v2639
  %v2697 = vmax.f32 %v1311, %v2640
  %v2698 = vmax.f32 %v1312, %v2641
  %v2699 = vmax.f32 %v1313, %v2642
  %v2700 = vmax.f32 %v1314, %v2643
  %v2701 = vmax.f32 %v1315, %v2644
  %v2702 = vmax.f32 %v1316, %v2645
  %v2703 = vmax.f32 %v1317, %v2646
  %v2704 = vmax.f32 %v1318, %v2647
  %v2705 = vmax.f32 %v1319, %v2648
  %v2706 = vmax.f32 %v1320, %v2649
  %v2707 = vmax.f32 %v1321, %v2650
  %v2708 = vmax.f32 %v1322, %v2651
  %v2709 = vmax.f32 %v1323, %v2652
  %v2710 = vmax.f32 %v1324, %v2653
  %v2711 = vmax.f32 %v1325, %v2654
  %v2712 = vmax.f32 %v1326, %v2655
  %v2713 = vmax.f32 %v1327, %v2656
  %v2714 = vmax.f32 %v1328, %v2657
  %v2715 = vmax.f32 %v1329, %v2658
  %v2716 = vmax.f32 %v1330, %v2659
  %v2717 = vmax.f32 %v1331, %v2660
  %v2718 = vmax.f32 %v1332, %v2661
  %v2719 = vmax.f32 %v1333, %v2662
  %v2720 = vmax.f32 %v1334, %v2663
  %v2721 = vmax.f32 %v1335, %v2664
  %v2722 = vmax.f32 %v1336, %v2665
  %v2723 = vmax.f32 %v1337, %v2666
  %v2724 = vmax.f32 %v1338, %v2667
  %v2725 = vmax.f32 %v1339, %v2668
  %v2726 = vmax.f32 %v1340, %v2669
  %v2727 = vmax.f32 %v1341, %v2670
  %v2728 = vmax.f32 %v1342, %v2671
  %v2729 = vmax.f32 %v1343, %v2672
  %v2730 = vmax.f32 %v1344, %v2673
  %v2731 = vmax.f32 %v1345, %v2674
  %v2732 = vmax.f32 %v1346, %v2675
  %v2733 = vmax.f32 %v1347, %v2676
  %v2734 = vmax.f32 %v1348, %v2677
  %v2735 = vmax.f32 %v1349, %v2678
  %v2736 = vmax.f32 %v1350, %v2679
  %v2737 = vmax.f32 %v1351, %v2680
  %v2738 = vmax.f32 %v1352, %v2681
  %v2739 = vmax.f32 %v1353, %v2682
  %v2740 = vmax.f32 %v1354, %v2683
  %v2741 = vmax.f32 %v1355, %v2684
  %vm2742 = vcmask 130048
  %2743 = vst.msk [vmem:[%s3] sm:$0xff] %vm2742, %v2685
  %2744 = vst.msk [vmem:[%s3 + $0x8] sm:$0xff] %vm2742, %v2686
  %2745 = vst.msk [vmem:[%s3 + $0x10] sm:$0xff] %vm2742, %v2687
  %2746 = vst.msk [vmem:[%s3 + $0x18] sm:$0xff] %vm2742, %v2688
  %2747 = vst.msk [vmem:[%s3 + $0x20] sm:$0xff] %vm2742, %v2689
  %2748 = vst.msk [vmem:[%s3 + $0x28] sm:$0xff] %vm2742, %v2690
  %2749 = vst.msk [vmem:[%s3 + $0x30] sm:$0xff] %vm2742, %v2691
  %2750 = vst.msk [vmem:[%s3 + $0x38] sm:$0xff] %vm2742, %v2692
  %2751 = vst.msk [vmem:[%s3 + $0x40] sm:$0xff] %vm2742, %v2693
  %2752 = vst.msk [vmem:[%s3 + $0x48] sm:$0xff] %vm2742, %v2694
  %2753 = vst.msk [vmem:[%s3 + $0x50] sm:$0xff] %vm2742, %v2695
  %2754 = vst.msk [vmem:[%s3 + $0x58] sm:$0xff] %vm2742, %v2696
  %2755 = vst.msk [vmem:[%s3 + $0x60] sm:$0xff] %vm2742, %v2697
  %2756 = vst.msk [vmem:[%s3 + $0x68] sm:$0xff] %vm2742, %v2698
  %2757 = vst.msk [vmem:[%s3 + $0x70] sm:$0xff] %vm2742, %v2699
  %2758 = vst.msk [vmem:[%s3 + $0x78] sm:$0xff] %vm2742, %v2700
  %2759 = vst.msk [vmem:[%s3 + $0x80] sm:$0xff] %vm2742, %v2701
  %2760 = vst.msk [vmem:[%s3 + $0x88] sm:$0xff] %vm2742, %v2702
  %2761 = vst.msk [vmem:[%s3 + $0x90] sm:$0xff] %vm2742, %v2703
  %2762 = vst.msk [vmem:[%s3 + $0x98] sm:$0xff] %vm2742, %v2704
  %2763 = vst.msk [vmem:[%s3 + $0xa0] sm:$0xff] %vm2742, %v2705
  %2764 = vst.msk [vmem:[%s3 + $0xa8] sm:$0xff] %vm2742, %v2706
  %2765 = vst.msk [vmem:[%s3 + $0xb0] sm:$0xff] %vm2742, %v2707
  %2766 = vst.msk [vmem:[%s3 + $0xb8] sm:$0xff] %vm2742, %v2708
  %2767 = vst.msk [vmem:[%s3 + $0xc0] sm:$0xff] %vm2742, %v2709
  %2768 = vst.msk [vmem:[%s3 + $0xc8] sm:$0xff] %vm2742, %v2710
  %2769 = vst.msk [vmem:[%s3 + $0xd0] sm:$0xff] %vm2742, %v2711
  %2770 = vst.msk [vmem:[%s3 + $0xd8] sm:$0xff] %vm2742, %v2712
  %2771 = vst.msk [vmem:[%s3 + $0xe0] sm:$0xff] %vm2742, %v2713
  %2772 = vst.msk [vmem:[%s3 + $0xe8] sm:$0xff] %vm2742, %v2714
  %2773 = vst.msk [vmem:[%s3 + $0xf0] sm:$0xff] %vm2742, %v2715
  %2774 = vst.msk [vmem:[%s3 + $0xf8] sm:$0xff] %vm2742, %v2716
  %2775 = vst.msk [vmem:[%s3 + $0x100] sm:$0xff] %vm2742, %v2717
  %2776 = vst.msk [vmem:[%s3 + $0x108] sm:$0xff] %vm2742, %v2718
  %2777 = vst.msk [vmem:[%s3 + $0x110] sm:$0xff] %vm2742, %v2719
  %2778 = vst.msk [vmem:[%s3 + $0x118] sm:$0xff] %vm2742, %v2720
  %2779 = vst.msk [vmem:[%s3 + $0x120] sm:$0xff] %vm2742, %v2721
  %2780 = vst.msk [vmem:[%s3 + $0x128] sm:$0xff] %vm2742, %v2722
  %2781 = vst.msk [vmem:[%s3 + $0x130] sm:$0xff] %vm2742, %v2723
  %2782 = vst.msk [vmem:[%s3 + $0x138] sm:$0xff] %vm2742, %v2724
  %2783 = vst.msk [vmem:[%s3 + $0x140] sm:$0xff] %vm2742, %v2725
  %2784 = vst.msk [vmem:[%s3 + $0x148] sm:$0xff] %vm2742, %v2726
  %2785 = vst.msk [vmem:[%s3 + $0x150] sm:$0xff] %vm2742, %v2727
  %2786 = vst.msk [vmem:[%s3 + $0x158] sm:$0xff] %vm2742, %v2728
  %2787 = vst.msk [vmem:[%s3 + $0x160] sm:$0xff] %vm2742, %v2729
  %2788 = vst.msk [vmem:[%s3 + $0x168] sm:$0xff] %vm2742, %v2730
  %2789 = vst.msk [vmem:[%s3 + $0x170] sm:$0xff] %vm2742, %v2731
  %2790 = vst.msk [vmem:[%s3 + $0x178] sm:$0xff] %vm2742, %v2732
  %2791 = vst.msk [vmem:[%s3 + $0x180] sm:$0xff] %vm2742, %v2733
  %2792 = vst.msk [vmem:[%s3 + $0x188] sm:$0xff] %vm2742, %v2734
  %2793 = vst.msk [vmem:[%s3 + $0x190] sm:$0xff] %vm2742, %v2735
  %2794 = vst.msk [vmem:[%s3 + $0x198] sm:$0xff] %vm2742, %v2736
  %2795 = vst.msk [vmem:[%s3 + $0x1a0] sm:$0xff] %vm2742, %v2737
  %2796 = vst.msk [vmem:[%s3 + $0x1a8] sm:$0xff] %vm2742, %v2738
  %2797 = vst.msk [vmem:[%s3 + $0x1b0] sm:$0xff] %vm2742, %v2739
  %2798 = vst.msk [vmem:[%s3 + $0x1b8] sm:$0xff] %vm2742, %v2740
  %vm2799 = vcmask 123904
  %2800 = vst.msk [vmem:[%s3 + $0x1c0] sm:$0x3] %vm2799, %v2741
  // Predicated region
  $region14: #{convnet_forward.4} parent=0 // pred_check
    _
  $region15: #{convnet_forward.4} parent=0 // pred_check_branch
    %2802 = sbr.rel (0) target = $region17
  $region16: #{convnet_forward.4} parent=0 // pred_region
    _
  $region17: #{convnet_forward.4} parent=0 // pred_fallthru
    _
  // Predicated region
  $region18: #{convnet_forward.4} parent=0 // pred_check
    _
  $region19: #{convnet_forward.4} parent=0 // pred_check_branch
    %2804 = sbr.rel (0) target = $region21
  $region20: #{convnet_forward.4} parent=0 // pred_region
    _
  $region21: #{convnet_forward.4} parent=0 // pred_fallthru
    _

// kernel: convnet_forward.5
$region0: #{convnet_forward.5}
  #allocation0 [shape = 'u32[]', space=smem, size = 0x4, offset = 0x4, fixed_abs, tag = 'smem constant byte address 0x4 - core index']
  #allocation1 [shape = 'u32[144,128]{1,0:T(1,128)}', space=vmem, size = 0x12000, scoped, tag = 'internal scratch']
  %s0 = inlined_call_operand.vmem [shape: f32[4,98,64], index: 0, kind: input, shape index: {}]
  %s1 = inlined_call_operand.vmem [shape: f32[64,32], index: 1, kind: input, shape index: {}]
  %s2 = inlined_call_operand.vmem [shape: f32[1,32], index: 2, kind: input, shape index: {}]
  %s3 = inlined_call_operand.vmem [shape: f32[98,32], index: 3, kind: output, shape index: {}]
  %s4 = sld [smem:[#allocation0]]
  $region22: #{convnet_forward.5} parent=0
    _
  %s6 = ssub.s32 1, %s4
  %s7 = scalar_select 0, %s6, %s4
  // Predicated region
  $region2: #{convnet_forward.5} parent=0 // pred_check
    _
  $region3: #{convnet_forward.5} parent=0 // pred_check_branch
    %9 = sbr.rel (0) target = $region5
  $region4: #{convnet_forward.5} parent=0 // pred_region
    _
  $region5: #{convnet_forward.5} parent=0 // pred_fallthru
    _
  // Predicated region
  $region6: #{convnet_forward.5} parent=0 // pred_check
    _
  $region7: #{convnet_forward.5} parent=0 // pred_check_branch
    %11 = sbr.rel (0) target = $region9
  $region8: #{convnet_forward.5} parent=0 // pred_region
    _
  $region9: #{convnet_forward.5} parent=0 // pred_fallthru
    _
  // Predicated region
  $region10: #{convnet_forward.5} parent=0 // pred_check
    _
  $region11: #{convnet_forward.5} parent=0 // pred_check_branch
    %13 = sbr.rel (0) target = $region13
  $region12: #{convnet_forward.5} parent=0 // pred_region
    _
  $region13: #{convnet_forward.5} parent=0 // pred_fallthru
    _
  %v14 = vld [vmem:[%s1] sm:$0xff]
  %v15 = vld [vmem:[%s1 + $0x8] sm:$0xff]
  %v16 = vld [vmem:[%s1 + $0x10] sm:$0xff]
  %v17 = vld [vmem:[%s1 + $0x18] sm:$0xff]
  %v18 = vld [vmem:[%s1 + $0x20] sm:$0xff]
  %v19 = vld [vmem:[%s1 + $0x28] sm:$0xff]
  %v20 = vld [vmem:[%s1 + $0x30] sm:$0xff]
  %v21 = vld [vmem:[%s1 + $0x38] sm:$0xff]
  %v22 = vld [vmem:[%s2] sm:$0x1]
  %v23 = vld [vmem:[%s0] sm:$0xff]
  %v24 = vld [vmem:[%s0 + $0x8] sm:$0xff]
  %v25 = vld [vmem:[%s0 + $0x10] sm:$0xff]
  %v26 = vld [vmem:[%s0 + $0x18] sm:$0xff]
  %v27 = vld [vmem:[%s0 + $0x20] sm:$0xff]
  %v28 = vld [vmem:[%s0 + $0x28] sm:$0xff]
  %v29 = vld [vmem:[%s0 + $0x30] sm:$0xff]
  %v30 = vld [vmem:[%s0 + $0x38] sm:$0xff]
  %v31 = vld [vmem:[%s0 + $0x40] sm:$0xff]
  %v32 = vld [vmem:[%s0 + $0x48] sm:$0xff]
  %v33 = vld [vmem:[%s0 + $0x50] sm:$0xff]
  %v34 = vld [vmem:[%s0 + $0x58] sm:$0xff]
  %v35 = vld [vmem:[%s0 + $0x60] sm:$0x3]
  %v37 = vlaneseq
  %v38 = vshrl.u32 %v37, 7
  %v39 = vsub.s32 0, %v38
  %v40 = vrot.slane %v22, %v39
  %vm42 = vcmask 523264
  %v44 = vsel %vm42, %v23, 0
  %v47 = vsel %vm42, %v24, 0
  %v50 = vsel %vm42, %v25, 0
  %v53 = vsel %vm42, %v26, 0
  %v56 = vsel %vm42, %v27, 0
  %v59 = vsel %vm42, %v28, 0
  %v62 = vsel %vm42, %v29, 0
  %v65 = vsel %vm42, %v30, 0
  %v68 = vsel %vm42, %v31, 0
  %v71 = vsel %vm42, %v32, 0
  %v74 = vsel %vm42, %v33, 0
  %v77 = vsel %vm42, %v34, 0
  %v80 = vsel %vm42, %v35, 0
  %82 = vmatprep.subr.mxu0 0.0
  %83 = vmatpush1.msra.mxu0 %v14
  %84 = vmatprep.subr.mxu0 0.0
  %85 = vmatpush1.msra.mxu0 %v15
  %86 = vmatprep.subr.mxu0 0.0
  %87 = vmatpush1.msra.mxu0 %v16
  %88 = vmatprep.subr.mxu0 0.0
  %89 = vmatpush1.msra.mxu0 %v17
  %90 = vmatprep.subr.mxu0 0.0
  %91 = vmatpush1.msra.mxu0 %v18
  %92 = vmatprep.subr.mxu0 0.0
  %93 = vmatpush1.msra.mxu0 %v19
  %94 = vmatprep.subr.mxu0 0.0
  %95 = vmatpush1.msra.mxu0 %v20
  %96 = vmatprep.subr.mxu0 0.0
  %97 = vmatpush1.msra.mxu0 %v21
  %98 = vmatprep.subr.mxu0 0.0
  %99 = vmatpush1.msra.mxu0 0.0
  %100 = vmatprep.subr.mxu0 0.0
  %101 = vmatpush1.msra.mxu0 0.0
  %102 = vmatprep.subr.mxu0 0.0
  %103 = vmatpush1.msra.mxu0 0.0
  %104 = vmatprep.subr.mxu0 0.0
  %105 = vmatpush1.msra.mxu0 0.0
  %106 = vmatprep.subr.mxu0 0.0
  %107 = vmatpush1.msra.mxu0 0.0
  %108 = vmatprep.subr.mxu0 0.0
  %109 = vmatpush1.msra.mxu0 0.0
  %110 = vmatprep.subr.mxu0 0.0
  %111 = vmatpush1.msra.mxu0 0.0
  %112 = vmatprep.subr.mxu0 0.0
  %113 = vmatpush1.msra.mxu0 0.0
  %114 = vmatprep.subr.mxu0 0.0
  %115 = vmatpush1.msra.mxu0 0.0
  %116 = vmatprep.subr.mxu0 0.0
  %117 = vmatpush1.msra.mxu0 0.0
  %118 = vmatprep.subr.mxu0 0.0
  %119 = vmatpush1.msra.mxu0 0.0
  %120 = vmatprep.subr.mxu0 0.0
  %121 = vmatpush1.msra.mxu0 0.0
  %122 = vmatprep.subr.mxu0 0.0
  %123 = vmatpush1.msra.mxu0 0.0
  %124 = vmatprep.subr.mxu0 0.0
  %125 = vmatpush1.msra.mxu0 0.0
  %126 = vmatprep.subr.mxu0 0.0
  %127 = vmatpush1.msra.mxu0 0.0
  %128 = vmatprep.subr.mxu0 0.0
  %129 = vmatpush1.msra.mxu0 0.0
  %130 = vmatprep.subr.mxu0 0.0
  %131 = vmatpush1.msra.mxu0 0.0
  %132 = vmatprep.subr.mxu0 0.0
  %133 = vmatpush1.msra.mxu0 0.0
  %134 = vmatprep.subr.mxu0 0.0
  %135 = vmatpush1.msra.mxu0 0.0
  %136 = vmatprep.subr.mxu0 0.0
  %137 = vmatpush1.msra.mxu0 0.0
  %138 = vmatprep.subr.mxu0 0.0
  %139 = vmatpush1.msra.mxu0 0.0
  %140 = vmatprep.subr.mxu0 0.0
  %141 = vmatpush1.msra.mxu0 0.0
  %142 = vmatprep.subr.mxu0 0.0
  %143 = vmatpush1.msra.mxu0 0.0
  %144 = vmatprep.subr.mxu0 0.0
  %145 = vmatpush1.msra.mxu0 0.0
  %146 = vmatprep.mubr.f32.mxu0 0.0
  %147 = vmatmul.mubr.f32.gmra.mrb[0].mxu0 %v44
  %v148 = vpop.f32.mrb[0].mxu0
  %v149 = vadd.f32 %v40, %v148
  %v150 = vpop.f32.mrb[0].mxu0
  %151 = vmatprep.mubr.f32.mxu0 0.0
  %152 = vmatmul.mubr.f32.gmra.mrb[0].mxu0 %v47
  %v153 = vpop.f32.mrb[0].mxu0
  %v154 = vadd.f32 %v40, %v153
  %v155 = vpop.f32.mrb[0].mxu0
  %156 = vmatprep.mubr.f32.mxu0 0.0
  %157 = vmatmul.mubr.f32.gmra.mrb[0].mxu0 %v50
  %v158 = vpop.f32.mrb[0].mxu0
  %v159 = vadd.f32 %v40, %v158
  %v160 = vpop.f32.mrb[0].mxu0
  %161 = vmatprep.mubr.f32.mxu0 0.0
  %162 = vmatmul.mubr.f32.gmra.mrb[0].mxu0 %v53
  %v163 = vpop.f32.mrb[0].mxu0
  %v164 = vadd.f32 %v40, %v163
  %v165 = vpop.f32.mrb[0].mxu0
  %166 = vmatprep.mubr.f32.mxu0 0.0
  %167 = vmatmul.mubr.f32.gmra.mrb[0].mxu0 %v56
  %v168 = vpop.f32.mrb[0].mxu0
  %v169 = vadd.f32 %v40, %v168
  %v170 = vpop.f32.mrb[0].mxu0
  %171 = vmatprep.mubr.f32.mxu0 0.0
  %172 = vmatmul.mubr.f32.gmra.mrb[0].mxu0 %v59
  %v173 = vpop.f32.mrb[0].mxu0
  %v174 = vadd.f32 %v40, %v173
  %v175 = vpop.f32.mrb[0].mxu0
  %176 = vmatprep.mubr.f32.mxu0 0.0
  %177 = vmatmul.mubr.f32.gmra.mrb[0].mxu0 %v62
  %v178 = vpop.f32.mrb[0].mxu0
  %v179 = vadd.f32 %v40, %v178
  %v180 = vpop.f32.mrb[0].mxu0
  %181 = vmatprep.mubr.f32.mxu0 0.0
  %182 = vmatmul.mubr.f32.gmra.mrb[0].mxu0 %v65
  %v183 = vpop.f32.mrb[0].mxu0
  %v184 = vadd.f32 %v40, %v183
  %v185 = vpop.f32.mrb[0].mxu0
  %186 = vmatprep.mubr.f32.mxu0 0.0
  %187 = vmatmul.mubr.f32.gmra.mrb[0].mxu0 %v68
  %v188 = vpop.f32.mrb[0].mxu0
  %v189 = vadd.f32 %v40, %v188
  %v190 = vpop.f32.mrb[0].mxu0
  %191 = vmatprep.mubr.f32.mxu0 0.0
  %192 = vmatmul.mubr.f32.gmra.mrb[0].mxu0 %v71
  %v193 = vpop.f32.mrb[0].mxu0
  %v194 = vadd.f32 %v40, %v193
  %v195 = vpop.f32.mrb[0].mxu0
  %196 = vmatprep.mubr.f32.mxu0 0.0
  %197 = vmatmul.mubr.f32.gmra.mrb[0].mxu0 %v74
  %v198 = vpop.f32.mrb[0].mxu0
  %v199 = vadd.f32 %v40, %v198
  %v200 = vpop.f32.mrb[0].mxu0
  %201 = vmatprep.mubr.f32.mxu0 0.0
  %202 = vmatmul.mubr.f32.gmra.mrb[0].mxu0 %v77
  %v203 = vpop.f32.mrb[0].mxu0
  %v204 = vadd.f32 %v40, %v203
  %v205 = vpop.f32.mrb[0].mxu0
  %206 = vmatprep.mubr.f32.mxu0 0.0
  %207 = vmatmul.mubr.f32.gmra.mrb[0].mxu0 %v80
  %v208 = vpop.f32.mrb[0].mxu0
  %v209 = vadd.f32 %v40, %v208
  %v210 = vpop.f32.mrb[0].mxu0
  %211 = vdwg.mxu0
  %v212 = vmax.f32 %v149, 0.0
  %v213 = vmax.f32 %v154, 0.0
  %v214 = vmax.f32 %v159, 0.0
  %v215 = vmax.f32 %v164, 0.0
  %v216 = vmax.f32 %v169, 0.0
  %v217 = vmax.f32 %v174, 0.0
  %v218 = vmax.f32 %v179, 0.0
  %v219 = vmax.f32 %v184, 0.0
  %v220 = vmax.f32 %v189, 0.0
  %v221 = vmax.f32 %v194, 0.0
  %v222 = vmax.f32 %v199, 0.0
  %v223 = vmax.f32 %v204, 0.0
  %v224 = vmax.f32 %v209, 0.0
  %s225 = scalar_lea.vmem %s0, 104
  %v226 = vld [vmem:[%s225] sm:$0xff]
  %v227 = vld [vmem:[%s225 + $0x8] sm:$0xff]
  %v228 = vld [vmem:[%s225 + $0x10] sm:$0xff]
  %v229 = vld [vmem:[%s225 + $0x18] sm:$0xff]
  %v230 = vld [vmem:[%s225 + $0x20] sm:$0xff]
  %v231 = vld [vmem:[%s225 + $0x28] sm:$0xff]
  %v232 = vld [vmem:[%s225 + $0x30] sm:$0xff]
  %v233 = vld [vmem:[%s225 + $0x38] sm:$0xff]
  %v234 = vld [vmem:[%s225 + $0x40] sm:$0xff]
  %v235 = vld [vmem:[%s225 + $0x48] sm:$0xff]
  %v236 = vld [vmem:[%s225 + $0x50] sm:$0xff]
  %v237 = vld [vmem:[%s225 + $0x58] sm:$0xff]
  %v238 = vld [vmem:[%s225 + $0x60] sm:$0x3]
  %v240 = vsel %vm42, %v226, 0
  %v243 = vsel %vm42, %v227, 0
  %v246 = vsel %vm42, %v228, 0
  %v249 = vsel %vm42, %v229, 0
  %v252 = vsel %vm42, %v230, 0
  %v255 = vsel %vm42, %v231, 0
  %v258 = vsel %vm42, %v232, 0
  %v261 = vsel %vm42, %v233, 0
  %v264 = vsel %vm42, %v234, 0
  %v267 = vsel %vm42, %v235, 0
  %v270 = vsel %vm42, %v236, 0
  %v273 = vsel %vm42, %v237, 0
  %v276 = vsel %vm42, %v238, 0
  %278 = vmatprep.subr.mxu0 0.0
  %279 = vmatpush1.msra.mxu0 %v14
  %280 = vmatprep.subr.mxu0 0.0
  %281 = vmatpush1.msra.mxu0 %v15
  %282 = vmatprep.subr.mxu0 0.0
  %283 = vmatpush1.msra.mxu0 %v16
  %284 = vmatprep.subr.mxu0 0.0
  %285 = vmatpush1.msra.mxu0 %v17
  %286 = vmatprep.subr.mxu0 0.0
  %287 = vmatpush1.msra.mxu0 %v18
  %288 = vmatprep.subr.mxu0 0.0
  %289 = vmatpush1.msra.mxu0 %v19
  %290 = vmatprep.subr.mxu0 0.0
  %291 = vmatpush1.msra.mxu0 %v20
  %292 = vmatprep.subr.mxu0 0.0
  %293 = vmatpush1.msra.mxu0 %v21
  %294 = vmatprep.subr.mxu0 0.0
  %295 = vmatpush1.msra.mxu0 0.0
  %296 = vmatprep.subr.mxu0 0.0
  %297 = vmatpush1.msra.mxu0 0.0
  %298 = vmatprep.subr.mxu0 0.0
  %299 = vmatpush1.msra.mxu0 0.0
  %300 = vmatprep.subr.mxu0 0.0
  %301 = vmatpush1.msra.mxu0 0.0
  %302 = vmatprep.subr.mxu0 0.0
  %303 = vmatpush1.msra.mxu0 0.0
  %304 = vmatprep.subr.mxu0 0.0
  %305 = vmatpush1.msra.mxu0 0.0
  %306 = vmatprep.subr.mxu0 0.0
  %307 = vmatpush1.msra.mxu0 0.0
  %308 = vmatprep.subr.mxu0 0.0
  %309 = vmatpush1.msra.mxu0 0.0
  %310 = vmatprep.subr.mxu0 0.0
  %311 = vmatpush1.msra.mxu0 0.0
  %312 = vmatprep.subr.mxu0 0.0
  %313 = vmatpush1.msra.mxu0 0.0
  %314 = vmatprep.subr.mxu0 0.0
  %315 = vmatpush1.msra.mxu0 0.0
  %316 = vmatprep.subr.mxu0 0.0
  %317 = vmatpush1.msra.mxu0 0.0
  %318 = vmatprep.subr.mxu0 0.0
  %319 = vmatpush1.msra.mxu0 0.0
  %320 = vmatprep.subr.mxu0 0.0
  %321 = vmatpush1.msra.mxu0 0.0
  %322 = vmatprep.subr.mxu0 0.0
  %323 = vmatpush1.msra.mxu0 0.0
  %324 = vmatprep.subr.mxu0 0.0
  %325 = vmatpush1.msra.mxu0 0.0
  %326 = vmatprep.subr.mxu0 0.0
  %327 = vmatpush1.msra.mxu0 0.0
  %328 = vmatprep.subr.mxu0 0.0
  %329 = vmatpush1.msra.mxu0 0.0
  %330 = vmatprep.subr.mxu0 0.0
  %331 = vmatpush1.msra.mxu0 0.0
  %332 = vmatprep.subr.mxu0 0.0
  %333 = vmatpush1.msra.mxu0 0.0
  %334 = vmatprep.subr.mxu0 0.0
  %335 = vmatpush1.msra.mxu0 0.0
  %336 = vmatprep.subr.mxu0 0.0
  %337 = vmatpush1.msra.mxu0 0.0
  %338 = vmatprep.subr.mxu0 0.0
  %339 = vmatpush1.msra.mxu0 0.0
  %340 = vmatprep.subr.mxu0 0.0
  %341 = vmatpush1.msra.mxu0 0.0
  %342 = vmatprep.mubr.f32.mxu0 0.0
  %343 = vmatmul.mubr.f32.gmra.mrb[0].mxu0 %v240
  %v344 = vpop.f32.mrb[0].mxu0
  %v345 = vadd.f32 %v40, %v344
  %v346 = vpop.f32.mrb[0].mxu0
  %347 = vmatprep.mubr.f32.mxu0 0.0
  %348 = vmatmul.mubr.f32.gmra.mrb[0].mxu0 %v243
  %v349 = vpop.f32.mrb[0].mxu0
  %v350 = vadd.f32 %v40, %v349
  %v351 = vpop.f32.mrb[0].mxu0
  %352 = vmatprep.mubr.f32.mxu0 0.0
  %353 = vmatmul.mubr.f32.gmra.mrb[0].mxu0 %v246
  %v354 = vpop.f32.mrb[0].mxu0
  %v355 = vadd.f32 %v40, %v354
  %v356 = vpop.f32.mrb[0].mxu0
  %357 = vmatprep.mubr.f32.mxu0 0.0
  %358 = vmatmul.mubr.f32.gmra.mrb[0].mxu0 %v249
  %v359 = vpop.f32.mrb[0].mxu0
  %v360 = vadd.f32 %v40, %v359
  %v361 = vpop.f32.mrb[0].mxu0
  %362 = vmatprep.mubr.f32.mxu0 0.0
  %363 = vmatmul.mubr.f32.gmra.mrb[0].mxu0 %v252
  %v364 = vpop.f32.mrb[0].mxu0
  %v365 = vadd.f32 %v40, %v364
  %v366 = vpop.f32.mrb[0].mxu0
  %367 = vmatprep.mubr.f32.mxu0 0.0
  %368 = vmatmul.mubr.f32.gmra.mrb[0].mxu0 %v255
  %v369 = vpop.f32.mrb[0].mxu0
  %v370 = vadd.f32 %v40, %v369
  %v371 = vpop.f32.mrb[0].mxu0
  %372 = vmatprep.mubr.f32.mxu0 0.0
  %373 = vmatmul.mubr.f32.gmra.mrb[0].mxu0 %v258
  %v374 = vpop.f32.mrb[0].mxu0
  %v375 = vadd.f32 %v40, %v374
  %v376 = vpop.f32.mrb[0].mxu0
  %377 = vmatprep.mubr.f32.mxu0 0.0
  %378 = vmatmul.mubr.f32.gmra.mrb[0].mxu0 %v261
  %v379 = vpop.f32.mrb[0].mxu0
  %v380 = vadd.f32 %v40, %v379
  %v381 = vpop.f32.mrb[0].mxu0
  %382 = vmatprep.mubr.f32.mxu0 0.0
  %383 = vmatmul.mubr.f32.gmra.mrb[0].mxu0 %v264
  %v384 = vpop.f32.mrb[0].mxu0
  %v385 = vadd.f32 %v40, %v384
  %v386 = vpop.f32.mrb[0].mxu0
  %387 = vmatprep.mubr.f32.mxu0 0.0
  %388 = vmatmul.mubr.f32.gmra.mrb[0].mxu0 %v267
  %v389 = vpop.f32.mrb[0].mxu0
  %v390 = vadd.f32 %v40, %v389
  %v391 = vpop.f32.mrb[0].mxu0
  %392 = vmatprep.mubr.f32.mxu0 0.0
  %393 = vmatmul.mubr.f32.gmra.mrb[0].mxu0 %v270
  %v394 = vpop.f32.mrb[0].mxu0
  %v395 = vadd.f32 %v40, %v394
  %v396 = vpop.f32.mrb[0].mxu0
  %397 = vmatprep.mubr.f32.mxu0 0.0
  %398 = vmatmul.mubr.f32.gmra.mrb[0].mxu0 %v273
  %v399 = vpop.f32.mrb[0].mxu0
  %v400 = vadd.f32 %v40, %v399
  %v401 = vpop.f32.mrb[0].mxu0
  %402 = vmatprep.mubr.f32.mxu0 0.0
  %403 = vmatmul.mubr.f32.gmra.mrb[0].mxu0 %v276
  %v404 = vpop.f32.mrb[0].mxu0
  %v405 = vadd.f32 %v40, %v404
  %v406 = vpop.f32.mrb[0].mxu0
  %407 = vdwg.mxu0
  %v408 = vmax.f32 %v345, 0.0
  %v409 = vmax.f32 %v350, 0.0
  %v410 = vmax.f32 %v355, 0.0
  %v411 = vmax.f32 %v360, 0.0
  %v412 = vmax.f32 %v365, 0.0
  %v413 = vmax.f32 %v370, 0.0
  %v414 = vmax.f32 %v375, 0.0
  %v415 = vmax.f32 %v380, 0.0
  %v416 = vmax.f32 %v385, 0.0
  %v417 = vmax.f32 %v390, 0.0
  %v418 = vmax.f32 %v395, 0.0
  %v419 = vmax.f32 %v400, 0.0
  %v420 = vmax.f32 %v405, 0.0
  %v421 = vmax.f32 %v212, %v408
  %v422 = vmax.f32 %v213, %v409
  %v423 = vmax.f32 %v214, %v410
  %v424 = vmax.f32 %v215, %v411
  %v425 = vmax.f32 %v216, %v412
  %v426 = vmax.f32 %v217, %v413
  %v427 = vmax.f32 %v218, %v414
  %v428 = vmax.f32 %v219, %v415
  %v429 = vmax.f32 %v220, %v416
  %v430 = vmax.f32 %v221, %v417
  %v431 = vmax.f32 %v222, %v418
  %v432 = vmax.f32 %v223, %v419
  %v433 = vmax.f32 %v224, %v420
  %s434 = scalar_lea.vmem %s0, 208
  %v435 = vld [vmem:[%s434] sm:$0xff]
  %v436 = vld [vmem:[%s434 + $0x8] sm:$0xff]
  %v437 = vld [vmem:[%s434 + $0x10] sm:$0xff]
  %v438 = vld [vmem:[%s434 + $0x18] sm:$0xff]
  %v439 = vld [vmem:[%s434 + $0x20] sm:$0xff]
  %v440 = vld [vmem:[%s434 + $0x28] sm:$0xff]
  %v441 = vld [vmem:[%s434 + $0x30] sm:$0xff]
  %v442 = vld [vmem:[%s434 + $0x38] sm:$0xff]
  %v443 = vld [vmem:[%s434 + $0x40] sm:$0xff]
  %v444 = vld [vmem:[%s434 + $0x48] sm:$0xff]
  %v445 = vld [vmem:[%s434 + $0x50] sm:$0xff]
  %v446 = vld [vmem:[%s434 + $0x58] sm:$0xff]
  %v447 = vld [vmem:[%s434 + $0x60] sm:$0x3]
  %v449 = vsel %vm42, %v435, 0
  %v452 = vsel %vm42, %v436, 0
  %v455 = vsel %vm42, %v437, 0
  %v458 = vsel %vm42, %v438, 0
  %v461 = vsel %vm42, %v439, 0
  %v464 = vsel %vm42, %v440, 0
  %v467 = vsel %vm42, %v441, 0
  %v470 = vsel %vm42, %v442, 0
  %v473 = vsel %vm42, %v443, 0
  %v476 = vsel %vm42, %v444, 0
  %v479 = vsel %vm42, %v445, 0
  %v482 = vsel %vm42, %v446, 0
  %v485 = vsel %vm42, %v447, 0
  %487 = vmatprep.subr.mxu0 0.0
  %488 = vmatpush1.msra.mxu0 %v14
  %489 = vmatprep.subr.mxu0 0.0
  %490 = vmatpush1.msra.mxu0 %v15
  %491 = vmatprep.subr.mxu0 0.0
  %492 = vmatpush1.msra.mxu0 %v16
  %493 = vmatprep.subr.mxu0 0.0
  %494 = vmatpush1.msra.mxu0 %v17
  %495 = vmatprep.subr.mxu0 0.0
  %496 = vmatpush1.msra.mxu0 %v18
  %497 = vmatprep.subr.mxu0 0.0
  %498 = vmatpush1.msra.mxu0 %v19
  %499 = vmatprep.subr.mxu0 0.0
  %500 = vmatpush1.msra.mxu0 %v20
  %501 = vmatprep.subr.mxu0 0.0
  %502 = vmatpush1.msra.mxu0 %v21
  %503 = vmatprep.subr.mxu0 0.0
  %504 = vmatpush1.msra.mxu0 0.0
  %505 = vmatprep.subr.mxu0 0.0
  %506 = vmatpush1.msra.mxu0 0.0
  %507 = vmatprep.subr.mxu0 0.0
  %508 = vmatpush1.msra.mxu0 0.0
  %509 = vmatprep.subr.mxu0 0.0
  %510 = vmatpush1.msra.mxu0 0.0
  %511 = vmatprep.subr.mxu0 0.0
  %512 = vmatpush1.msra.mxu0 0.0
  %513 = vmatprep.subr.mxu0 0.0
  %514 = vmatpush1.msra.mxu0 0.0
  %515 = vmatprep.subr.mxu0 0.0
  %516 = vmatpush1.msra.mxu0 0.0
  %517 = vmatprep.subr.mxu0 0.0
  %518 = vmatpush1.msra.mxu0 0.0
  %519 = vmatprep.subr.mxu0 0.0
  %520 = vmatpush1.msra.mxu0 0.0
  %521 = vmatprep.subr.mxu0 0.0
  %522 = vmatpush1.msra.mxu0 0.0
  %523 = vmatprep.subr.mxu0 0.0
  %524 = vmatpush1.msra.mxu0 0.0
  %525 = vmatprep.subr.mxu0 0.0
  %526 = vmatpush1.msra.mxu0 0.0
  %527 = vmatprep.subr.mxu0 0.0
  %528 = vmatpush1.msra.mxu0 0.0
  %529 = vmatprep.subr.mxu0 0.0
  %530 = vmatpush1.msra.mxu0 0.0
  %531 = vmatprep.subr.mxu0 0.0
  %532 = vmatpush1.msra.mxu0 0.0
  %533 = vmatprep.subr.mxu0 0.0
  %534 = vmatpush1.msra.mxu0 0.0
  %535 = vmatprep.subr.mxu0 0.0
  %536 = vmatpush1.msra.mxu0 0.0
  %537 = vmatprep.subr.mxu0 0.0
  %538 = vmatpush1.msra.mxu0 0.0
  %539 = vmatprep.subr.mxu0 0.0
  %540 = vmatpush1.msra.mxu0 0.0
  %541 = vmatprep.subr.mxu0 0.0
  %542 = vmatpush1.msra.mxu0 0.0
  %543 = vmatprep.subr.mxu0 0.0
  %544 = vmatpush1.msra.mxu0 0.0
  %545 = vmatprep.subr.mxu0 0.0
  %546 = vmatpush1.msra.mxu0 0.0
  %547 = vmatprep.subr.mxu0 0.0
  %548 = vmatpush1.msra.mxu0 0.0
  %549 = vmatprep.subr.mxu0 0.0
  %550 = vmatpush1.msra.mxu0 0.0
  %551 = vmatprep.mubr.f32.mxu0 0.0
  %552 = vmatmul.mubr.f32.gmra.mrb[0].mxu0 %v449
  %v553 = vpop.f32.mrb[0].mxu0
  %v554 = vadd.f32 %v40, %v553
  %v555 = vpop.f32.mrb[0].mxu0
  %556 = vmatprep.mubr.f32.mxu0 0.0
  %557 = vmatmul.mubr.f32.gmra.mrb[0].mxu0 %v452
  %v558 = vpop.f32.mrb[0].mxu0
  %v559 = vadd.f32 %v40, %v558
  %v560 = vpop.f32.mrb[0].mxu0
  %561 = vmatprep.mubr.f32.mxu0 0.0
  %562 = vmatmul.mubr.f32.gmra.mrb[0].mxu0 %v455
  %v563 = vpop.f32.mrb[0].mxu0
  %v564 = vadd.f32 %v40, %v563
  %v565 = vpop.f32.mrb[0].mxu0
  %566 = vmatprep.mubr.f32.mxu0 0.0
  %567 = vmatmul.mubr.f32.gmra.mrb[0].mxu0 %v458
  %v568 = vpop.f32.mrb[0].mxu0
  %v569 = vadd.f32 %v40, %v568
  %v570 = vpop.f32.mrb[0].mxu0
  %571 = vmatprep.mubr.f32.mxu0 0.0
  %572 = vmatmul.mubr.f32.gmra.mrb[0].mxu0 %v461
  %v573 = vpop.f32.mrb[0].mxu0
  %v574 = vadd.f32 %v40, %v573
  %v575 = vpop.f32.mrb[0].mxu0
  %576 = vmatprep.mubr.f32.mxu0 0.0
  %577 = vmatmul.mubr.f32.gmra.mrb[0].mxu0 %v464
  %v578 = vpop.f32.mrb[0].mxu0
  %v579 = vadd.f32 %v40, %v578
  %v580 = vpop.f32.mrb[0].mxu0
  %581 = vmatprep.mubr.f32.mxu0 0.0
  %582 = vmatmul.mubr.f32.gmra.mrb[0].mxu0 %v467
  %v583 = vpop.f32.mrb[0].mxu0
  %v584 = vadd.f32 %v40, %v583
  %v585 = vpop.f32.mrb[0].mxu0
  %586 = vmatprep.mubr.f32.mxu0 0.0
  %587 = vmatmul.mubr.f32.gmra.mrb[0].mxu0 %v470
  %v588 = vpop.f32.mrb[0].mxu0
  %v589 = vadd.f32 %v40, %v588
  %v590 = vpop.f32.mrb[0].mxu0
  %591 = vmatprep.mubr.f32.mxu0 0.0
  %592 = vmatmul.mubr.f32.gmra.mrb[0].mxu0 %v473
  %v593 = vpop.f32.mrb[0].mxu0
  %v594 = vadd.f32 %v40, %v593
  %v595 = vpop.f32.mrb[0].mxu0
  %596 = vmatprep.mubr.f32.mxu0 0.0
  %597 = vmatmul.mubr.f32.gmra.mrb[0].mxu0 %v476
  %v598 = vpop.f32.mrb[0].mxu0
  %v599 = vadd.f32 %v40, %v598
  %v600 = vpop.f32.mrb[0].mxu0
  %601 = vmatprep.mubr.f32.mxu0 0.0
  %602 = vmatmul.mubr.f32.gmra.mrb[0].mxu0 %v479
  %v603 = vpop.f32.mrb[0].mxu0
  %v604 = vadd.f32 %v40, %v603
  %v605 = vpop.f32.mrb[0].mxu0
  %606 = vmatprep.mubr.f32.mxu0 0.0
  %607 = vmatmul.mubr.f32.gmra.mrb[0].mxu0 %v482
  %v608 = vpop.f32.mrb[0].mxu0
  %v609 = vadd.f32 %v40, %v608
  %v610 = vpop.f32.mrb[0].mxu0
  %611 = vmatprep.mubr.f32.mxu0 0.0
  %612 = vmatmul.mubr.f32.gmra.mrb[0].mxu0 %v485
  %v613 = vpop.f32.mrb[0].mxu0
  %v614 = vadd.f32 %v40, %v613
  %v615 = vpop.f32.mrb[0].mxu0
  %616 = vdwg.mxu0
  %v617 = vmax.f32 %v554, 0.0
  %v618 = vmax.f32 %v559, 0.0
  %v619 = vmax.f32 %v564, 0.0
  %v620 = vmax.f32 %v569, 0.0
  %v621 = vmax.f32 %v574, 0.0
  %v622 = vmax.f32 %v579, 0.0
  %v623 = vmax.f32 %v584, 0.0
  %v624 = vmax.f32 %v589, 0.0
  %v625 = vmax.f32 %v594, 0.0
  %v626 = vmax.f32 %v599, 0.0
  %v627 = vmax.f32 %v604, 0.0
  %v628 = vmax.f32 %v609, 0.0
  %v629 = vmax.f32 %v614, 0.0
  %s630 = scalar_lea.vmem %s0, 312
  %v631 = vld [vmem:[%s630] sm:$0xff]
  %v632 = vld [vmem:[%s630 + $0x8] sm:$0xff]
  %v633 = vld [vmem:[%s630 + $0x10] sm:$0xff]
  %v634 = vld [vmem:[%s630 + $0x18] sm:$0xff]
  %v635 = vld [vmem:[%s630 + $0x20] sm:$0xff]
  %v636 = vld [vmem:[%s630 + $0x28] sm:$0xff]
  %v637 = vld [vmem:[%s630 + $0x30] sm:$0xff]
  %v638 = vld [vmem:[%s630 + $0x38] sm:$0xff]
  %v639 = vld [vmem:[%s630 + $0x40] sm:$0xff]
  %v640 = vld [vmem:[%s630 + $0x48] sm:$0xff]
  %v641 = vld [vmem:[%s630 + $0x50] sm:$0xff]
  %v642 = vld [vmem:[%s630 + $0x58] sm:$0xff]
  %v643 = vld [vmem:[%s630 + $0x60] sm:$0x3]
  %v645 = vsel %vm42, %v631, 0
  %v648 = vsel %vm42, %v632, 0
  %v651 = vsel %vm42, %v633, 0
  %v654 = vsel %vm42, %v634, 0
  %v657 = vsel %vm42, %v635, 0
  %v660 = vsel %vm42, %v636, 0
  %v663 = vsel %vm42, %v637, 0
  %v666 = vsel %vm42, %v638, 0
  %v669 = vsel %vm42, %v639, 0
  %v672 = vsel %vm42, %v640, 0
  %v675 = vsel %vm42, %v641, 0
  %v678 = vsel %vm42, %v642, 0
  %v681 = vsel %vm42, %v643, 0
  %683 = vmatprep.subr.mxu0 0.0
  %684 = vmatpush1.msra.mxu0 %v14
  %685 = vmatprep.subr.mxu0 0.0
  %686 = vmatpush1.msra.mxu0 %v15
  %687 = vmatprep.subr.mxu0 0.0
  %688 = vmatpush1.msra.mxu0 %v16
  %689 = vmatprep.subr.mxu0 0.0
  %690 = vmatpush1.msra.mxu0 %v17
  %691 = vmatprep.subr.mxu0 0.0
  %692 = vmatpush1.msra.mxu0 %v18
  %693 = vmatprep.subr.mxu0 0.0
  %694 = vmatpush1.msra.mxu0 %v19
  %695 = vmatprep.subr.mxu0 0.0
  %696 = vmatpush1.msra.mxu0 %v20
  %697 = vmatprep.subr.mxu0 0.0
  %698 = vmatpush1.msra.mxu0 %v21
  %699 = vmatprep.subr.mxu0 0.0
  %700 = vmatpush1.msra.mxu0 0.0
  %701 = vmatprep.subr.mxu0 0.0
  %702 = vmatpush1.msra.mxu0 0.0
  %703 = vmatprep.subr.mxu0 0.0
  %704 = vmatpush1.msra.mxu0 0.0
  %705 = vmatprep.subr.mxu0 0.0
  %706 = vmatpush1.msra.mxu0 0.0
  %707 = vmatprep.subr.mxu0 0.0
  %708 = vmatpush1.msra.mxu0 0.0
  %709 = vmatprep.subr.mxu0 0.0
  %710 = vmatpush1.msra.mxu0 0.0
  %711 = vmatprep.subr.mxu0 0.0
  %712 = vmatpush1.msra.mxu0 0.0
  %713 = vmatprep.subr.mxu0 0.0
  %714 = vmatpush1.msra.mxu0 0.0
  %715 = vmatprep.subr.mxu0 0.0
  %716 = vmatpush1.msra.mxu0 0.0
  %717 = vmatprep.subr.mxu0 0.0
  %718 = vmatpush1.msra.mxu0 0.0
  %719 = vmatprep.subr.mxu0 0.0
  %720 = vmatpush1.msra.mxu0 0.0
  %721 = vmatprep.subr.mxu0 0.0
  %722 = vmatpush1.msra.mxu0 0.0
  %723 = vmatprep.subr.mxu0 0.0
  %724 = vmatpush1.msra.mxu0 0.0
  %725 = vmatprep.subr.mxu0 0.0
  %726 = vmatpush1.msra.mxu0 0.0
  %727 = vmatprep.subr.mxu0 0.0
  %728 = vmatpush1.msra.mxu0 0.0
  %729 = vmatprep.subr.mxu0 0.0
  %730 = vmatpush1.msra.mxu0 0.0
  %731 = vmatprep.subr.mxu0 0.0
  %732 = vmatpush1.msra.mxu0 0.0
  %733 = vmatprep.subr.mxu0 0.0
  %734 = vmatpush1.msra.mxu0 0.0
  %735 = vmatprep.subr.mxu0 0.0
  %736 = vmatpush1.msra.mxu0 0.0
  %737 = vmatprep.subr.mxu0 0.0
  %738 = vmatpush1.msra.mxu0 0.0
  %739 = vmatprep.subr.mxu0 0.0
  %740 = vmatpush1.msra.mxu0 0.0
  %741 = vmatprep.subr.mxu0 0.0
  %742 = vmatpush1.msra.mxu0 0.0
  %743 = vmatprep.subr.mxu0 0.0
  %744 = vmatpush1.msra.mxu0 0.0
  %745 = vmatprep.subr.mxu0 0.0
  %746 = vmatpush1.msra.mxu0 0.0
  %747 = vmatprep.mubr.f32.mxu0 0.0
  %748 = vmatmul.mubr.f32.gmra.mrb[0].mxu0 %v645
  %v749 = vpop.f32.mrb[0].mxu0
  %v750 = vadd.f32 %v40, %v749
  %v751 = vpop.f32.mrb[0].mxu0
  %752 = vmatprep.mubr.f32.mxu0 0.0
  %753 = vmatmul.mubr.f32.gmra.mrb[0].mxu0 %v648
  %v754 = vpop.f32.mrb[0].mxu0
  %v755 = vadd.f32 %v40, %v754
  %v756 = vpop.f32.mrb[0].mxu0
  %757 = vmatprep.mubr.f32.mxu0 0.0
  %758 = vmatmul.mubr.f32.gmra.mrb[0].mxu0 %v651
  %v759 = vpop.f32.mrb[0].mxu0
  %v760 = vadd.f32 %v40, %v759
  %v761 = vpop.f32.mrb[0].mxu0
  %762 = vmatprep.mubr.f32.mxu0 0.0
  %763 = vmatmul.mubr.f32.gmra.mrb[0].mxu0 %v654
  %v764 = vpop.f32.mrb[0].mxu0
  %v765 = vadd.f32 %v40, %v764
  %v766 = vpop.f32.mrb[0].mxu0
  %767 = vmatprep.mubr.f32.mxu0 0.0
  %768 = vmatmul.mubr.f32.gmra.mrb[0].mxu0 %v657
  %v769 = vpop.f32.mrb[0].mxu0
  %v770 = vadd.f32 %v40, %v769
  %v771 = vpop.f32.mrb[0].mxu0
  %772 = vmatprep.mubr.f32.mxu0 0.0
  %773 = vmatmul.mubr.f32.gmra.mrb[0].mxu0 %v660
  %v774 = vpop.f32.mrb[0].mxu0
  %v775 = vadd.f32 %v40, %v774
  %v776 = vpop.f32.mrb[0].mxu0
  %777 = vmatprep.mubr.f32.mxu0 0.0
  %778 = vmatmul.mubr.f32.gmra.mrb[0].mxu0 %v663
  %v779 = vpop.f32.mrb[0].mxu0
  %v780 = vadd.f32 %v40, %v779
  %v781 = vpop.f32.mrb[0].mxu0
  %782 = vmatprep.mubr.f32.mxu0 0.0
  %783 = vmatmul.mubr.f32.gmra.mrb[0].mxu0 %v666
  %v784 = vpop.f32.mrb[0].mxu0
  %v785 = vadd.f32 %v40, %v784
  %v786 = vpop.f32.mrb[0].mxu0
  %787 = vmatprep.mubr.f32.mxu0 0.0
  %788 = vmatmul.mubr.f32.gmra.mrb[0].mxu0 %v669
  %v789 = vpop.f32.mrb[0].mxu0
  %v790 = vadd.f32 %v40, %v789
  %v791 = vpop.f32.mrb[0].mxu0
  %792 = vmatprep.mubr.f32.mxu0 0.0
  %793 = vmatmul.mubr.f32.gmra.mrb[0].mxu0 %v672
  %v794 = vpop.f32.mrb[0].mxu0
  %v795 = vadd.f32 %v40, %v794
  %v796 = vpop.f32.mrb[0].mxu0
  %797 = vmatprep.mubr.f32.mxu0 0.0
  %798 = vmatmul.mubr.f32.gmra.mrb[0].mxu0 %v675
  %v799 = vpop.f32.mrb[0].mxu0
  %v800 = vadd.f32 %v40, %v799
  %v801 = vpop.f32.mrb[0].mxu0
  %802 = vmatprep.mubr.f32.mxu0 0.0
  %803 = vmatmul.mubr.f32.gmra.mrb[0].mxu0 %v678
  %v804 = vpop.f32.mrb[0].mxu0
  %v805 = vadd.f32 %v40, %v804
  %v806 = vpop.f32.mrb[0].mxu0
  %807 = vmatprep.mubr.f32.mxu0 0.0
  %808 = vmatmul.mubr.f32.gmra.mrb[0].mxu0 %v681
  %v809 = vpop.f32.mrb[0].mxu0
  %v810 = vadd.f32 %v40, %v809
  %v811 = vpop.f32.mrb[0].mxu0
  %812 = vdwg.mxu0
  %v813 = vmax.f32 %v750, 0.0
  %v814 = vmax.f32 %v755, 0.0
  %v815 = vmax.f32 %v760, 0.0
  %v816 = vmax.f32 %v765, 0.0
  %v817 = vmax.f32 %v770, 0.0
  %v818 = vmax.f32 %v775, 0.0
  %v819 = vmax.f32 %v780, 0.0
  %v820 = vmax.f32 %v785, 0.0
  %v821 = vmax.f32 %v790, 0.0
  %v822 = vmax.f32 %v795, 0.0
  %v823 = vmax.f32 %v800, 0.0
  %v824 = vmax.f32 %v805, 0.0
  %v825 = vmax.f32 %v810, 0.0
  %v826 = vmax.f32 %v617, %v813
  %v827 = vmax.f32 %v618, %v814
  %v828 = vmax.f32 %v619, %v815
  %v829 = vmax.f32 %v620, %v816
  %v830 = vmax.f32 %v621, %v817
  %v831 = vmax.f32 %v622, %v818
  %v832 = vmax.f32 %v623, %v819
  %v833 = vmax.f32 %v624, %v820
  %v834 = vmax.f32 %v625, %v821
  %v835 = vmax.f32 %v626, %v822
  %v836 = vmax.f32 %v627, %v823
  %v837 = vmax.f32 %v628, %v824
  %v838 = vmax.f32 %v629, %v825
  %v839 = vmax.f32 %v421, %v826
  %v840 = vmax.f32 %v422, %v827
  %v841 = vmax.f32 %v423, %v828
  %v842 = vmax.f32 %v424, %v829
  %v843 = vmax.f32 %v425, %v830
  %v844 = vmax.f32 %v426, %v831
  %v845 = vmax.f32 %v427, %v832
  %v846 = vmax.f32 %v428, %v833
  %v847 = vmax.f32 %v429, %v834
  %v848 = vmax.f32 %v430, %v835
  %v849 = vmax.f32 %v431, %v836
  %v850 = vmax.f32 %v432, %v837
  %v851 = vmax.f32 %v433, %v838
  %vm852 = vcmask 261120
  %853 = vst.msk [vmem:[%s3] sm:$0xff] %vm852, %v839
  %854 = vst.msk [vmem:[%s3 + $0x8] sm:$0xff] %vm852, %v840
  %855 = vst.msk [vmem:[%s3 + $0x10] sm:$0xff] %vm852, %v841
  %856 = vst.msk [vmem:[%s3 + $0x18] sm:$0xff] %vm852, %v842
  %857 = vst.msk [vmem:[%s3 + $0x20] sm:$0xff] %vm852, %v843
  %858 = vst.msk [vmem:[%s3 + $0x28] sm:$0xff] %vm852, %v844
  %859 = vst.msk [vmem:[%s3 + $0x30] sm:$0xff] %vm852, %v845
  %860 = vst.msk [vmem:[%s3 + $0x38] sm:$0xff] %vm852, %v846
  %861 = vst.msk [vmem:[%s3 + $0x40] sm:$0xff] %vm852, %v847
  %862 = vst.msk [vmem:[%s3 + $0x48] sm:$0xff] %vm852, %v848
  %863 = vst.msk [vmem:[%s3 + $0x50] sm:$0xff] %vm852, %v849
  %864 = vst.msk [vmem:[%s3 + $0x58] sm:$0xff] %vm852, %v850
  %vm865 = vcmask 254976
  %866 = vst.msk [vmem:[%s3 + $0x60] sm:$0x3] %vm865, %v851
  // Predicated region
  $region14: #{convnet_forward.5} parent=0 // pred_check
    _
  $region15: #{convnet_forward.5} parent=0 // pred_check_branch
    %868 = sbr.rel (0) target = $region17
  $region16: #{convnet_forward.5} parent=0 // pred_region
    _
  $region17: #{convnet_forward.5} parent=0 // pred_fallthru
    _
  // Predicated region
  $region18: #{convnet_forward.5} parent=0 // pred_check
    _
  $region19: #{convnet_forward.5} parent=0 // pred_check_branch
    %870 = sbr.rel (0) target = $region21
  $region20: #{convnet_forward.5} parent=0 // pred_region
    _
  $region21: #{convnet_forward.5} parent=0 // pred_fallthru
    _

// kernel: convnet_forward.6
$region0: #{convnet_forward.6}
  #allocation0 [shape = 'u32[]', space=smem, size = 0x4, offset = 0x4, fixed_abs, tag = 'smem constant byte address 0x4 - core index']
  #allocation1 [shape = 'u32[144,128]{1,0:T(1,128)}', space=vmem, size = 0x12000, scoped, tag = 'internal scratch']
  %s0 = inlined_call_operand.vmem [shape: f32[4,18,128], index: 0, kind: input, shape index: {}]
  %s1 = inlined_call_operand.vmem [shape: f32[128,64], index: 1, kind: input, shape index: {}]
  %s2 = inlined_call_operand.vmem [shape: f32[1,64], index: 2, kind: input, shape index: {}]
  %s3 = inlined_call_operand.vmem [shape: f32[18,64], index: 3, kind: output, shape index: {}]
  %s4 = sld [smem:[#allocation0]]
  $region22: #{convnet_forward.6} parent=0
    _
  %s6 = ssub.s32 1, %s4
  %s7 = scalar_select 0, %s6, %s4
  // Predicated region
  $region2: #{convnet_forward.6} parent=0 // pred_check
    _
  $region3: #{convnet_forward.6} parent=0 // pred_check_branch
    %9 = sbr.rel (0) target = $region5
  $region4: #{convnet_forward.6} parent=0 // pred_region
    _
  $region5: #{convnet_forward.6} parent=0 // pred_fallthru
    _
  // Predicated region
  $region6: #{convnet_forward.6} parent=0 // pred_check
    _
  $region7: #{convnet_forward.6} parent=0 // pred_check_branch
    %11 = sbr.rel (0) target = $region9
  $region8: #{convnet_forward.6} parent=0 // pred_region
    _
  $region9: #{convnet_forward.6} parent=0 // pred_fallthru
    _
  // Predicated region
  $region10: #{convnet_forward.6} parent=0 // pred_check
    _
  $region11: #{convnet_forward.6} parent=0 // pred_check_branch
    %13 = sbr.rel (0) target = $region13
  $region12: #{convnet_forward.6} parent=0 // pred_region
    _
  $region13: #{convnet_forward.6} parent=0 // pred_fallthru
    _
  %v14 = vld [vmem:[%s1] sm:$0xff]
  %v15 = vld [vmem:[%s1 + $0x8] sm:$0xff]
  %v16 = vld [vmem:[%s1 + $0x10] sm:$0xff]
  %v17 = vld [vmem:[%s1 + $0x18] sm:$0xff]
  %v18 = vld [vmem:[%s1 + $0x20] sm:$0xff]
  %v19 = vld [vmem:[%s1 + $0x28] sm:$0xff]
  %v20 = vld [vmem:[%s1 + $0x30] sm:$0xff]
  %v21 = vld [vmem:[%s1 + $0x38] sm:$0xff]
  %v22 = vld [vmem:[%s1 + $0x40] sm:$0xff]
  %v23 = vld [vmem:[%s1 + $0x48] sm:$0xff]
  %v24 = vld [vmem:[%s1 + $0x50] sm:$0xff]
  %v25 = vld [vmem:[%s1 + $0x58] sm:$0xff]
  %v26 = vld [vmem:[%s1 + $0x60] sm:$0xff]
  %v27 = vld [vmem:[%s1 + $0x68] sm:$0xff]
  %v28 = vld [vmem:[%s1 + $0x70] sm:$0xff]
  %v29 = vld [vmem:[%s1 + $0x78] sm:$0xff]
  %v30 = vld [vmem:[%s2] sm:$0x1]
  %v31 = vld [vmem:[%s0] sm:$0xff]
  %v32 = vld [vmem:[%s0 + $0x8] sm:$0xff]
  %v33 = vld [vmem:[%s0 + $0x10] sm:$0x3]
  %v35 = vlaneseq
  %v36 = vshrl.u32 %v35, 7
  %v37 = vsub.s32 0, %v36
  %v38 = vrot.slane %v30, %v37
  %40 = vmatprep.subr.mxu0 0.0
  %41 = vmatpush1.msra.mxu0 %v14
  %42 = vmatprep.subr.mxu0 0.0
  %43 = vmatpush1.msra.mxu0 %v15
  %44 = vmatprep.subr.mxu0 0.0
  %45 = vmatpush1.msra.mxu0 %v16
  %46 = vmatprep.subr.mxu0 0.0
  %47 = vmatpush1.msra.mxu0 %v17
  %48 = vmatprep.subr.mxu0 0.0
  %49 = vmatpush1.msra.mxu0 %v18
  %50 = vmatprep.subr.mxu0 0.0
  %51 = vmatpush1.msra.mxu0 %v19
  %52 = vmatprep.subr.mxu0 0.0
  %53 = vmatpush1.msra.mxu0 %v20
  %54 = vmatprep.subr.mxu0 0.0
  %55 = vmatpush1.msra.mxu0 %v21
  %56 = vmatprep.subr.mxu0 0.0
  %57 = vmatpush1.msra.mxu0 %v22
  %58 = vmatprep.subr.mxu0 0.0
  %59 = vmatpush1.msra.mxu0 %v23
  %60 = vmatprep.subr.mxu0 0.0
  %61 = vmatpush1.msra.mxu0 %v24
  %62 = vmatprep.subr.mxu0 0.0
  %63 = vmatpush1.msra.mxu0 %v25
  %64 = vmatprep.subr.mxu0 0.0
  %65 = vmatpush1.msra.mxu0 %v26
  %66 = vmatprep.subr.mxu0 0.0
  %67 = vmatpush1.msra.mxu0 %v27
  %68 = vmatprep.subr.mxu0 0.0
  %69 = vmatpush1.msra.mxu0 %v28
  %70 = vmatprep.subr.mxu0 0.0
  %71 = vmatpush1.msra.mxu0 %v29
  %72 = vmatprep.subr.mxu0 0.0
  %73 = vmatpush1.msra.mxu0 0.0
  %74 = vmatprep.subr.mxu0 0.0
  %75 = vmatpush1.msra.mxu0 0.0
  %76 = vmatprep.subr.mxu0 0.0
  %77 = vmatpush1.msra.mxu0 0.0
  %78 = vmatprep.subr.mxu0 0.0
  %79 = vmatpush1.msra.mxu0 0.0
  %80 = vmatprep.subr.mxu0 0.0
  %81 = vmatpush1.msra.mxu0 0.0
  %82 = vmatprep.subr.mxu0 0.0
  %83 = vmatpush1.msra.mxu0 0.0
  %84 = vmatprep.subr.mxu0 0.0
  %85 = vmatpush1.msra.mxu0 0.0
  %86 = vmatprep.subr.mxu0 0.0
  %87 = vmatpush1.msra.mxu0 0.0
  %88 = vmatprep.subr.mxu0 0.0
  %89 = vmatpush1.msra.mxu0 0.0
  %90 = vmatprep.subr.mxu0 0.0
  %91 = vmatpush1.msra.mxu0 0.0
  %92 = vmatprep.subr.mxu0 0.0
  %93 = vmatpush1.msra.mxu0 0.0
  %94 = vmatprep.subr.mxu0 0.0
  %95 = vmatpush1.msra.mxu0 0.0
  %96 = vmatprep.subr.mxu0 0.0
  %97 = vmatpush1.msra.mxu0 0.0
  %98 = vmatprep.subr.mxu0 0.0
  %99 = vmatpush1.msra.mxu0 0.0
  %100 = vmatprep.subr.mxu0 0.0
  %101 = vmatpush1.msra.mxu0 0.0
  %102 = vmatprep.subr.mxu0 0.0
  %103 = vmatpush1.msra.mxu0 0.0
  %104 = vmatprep.mubr.f32.mxu0 0.0
  %105 = vmatmul.mubr.f32.gmra.mrb[0].mxu0 %v31
  %v106 = vpop.f32.mrb[0].mxu0
  %v107 = vadd.f32 %v38, %v106
  %v108 = vpop.f32.mrb[0].mxu0
  %109 = vmatprep.mubr.f32.mxu0 0.0
  %110 = vmatmul.mubr.f32.gmra.mrb[0].mxu0 %v32
  %v111 = vpop.f32.mrb[0].mxu0
  %v112 = vadd.f32 %v38, %v111
  %v113 = vpop.f32.mrb[0].mxu0
  %114 = vmatprep.mubr.f32.mxu0 0.0
  %115 = vmatmul.mubr.f32.gmra.mrb[0].mxu0 %v33
  %v116 = vpop.f32.mrb[0].mxu0
  %v117 = vadd.f32 %v38, %v116
  %v118 = vpop.f32.mrb[0].mxu0
  %119 = vdwg.mxu0
  %v120 = vmax.f32 %v107, 0.0
  %v121 = vmax.f32 %v112, 0.0
  %v122 = vmax.f32 %v117, 0.0
  %s123 = scalar_lea.vmem %s0, 24
  %v124 = vld [vmem:[%s123] sm:$0xff]
  %v125 = vld [vmem:[%s123 + $0x8] sm:$0xff]
  %v126 = vld [vmem:[%s123 + $0x10] sm:$0x3]
  %127 = vmatprep.subr.mxu0 0.0
  %128 = vmatpush1.msra.mxu0 %v14
  %129 = vmatprep.subr.mxu0 0.0
  %130 = vmatpush1.msra.mxu0 %v15
  %131 = vmatprep.subr.mxu0 0.0
  %132 = vmatpush1.msra.mxu0 %v16
  %133 = vmatprep.subr.mxu0 0.0
  %134 = vmatpush1.msra.mxu0 %v17
  %135 = vmatprep.subr.mxu0 0.0
  %136 = vmatpush1.msra.mxu0 %v18
  %137 = vmatprep.subr.mxu0 0.0
  %138 = vmatpush1.msra.mxu0 %v19
  %139 = vmatprep.subr.mxu0 0.0
  %140 = vmatpush1.msra.mxu0 %v20
  %141 = vmatprep.subr.mxu0 0.0
  %142 = vmatpush1.msra.mxu0 %v21
  %143 = vmatprep.subr.mxu0 0.0
  %144 = vmatpush1.msra.mxu0 %v22
  %145 = vmatprep.subr.mxu0 0.0
  %146 = vmatpush1.msra.mxu0 %v23
  %147 = vmatprep.subr.mxu0 0.0
  %148 = vmatpush1.msra.mxu0 %v24
  %149 = vmatprep.subr.mxu0 0.0
  %150 = vmatpush1.msra.mxu0 %v25
  %151 = vmatprep.subr.mxu0 0.0
  %152 = vmatpush1.msra.mxu0 %v26
  %153 = vmatprep.subr.mxu0 0.0
  %154 = vmatpush1.msra.mxu0 %v27
  %155 = vmatprep.subr.mxu0 0.0
  %156 = vmatpush1.msra.mxu0 %v28
  %157 = vmatprep.subr.mxu0 0.0
  %158 = vmatpush1.msra.mxu0 %v29
  %159 = vmatprep.subr.mxu0 0.0
  %160 = vmatpush1.msra.mxu0 0.0
  %161 = vmatprep.subr.mxu0 0.0
  %162 = vmatpush1.msra.mxu0 0.0
  %163 = vmatprep.subr.mxu0 0.0
  %164 = vmatpush1.msra.mxu0 0.0
  %165 = vmatprep.subr.mxu0 0.0
  %166 = vmatpush1.msra.mxu0 0.0
  %167 = vmatprep.subr.mxu0 0.0
  %168 = vmatpush1.msra.mxu0 0.0
  %169 = vmatprep.subr.mxu0 0.0
  %170 = vmatpush1.msra.mxu0 0.0
  %171 = vmatprep.subr.mxu0 0.0
  %172 = vmatpush1.msra.mxu0 0.0
  %173 = vmatprep.subr.mxu0 0.0
  %174 = vmatpush1.msra.mxu0 0.0
  %175 = vmatprep.subr.mxu0 0.0
  %176 = vmatpush1.msra.mxu0 0.0
  %177 = vmatprep.subr.mxu0 0.0
  %178 = vmatpush1.msra.mxu0 0.0
  %179 = vmatprep.subr.mxu0 0.0
  %180 = vmatpush1.msra.mxu0 0.0
  %181 = vmatprep.subr.mxu0 0.0
  %182 = vmatpush1.msra.mxu0 0.0
  %183 = vmatprep.subr.mxu0 0.0
  %184 = vmatpush1.msra.mxu0 0.0
  %185 = vmatprep.subr.mxu0 0.0
  %186 = vmatpush1.msra.mxu0 0.0
  %187 = vmatprep.subr.mxu0 0.0
  %188 = vmatpush1.msra.mxu0 0.0
  %189 = vmatprep.subr.mxu0 0.0
  %190 = vmatpush1.msra.mxu0 0.0
  %191 = vmatprep.mubr.f32.mxu0 0.0
  %192 = vmatmul.mubr.f32.gmra.mrb[0].mxu0 %v124
  %v193 = vpop.f32.mrb[0].mxu0
  %v194 = vadd.f32 %v38, %v193
  %v195 = vpop.f32.mrb[0].mxu0
  %196 = vmatprep.mubr.f32.mxu0 0.0
  %197 = vmatmul.mubr.f32.gmra.mrb[0].mxu0 %v125
  %v198 = vpop.f32.mrb[0].mxu0
  %v199 = vadd.f32 %v38, %v198
  %v200 = vpop.f32.mrb[0].mxu0
  %201 = vmatprep.mubr.f32.mxu0 0.0
  %202 = vmatmul.mubr.f32.gmra.mrb[0].mxu0 %v126
  %v203 = vpop.f32.mrb[0].mxu0
  %v204 = vadd.f32 %v38, %v203
  %v205 = vpop.f32.mrb[0].mxu0
  %206 = vdwg.mxu0
  %v207 = vmax.f32 %v194, 0.0
  %v208 = vmax.f32 %v199, 0.0
  %v209 = vmax.f32 %v204, 0.0
  %v210 = vmax.f32 %v120, %v207
  %v211 = vmax.f32 %v121, %v208
  %v212 = vmax.f32 %v122, %v209
  %s213 = scalar_lea.vmem %s0, 48
  %v214 = vld [vmem:[%s213] sm:$0xff]
  %v215 = vld [vmem:[%s213 + $0x8] sm:$0xff]
  %v216 = vld [vmem:[%s213 + $0x10] sm:$0x3]
  %217 = vmatprep.subr.mxu0 0.0
  %218 = vmatpush1.msra.mxu0 %v14
  %219 = vmatprep.subr.mxu0 0.0
  %220 = vmatpush1.msra.mxu0 %v15
  %221 = vmatprep.subr.mxu0 0.0
  %222 = vmatpush1.msra.mxu0 %v16
  %223 = vmatprep.subr.mxu0 0.0
  %224 = vmatpush1.msra.mxu0 %v17
  %225 = vmatprep.subr.mxu0 0.0
  %226 = vmatpush1.msra.mxu0 %v18
  %227 = vmatprep.subr.mxu0 0.0
  %228 = vmatpush1.msra.mxu0 %v19
  %229 = vmatprep.subr.mxu0 0.0
  %230 = vmatpush1.msra.mxu0 %v20
  %231 = vmatprep.subr.mxu0 0.0
  %232 = vmatpush1.msra.mxu0 %v21
  %233 = vmatprep.subr.mxu0 0.0
  %234 = vmatpush1.msra.mxu0 %v22
  %235 = vmatprep.subr.mxu0 0.0
  %236 = vmatpush1.msra.mxu0 %v23
  %237 = vmatprep.subr.mxu0 0.0
  %238 = vmatpush1.msra.mxu0 %v24
  %239 = vmatprep.subr.mxu0 0.0
  %240 = vmatpush1.msra.mxu0 %v25
  %241 = vmatprep.subr.mxu0 0.0
  %242 = vmatpush1.msra.mxu0 %v26
  %243 = vmatprep.subr.mxu0 0.0
  %244 = vmatpush1.msra.mxu0 %v27
  %245 = vmatprep.subr.mxu0 0.0
  %246 = vmatpush1.msra.mxu0 %v28
  %247 = vmatprep.subr.mxu0 0.0
  %248 = vmatpush1.msra.mxu0 %v29
  %249 = vmatprep.subr.mxu0 0.0
  %250 = vmatpush1.msra.mxu0 0.0
  %251 = vmatprep.subr.mxu0 0.0
  %252 = vmatpush1.msra.mxu0 0.0
  %253 = vmatprep.subr.mxu0 0.0
  %254 = vmatpush1.msra.mxu0 0.0
  %255 = vmatprep.subr.mxu0 0.0
  %256 = vmatpush1.msra.mxu0 0.0
  %257 = vmatprep.subr.mxu0 0.0
  %258 = vmatpush1.msra.mxu0 0.0
  %259 = vmatprep.subr.mxu0 0.0
  %260 = vmatpush1.msra.mxu0 0.0
  %261 = vmatprep.subr.mxu0 0.0
  %262 = vmatpush1.msra.mxu0 0.0
  %263 = vmatprep.subr.mxu0 0.0
  %264 = vmatpush1.msra.mxu0 0.0
  %265 = vmatprep.subr.mxu0 0.0
  %266 = vmatpush1.msra.mxu0 0.0
  %267 = vmatprep.subr.mxu0 0.0
  %268 = vmatpush1.msra.mxu0 0.0
  %269 = vmatprep.subr.mxu0 0.0
  %270 = vmatpush1.msra.mxu0 0.0
  %271 = vmatprep.subr.mxu0 0.0
  %272 = vmatpush1.msra.mxu0 0.0
  %273 = vmatprep.subr.mxu0 0.0
  %274 = vmatpush1.msra.mxu0 0.0
  %275 = vmatprep.subr.mxu0 0.0
  %276 = vmatpush1.msra.mxu0 0.0
  %277 = vmatprep.subr.mxu0 0.0
  %278 = vmatpush1.msra.mxu0 0.0
  %279 = vmatprep.subr.mxu0 0.0
  %280 = vmatpush1.msra.mxu0 0.0
  %281 = vmatprep.mubr.f32.mxu0 0.0
  %282 = vmatmul.mubr.f32.gmra.mrb[0].mxu0 %v214
  %v283 = vpop.f32.mrb[0].mxu0
  %v284 = vadd.f32 %v38, %v283
  %v285 = vpop.f32.mrb[0].mxu0
  %286 = vmatprep.mubr.f32.mxu0 0.0
  %287 = vmatmul.mubr.f32.gmra.mrb[0].mxu0 %v215
  %v288 = vpop.f32.mrb[0].mxu0
  %v289 = vadd.f32 %v38, %v288
  %v290 = vpop.f32.mrb[0].mxu0
  %291 = vmatprep.mubr.f32.mxu0 0.0
  %292 = vmatmul.mubr.f32.gmra.mrb[0].mxu0 %v216
  %v293 = vpop.f32.mrb[0].mxu0
  %v294 = vadd.f32 %v38, %v293
  %v295 = vpop.f32.mrb[0].mxu0
  %296 = vdwg.mxu0
  %v297 = vmax.f32 %v284, 0.0
  %v298 = vmax.f32 %v289, 0.0
  %v299 = vmax.f32 %v294, 0.0
  %s300 = scalar_lea.vmem %s0, 72
  %v301 = vld [vmem:[%s300] sm:$0xff]
  %v302 = vld [vmem:[%s300 + $0x8] sm:$0xff]
  %v303 = vld [vmem:[%s300 + $0x10] sm:$0x3]
  %304 = vmatprep.subr.mxu0 0.0
  %305 = vmatpush1.msra.mxu0 %v14
  %306 = vmatprep.subr.mxu0 0.0
  %307 = vmatpush1.msra.mxu0 %v15
  %308 = vmatprep.subr.mxu0 0.0
  %309 = vmatpush1.msra.mxu0 %v16
  %310 = vmatprep.subr.mxu0 0.0
  %311 = vmatpush1.msra.mxu0 %v17
  %312 = vmatprep.subr.mxu0 0.0
  %313 = vmatpush1.msra.mxu0 %v18
  %314 = vmatprep.subr.mxu0 0.0
  %315 = vmatpush1.msra.mxu0 %v19
  %316 = vmatprep.subr.mxu0 0.0
  %317 = vmatpush1.msra.mxu0 %v20
  %318 = vmatprep.subr.mxu0 0.0
  %319 = vmatpush1.msra.mxu0 %v21
  %320 = vmatprep.subr.mxu0 0.0
  %321 = vmatpush1.msra.mxu0 %v22
  %322 = vmatprep.subr.mxu0 0.0
  %323 = vmatpush1.msra.mxu0 %v23
  %324 = vmatprep.subr.mxu0 0.0
  %325 = vmatpush1.msra.mxu0 %v24
  %326 = vmatprep.subr.mxu0 0.0
  %327 = vmatpush1.msra.mxu0 %v25
  %328 = vmatprep.subr.mxu0 0.0
  %329 = vmatpush1.msra.mxu0 %v26
  %330 = vmatprep.subr.mxu0 0.0
  %331 = vmatpush1.msra.mxu0 %v27
  %332 = vmatprep.subr.mxu0 0.0
  %333 = vmatpush1.msra.mxu0 %v28
  %334 = vmatprep.subr.mxu0 0.0
  %335 = vmatpush1.msra.mxu0 %v29
  %336 = vmatprep.subr.mxu0 0.0
  %337 = vmatpush1.msra.mxu0 0.0
  %338 = vmatprep.subr.mxu0 0.0
  %339 = vmatpush1.msra.mxu0 0.0
  %340 = vmatprep.subr.mxu0 0.0
  %341 = vmatpush1.msra.mxu0 0.0
  %342 = vmatprep.subr.mxu0 0.0
  %343 = vmatpush1.msra.mxu0 0.0
  %344 = vmatprep.subr.mxu0 0.0
  %345 = vmatpush1.msra.mxu0 0.0
  %346 = vmatprep.subr.mxu0 0.0
  %347 = vmatpush1.msra.mxu0 0.0
  %348 = vmatprep.subr.mxu0 0.0
  %349 = vmatpush1.msra.mxu0 0.0
  %350 = vmatprep.subr.mxu0 0.0
  %351 = vmatpush1.msra.mxu0 0.0
  %352 = vmatprep.subr.mxu0 0.0
  %353 = vmatpush1.msra.mxu0 0.0
  %354 = vmatprep.subr.mxu0 0.0
  %355 = vmatpush1.msra.mxu0 0.0
  %356 = vmatprep.subr.mxu0 0.0
  %357 = vmatpush1.msra.mxu0 0.0
  %358 = vmatprep.subr.mxu0 0.0
  %359 = vmatpush1.msra.mxu0 0.0
  %360 = vmatprep.subr.mxu0 0.0
  %361 = vmatpush1.msra.mxu0 0.0
  %362 = vmatprep.subr.mxu0 0.0
  %363 = vmatpush1.msra.mxu0 0.0
  %364 = vmatprep.subr.mxu0 0.0
  %365 = vmatpush1.msra.mxu0 0.0
  %366 = vmatprep.subr.mxu0 0.0
  %367 = vmatpush1.msra.mxu0 0.0
  %368 = vmatprep.mubr.f32.mxu0 0.0
  %369 = vmatmul.mubr.f32.gmra.mrb[0].mxu0 %v301
  %v370 = vpop.f32.mrb[0].mxu0
  %v371 = vadd.f32 %v38, %v370
  %v372 = vpop.f32.mrb[0].mxu0
  %373 = vmatprep.mubr.f32.mxu0 0.0
  %374 = vmatmul.mubr.f32.gmra.mrb[0].mxu0 %v302
  %v375 = vpop.f32.mrb[0].mxu0
  %v376 = vadd.f32 %v38, %v375
  %v377 = vpop.f32.mrb[0].mxu0
  %378 = vmatprep.mubr.f32.mxu0 0.0
  %379 = vmatmul.mubr.f32.gmra.mrb[0].mxu0 %v303
  %v380 = vpop.f32.mrb[0].mxu0
  %v381 = vadd.f32 %v38, %v380
  %v382 = vpop.f32.mrb[0].mxu0
  %383 = vdwg.mxu0
  %v384 = vmax.f32 %v371, 0.0
  %v385 = vmax.f32 %v376, 0.0
  %v386 = vmax.f32 %v381, 0.0
  %v387 = vmax.f32 %v297, %v384
  %v388 = vmax.f32 %v298, %v385
  %v389 = vmax.f32 %v299, %v386
  %v390 = vmax.f32 %v210, %v387
  %v391 = vmax.f32 %v211, %v388
  %v392 = vmax.f32 %v212, %v389
  %vm393 = vcmask 523264
  %394 = vst.msk [vmem:[%s3] sm:$0xff] %vm393, %v390
  %395 = vst.msk [vmem:[%s3 + $0x8] sm:$0xff] %vm393, %v391
  %vm396 = vcmask 517120
  %397 = vst.msk [vmem:[%s3 + $0x10] sm:$0x3] %vm396, %v392
  // Predicated region
  $region14: #{convnet_forward.6} parent=0 // pred_check
    _
  $region15: #{convnet_forward.6} parent=0 // pred_check_branch
    %399 = sbr.rel (0) target = $region17
  $region16: #{convnet_forward.6} parent=0 // pred_region
    _
  $region17: #{convnet_forward.6} parent=0 // pred_fallthru
    _
  // Predicated region
  $region18: #{convnet_forward.6} parent=0 // pred_check
    _
  $region19: #{convnet_forward.6} parent=0 // pred_check_branch
    %401 = sbr.rel (0) target = $region21
  $region20: #{convnet_forward.6} parent=0 // pred_region
    _
  $region21: #{convnet_forward.6} parent=0 // pred_fallthru
    _

// kernel: convnet_forward.7
$region0: #{convnet_forward.7}
  #allocation0 [shape = 'u32[]', space=smem, size = 0x4, offset = 0x4, fixed_abs, tag = 'smem constant byte address 0x4 - core index']
  #allocation1 [shape = 'u32[144,128]{1,0:T(1,128)}', space=vmem, size = 0x12000, scoped, tag = 'internal scratch']
  %s0 = inlined_call_operand.vmem [shape: f32[2,576], index: 0, kind: input, shape index: {}]
  %s1 = inlined_call_operand.vmem [shape: f32[576,120], index: 1, kind: input, shape index: {}]
  %s2 = inlined_call_operand.vmem [shape: f32[1,120], index: 2, kind: input, shape index: {}]
  %s3 = inlined_call_operand.vmem [shape: f32[120,10], index: 3, kind: input, shape index: {}]
  %s4 = inlined_call_operand.vmem [shape: f32[1,10], index: 4, kind: input, shape index: {}]
  %s5 = inlined_call_operand.hbm [shape: f32[2,10], index: 5, kind: output, shape index: {}]
  %s6 = sld [smem:[#allocation0]]
  $region30: #{convnet_forward.7} parent=0
    _
  %s8 = ssub.s32 1, %s6
  %s9 = scalar_select 0, %s8, %s6
  $region1: #{convnet_forward.7} parent=0
    #allocation2 [shape = 'u8[1024]{0}', space=vmem, size = 0x400, scoped, tag = 'output window, operand 0, single buffered']
    #allocation3 [shape = 's32[1]{0}', space=sflag, size = 0x4, scoped, tag = 'scoped memory for convnet_forward.7']
    %10 = vsyncpa [#allocation3], 0
    // Predicated region
    $region2: #{convnet_forward.7} parent=1 // pred_check
      _
    $region3: #{convnet_forward.7} parent=1 // pred_check_branch
      %12 = sbr.rel (0) target = $region5
    $region4: #{convnet_forward.7} parent=1 // pred_region
      _
    $region5: #{convnet_forward.7} parent=1 // pred_fallthru
      _
    // Predicated region
    $region6: #{convnet_forward.7} parent=1 // pred_check
      _
    $region7: #{convnet_forward.7} parent=1 // pred_check_branch
      %14 = sbr.rel (0) target = $region9
    $region8: #{convnet_forward.7} parent=1 // pred_region
      _
    $region9: #{convnet_forward.7} parent=1 // pred_fallthru
      _
    // Predicated region
    $region10: #{convnet_forward.7} parent=1 // pred_check
      _
    $region11: #{convnet_forward.7} parent=1 // pred_check_branch
      %16 = sbr.rel (0) target = $region13
    $region12: #{convnet_forward.7} parent=1 // pred_region
      _
    $region13: #{convnet_forward.7} parent=1 // pred_fallthru
      _
    // Predicated region
    $region14: #{convnet_forward.7} parent=1 // pred_check
      _
    $region15: #{convnet_forward.7} parent=1 // pred_check_branch
      %18 = sbr.rel (0) target = $region17
    $region16: #{convnet_forward.7} parent=1 // pred_region
      _
    $region17: #{convnet_forward.7} parent=1 // pred_fallthru
      _
    // Predicated region
    $region18: #{convnet_forward.7} parent=1 // pred_check
      _
    $region19: #{convnet_forward.7} parent=1 // pred_check_branch
      %20 = sbr.rel (0) target = $region21
    $region20: #{convnet_forward.7} parent=1 // pred_region
      _
    $region21: #{convnet_forward.7} parent=1 // pred_fallthru
      _
    %v21 = vld [vmem:[%s0] sm:$0xff]
    %v22 = vld [vmem:[%s0 + $0x8] sm:$0x3]
    %v23 = vld [vmem:[%s1] sm:$0xff]
    %v24 = vld [vmem:[%s1 + $0x8] sm:$0xff]
    %v25 = vld [vmem:[%s1 + $0x10] sm:$0xff]
    %v26 = vld [vmem:[%s1 + $0x18] sm:$0xff]
    %v27 = vld [vmem:[%s1 + $0x20] sm:$0xff]
    %v28 = vld [vmem:[%s1 + $0x28] sm:$0xff]
    %v29 = vld [vmem:[%s1 + $0x30] sm:$0xff]
    %v30 = vld [vmem:[%s1 + $0x38] sm:$0xff]
    %v31 = vld [vmem:[%s1 + $0x40] sm:$0xff]
    %v32 = vld [vmem:[%s1 + $0x48] sm:$0xff]
    %v33 = vld [vmem:[%s1 + $0x50] sm:$0xff]
    %v34 = vld [vmem:[%s1 + $0x58] sm:$0xff]
    %v35 = vld [vmem:[%s1 + $0x60] sm:$0xff]
    %v36 = vld [vmem:[%s1 + $0x68] sm:$0xff]
    %v37 = vld [vmem:[%s1 + $0x70] sm:$0xff]
    %v38 = vld [vmem:[%s1 + $0x78] sm:$0xff]
    %v39 = vld [vmem:[%s1 + $0x80] sm:$0xff]
    %v40 = vld [vmem:[%s1 + $0x88] sm:$0xff]
    %v41 = vld [vmem:[%s1 + $0x90] sm:$0xff]
    %v42 = vld [vmem:[%s1 + $0x98] sm:$0xff]
    %v43 = vld [vmem:[%s1 + $0xa0] sm:$0xff]
    %v44 = vld [vmem:[%s1 + $0xa8] sm:$0xff]
    %v45 = vld [vmem:[%s1 + $0xb0] sm:$0xff]
    %v46 = vld [vmem:[%s1 + $0xb8] sm:$0xff]
    %v47 = vld [vmem:[%s1 + $0xc0] sm:$0xff]
    %v48 = vld [vmem:[%s1 + $0xc8] sm:$0xff]
    %v49 = vld [vmem:[%s1 + $0xd0] sm:$0xff]
    %v50 = vld [vmem:[%s1 + $0xd8] sm:$0xff]
    %v51 = vld [vmem:[%s1 + $0xe0] sm:$0xff]
    %v52 = vld [vmem:[%s1 + $0xe8] sm:$0xff]
    %v53 = vld [vmem:[%s1 + $0xf0] sm:$0xff]
    %v54 = vld [vmem:[%s1 + $0xf8] sm:$0xff]
    %v55 = vld [vmem:[%s1 + $0x100] sm:$0xff]
    %v56 = vld [vmem:[%s1 + $0x108] sm:$0xff]
    %v57 = vld [vmem:[%s1 + $0x110] sm:$0xff]
    %v58 = vld [vmem:[%s1 + $0x118] sm:$0xff]
    %v59 = vld [vmem:[%s1 + $0x120] sm:$0xff]
    %v60 = vld [vmem:[%s1 + $0x128] sm:$0xff]
    %v61 = vld [vmem:[%s1 + $0x130] sm:$0xff]
    %v62 = vld [vmem:[%s1 + $0x138] sm:$0xff]
    %v63 = vld [vmem:[%s1 + $0x140] sm:$0xff]
    %v64 = vld [vmem:[%s1 + $0x148] sm:$0xff]
    %v65 = vld [vmem:[%s1 + $0x150] sm:$0xff]
    %v66 = vld [vmem:[%s1 + $0x158] sm:$0xff]
    %v67 = vld [vmem:[%s1 + $0x160] sm:$0xff]
    %v68 = vld [vmem:[%s1 + $0x168] sm:$0xff]
    %v69 = vld [vmem:[%s1 + $0x170] sm:$0xff]
    %v70 = vld [vmem:[%s1 + $0x178] sm:$0xff]
    %v71 = vld [vmem:[%s1 + $0x180] sm:$0xff]
    %v72 = vld [vmem:[%s1 + $0x188] sm:$0xff]
    %v73 = vld [vmem:[%s1 + $0x190] sm:$0xff]
    %v74 = vld [vmem:[%s1 + $0x198] sm:$0xff]
    %v75 = vld [vmem:[%s1 + $0x1a0] sm:$0xff]
    %v76 = vld [vmem:[%s1 + $0x1a8] sm:$0xff]
    %v77 = vld [vmem:[%s1 + $0x1b0] sm:$0xff]
    %v78 = vld [vmem:[%s1 + $0x1b8] sm:$0xff]
    %v79 = vld [vmem:[%s1 + $0x1c0] sm:$0xff]
    %v80 = vld [vmem:[%s1 + $0x1c8] sm:$0xff]
    %v81 = vld [vmem:[%s1 + $0x1d0] sm:$0xff]
    %v82 = vld [vmem:[%s1 + $0x1d8] sm:$0xff]
    %v83 = vld [vmem:[%s1 + $0x1e0] sm:$0xff]
    %v84 = vld [vmem:[%s1 + $0x1e8] sm:$0xff]
    %v85 = vld [vmem:[%s1 + $0x1f0] sm:$0xff]
    %v86 = vld [vmem:[%s1 + $0x1f8] sm:$0xff]
    %v87 = vld [vmem:[%s1 + $0x200] sm:$0xff]
    %v88 = vld [vmem:[%s1 + $0x208] sm:$0xff]
    %v89 = vld [vmem:[%s1 + $0x210] sm:$0xff]
    %v90 = vld [vmem:[%s1 + $0x218] sm:$0xff]
    %v91 = vld [vmem:[%s1 + $0x220] sm:$0xff]
    %v92 = vld [vmem:[%s1 + $0x228] sm:$0xff]
    %v93 = vld [vmem:[%s1 + $0x230] sm:$0xff]
    %v94 = vld [vmem:[%s1 + $0x238] sm:$0xff]
    %v95 = vld [vmem:[%s2] sm:$0x1]
    %v97 = vlaneseq
    %v98 = vshrl.u32 %v97, 7
    %v99 = vsub.s32 0, %v98
    %v100 = vrot.slane %v95, %v99
    %v104 = vcombine.high %v21, %v21
    %v106 = vunpack.c.l.s4 1983009808
    %v107 = vunpack.c.0.s8 %v106
    %v108 = vlaneseq
    %v109 = vshrl.u32 %v108, 7
    %v110 = vsub.s32 %v107, %v109
    %v111 = vrot.slane %v21, %v110
    %v113 = vunpack.c.l.s4 1983009808
    %v114 = vunpack.c.0.s8 %v113
    %v115 = vlaneseq
    %v116 = vshrl.u32 %v115, 7
    %v117 = vsub.s32 %v114, %v116
    %v118 = vrot.slane %v104, %v117
    %v119 = vcombine.high %v111, %v111
    %v120 = vcombine.high %v118, %v118
    %v122 = vunpack.c.l.s4 1983009808
    %v123 = vunpack.c.0.s8 %v122
    %v124 = vlaneseq
    %v125 = vshrl.u32 %v124, 7
    %v126 = vsub.s32 %v123, %v125
    %v127 = vrot.slane %v22, %v126
    %vm132 = vcmask 523264
    %v133 = vsel %vm132, %v127, 0
    %135 = vmatprep.subr.mxu0 0.0
    %136 = vmatpush1.msra.mxu0 %v23
    %137 = vmatprep.subr.mxu0 0.0
    %138 = vmatpush1.msra.mxu0 %v24
    %139 = vmatprep.subr.mxu0 0.0
    %140 = vmatpush1.msra.mxu0 %v25
    %141 = vmatprep.subr.mxu0 0.0
    %142 = vmatpush1.msra.mxu0 %v26
    %143 = vmatprep.subr.mxu0 0.0
    %144 = vmatpush1.msra.mxu0 %v27
    %145 = vmatprep.subr.mxu0 0.0
    %146 = vmatpush1.msra.mxu0 %v28
    %147 = vmatprep.subr.mxu0 0.0
    %148 = vmatpush1.msra.mxu0 %v29
    %149 = vmatprep.subr.mxu0 0.0
    %150 = vmatpush1.msra.mxu0 %v30
    %151 = vmatprep.subr.mxu0 0.0
    %152 = vmatpush1.msra.mxu0 %v31
    %153 = vmatprep.subr.mxu0 0.0
    %154 = vmatpush1.msra.mxu0 %v32
    %155 = vmatprep.subr.mxu0 0.0
    %156 = vmatpush1.msra.mxu0 %v33
    %157 = vmatprep.subr.mxu0 0.0
    %158 = vmatpush1.msra.mxu0 %v34
    %159 = vmatprep.subr.mxu0 0.0
    %160 = vmatpush1.msra.mxu0 %v35
    %161 = vmatprep.subr.mxu0 0.0
    %162 = vmatpush1.msra.mxu0 %v36
    %163 = vmatprep.subr.mxu0 0.0
    %164 = vmatpush1.msra.mxu0 %v37
    %165 = vmatprep.subr.mxu0 0.0
    %166 = vmatpush1.msra.mxu0 %v38
    %167 = vmatprep.subr.mxu0 0.0
    %168 = vmatpush1.msra.mxu0 %v39
    %169 = vmatprep.subr.mxu0 0.0
    %170 = vmatpush1.msra.mxu0 %v40
    %171 = vmatprep.subr.mxu0 0.0
    %172 = vmatpush1.msra.mxu0 %v41
    %173 = vmatprep.subr.mxu0 0.0
    %174 = vmatpush1.msra.mxu0 %v42
    %175 = vmatprep.subr.mxu0 0.0
    %176 = vmatpush1.msra.mxu0 %v43
    %177 = vmatprep.subr.mxu0 0.0
    %178 = vmatpush1.msra.mxu0 %v44
    %179 = vmatprep.subr.mxu0 0.0
    %180 = vmatpush1.msra.mxu0 %v45
    %181 = vmatprep.subr.mxu0 0.0
    %182 = vmatpush1.msra.mxu0 %v46
    %183 = vmatprep.subr.mxu0 0.0
    %184 = vmatpush1.msra.mxu0 %v47
    %185 = vmatprep.subr.mxu0 0.0
    %186 = vmatpush1.msra.mxu0 %v48
    %187 = vmatprep.subr.mxu0 0.0
    %188 = vmatpush1.msra.mxu0 %v49
    %189 = vmatprep.subr.mxu0 0.0
    %190 = vmatpush1.msra.mxu0 %v50
    %191 = vmatprep.subr.mxu0 0.0
    %192 = vmatpush1.msra.mxu0 %v51
    %193 = vmatprep.subr.mxu0 0.0
    %194 = vmatpush1.msra.mxu0 %v52
    %195 = vmatprep.subr.mxu0 0.0
    %196 = vmatpush1.msra.mxu0 %v53
    %197 = vmatprep.subr.mxu0 0.0
    %198 = vmatpush1.msra.mxu0 %v54
    %199 = vmatprep.mubr.f32.mxu0 %v119
    %200 = vmatmul.mubr.f32.gmra.mrb[0].mxu0 %v111
    %v201 = vpop.f32.mrb[0].mxu0
    %v202 = vadd.f32 %v100, %v201
    %v203 = vpop.f32.mrb[0].mxu0
    %204 = vdwg.mxu0
    %205 = vmatprep.subr.mxu0 0.0
    %206 = vmatpush1.msra.mxu0 %v55
    %207 = vmatprep.subr.mxu0 0.0
    %208 = vmatpush1.msra.mxu0 %v56
    %209 = vmatprep.subr.mxu0 0.0
    %210 = vmatpush1.msra.mxu0 %v57
    %211 = vmatprep.subr.mxu0 0.0
    %212 = vmatpush1.msra.mxu0 %v58
    %213 = vmatprep.subr.mxu0 0.0
    %214 = vmatpush1.msra.mxu0 %v59
    %215 = vmatprep.subr.mxu0 0.0
    %216 = vmatpush1.msra.mxu0 %v60
    %217 = vmatprep.subr.mxu0 0.0
    %218 = vmatpush1.msra.mxu0 %v61
    %219 = vmatprep.subr.mxu0 0.0
    %220 = vmatpush1.msra.mxu0 %v62
    %221 = vmatprep.subr.mxu0 0.0
    %222 = vmatpush1.msra.mxu0 %v63
    %223 = vmatprep.subr.mxu0 0.0
    %224 = vmatpush1.msra.mxu0 %v64
    %225 = vmatprep.subr.mxu0 0.0
    %226 = vmatpush1.msra.mxu0 %v65
    %227 = vmatprep.subr.mxu0 0.0
    %228 = vmatpush1.msra.mxu0 %v66
    %229 = vmatprep.subr.mxu0 0.0
    %230 = vmatpush1.msra.mxu0 %v67
    %231 = vmatprep.subr.mxu0 0.0
    %232 = vmatpush1.msra.mxu0 %v68
    %233 = vmatprep.subr.mxu0 0.0
    %234 = vmatpush1.msra.mxu0 %v69
    %235 = vmatprep.subr.mxu0 0.0
    %236 = vmatpush1.msra.mxu0 %v70
    %237 = vmatprep.subr.mxu0 0.0
    %238 = vmatpush1.msra.mxu0 %v71
    %239 = vmatprep.subr.mxu0 0.0
    %240 = vmatpush1.msra.mxu0 %v72
    %241 = vmatprep.subr.mxu0 0.0
    %242 = vmatpush1.msra.mxu0 %v73
    %243 = vmatprep.subr.mxu0 0.0
    %244 = vmatpush1.msra.mxu0 %v74
    %245 = vmatprep.subr.mxu0 0.0
    %246 = vmatpush1.msra.mxu0 %v75
    %247 = vmatprep.subr.mxu0 0.0
    %248 = vmatpush1.msra.mxu0 %v76
    %249 = vmatprep.subr.mxu0 0.0
    %250 = vmatpush1.msra.mxu0 %v77
    %251 = vmatprep.subr.mxu0 0.0
    %252 = vmatpush1.msra.mxu0 %v78
    %253 = vmatprep.subr.mxu0 0.0
    %254 = vmatpush1.msra.mxu0 %v79
    %255 = vmatprep.subr.mxu0 0.0
    %256 = vmatpush1.msra.mxu0 %v80
    %257 = vmatprep.subr.mxu0 0.0
    %258 = vmatpush1.msra.mxu0 %v81
    %259 = vmatprep.subr.mxu0 0.0
    %260 = vmatpush1.msra.mxu0 %v82
    %261 = vmatprep.subr.mxu0 0.0
    %262 = vmatpush1.msra.mxu0 %v83
    %263 = vmatprep.subr.mxu0 0.0
    %264 = vmatpush1.msra.mxu0 %v84
    %265 = vmatprep.subr.mxu0 0.0
    %266 = vmatpush1.msra.mxu0 %v85
    %267 = vmatprep.subr.mxu0 0.0
    %268 = vmatpush1.msra.mxu0 %v86
    %269 = vmatprep.mubr.f32.mxu0 %v120
    %270 = vmatmul.mubr.f32.gmra.mrb[0].mxu0 %v118
    %v271 = vpop.f32.mrb[0].mxu0
    %v272 = vadd.f32 %v202, %v271
    %v273 = vpop.f32.mrb[0].mxu0
    %274 = vdwg.mxu0
    %275 = vmatprep.subr.mxu0 0.0
    %276 = vmatpush1.msra.mxu0 %v87
    %277 = vmatprep.subr.mxu0 0.0
    %278 = vmatpush1.msra.mxu0 %v88
    %279 = vmatprep.subr.mxu0 0.0
    %280 = vmatpush1.msra.mxu0 %v89
    %281 = vmatprep.subr.mxu0 0.0
    %282 = vmatpush1.msra.mxu0 %v90
    %283 = vmatprep.subr.mxu0 0.0
    %284 = vmatpush1.msra.mxu0 %v91
    %285 = vmatprep.subr.mxu0 0.0
    %286 = vmatpush1.msra.mxu0 %v92
    %287 = vmatprep.subr.mxu0 0.0
    %288 = vmatpush1.msra.mxu0 %v93
    %289 = vmatprep.subr.mxu0 0.0
    %290 = vmatpush1.msra.mxu0 %v94
    %291 = vmatprep.subr.mxu0 0.0
    %292 = vmatpush1.msra.mxu0 0.0
    %293 = vmatprep.subr.mxu0 0.0
    %294 = vmatpush1.msra.mxu0 0.0
    %295 = vmatprep.subr.mxu0 0.0
    %296 = vmatpush1.msra.mxu0 0.0
    %297 = vmatprep.subr.mxu0 0.0
    %298 = vmatpush1.msra.mxu0 0.0
    %299 = vmatprep.subr.mxu0 0.0
    %300 = vmatpush1.msra.mxu0 0.0
    %301 = vmatprep.subr.mxu0 0.0
    %302 = vmatpush1.msra.mxu0 0.0
    %303 = vmatprep.subr.mxu0 0.0
    %304 = vmatpush1.msra.mxu0 0.0
    %305 = vmatprep.subr.mxu0 0.0
    %306 = vmatpush1.msra.mxu0 0.0
    %307 = vmatprep.subr.mxu0 0.0
    %308 = vmatpush1.msra.mxu0 0.0
    %309 = vmatprep.subr.mxu0 0.0
    %310 = vmatpush1.msra.mxu0 0.0
    %311 = vmatprep.subr.mxu0 0.0
    %312 = vmatpush1.msra.mxu0 0.0
    %313 = vmatprep.subr.mxu0 0.0
    %314 = vmatpush1.msra.mxu0 0.0
    %315 = vmatprep.subr.mxu0 0.0
    %316 = vmatpush1.msra.mxu0 0.0
    %317 = vmatprep.subr.mxu0 0.0
    %318 = vmatpush1.msra.mxu0 0.0
    %319 = vmatprep.subr.mxu0 0.0
    %320 = vmatpush1.msra.mxu0 0.0
    %321 = vmatprep.subr.mxu0 0.0
    %322 = vmatpush1.msra.mxu0 0.0
    %323 = vmatprep.subr.mxu0 0.0
    %324 = vmatpush1.msra.mxu0 0.0
    %325 = vmatprep.subr.mxu0 0.0
    %326 = vmatpush1.msra.mxu0 0.0
    %327 = vmatprep.subr.mxu0 0.0
    %328 = vmatpush1.msra.mxu0 0.0
    %329 = vmatprep.subr.mxu0 0.0
    %330 = vmatpush1.msra.mxu0 0.0
    %331 = vmatprep.subr.mxu0 0.0
    %332 = vmatpush1.msra.mxu0 0.0
    %333 = vmatprep.subr.mxu0 0.0
    %334 = vmatpush1.msra.mxu0 0.0
    %335 = vmatprep.subr.mxu0 0.0
    %336 = vmatpush1.msra.mxu0 0.0
    %337 = vmatprep.subr.mxu0 0.0
    %338 = vmatpush1.msra.mxu0 0.0
    %339 = vmatprep.mubr.f32.mxu0 0.0
    %340 = vmatmul.mubr.f32.gmra.mrb[0].mxu0 %v133
    %v341 = vpop.f32.mrb[0].mxu0
    %v342 = vadd.f32 %v272, %v341
    %v343 = vpop.f32.mrb[0].mxu0
    %344 = vdwg.mxu0
    %v345 = vmax.f32 %v342, 0.0
    %v346 = vld [vmem:[%s3] sm:$0xff]
    %v347 = vld [vmem:[%s3 + $0x8] sm:$0xff]
    %v348 = vld [vmem:[%s3 + $0x10] sm:$0xff]
    %v349 = vld [vmem:[%s3 + $0x18] sm:$0xff]
    %v350 = vld [vmem:[%s3 + $0x20] sm:$0xff]
    %v351 = vld [vmem:[%s3 + $0x28] sm:$0xff]
    %v352 = vld [vmem:[%s3 + $0x30] sm:$0xff]
    %v353 = vld [vmem:[%s3 + $0x38] sm:$0xff]
    %v354 = vld [vmem:[%s3 + $0x40] sm:$0xff]
    %v355 = vld [vmem:[%s3 + $0x48] sm:$0xff]
    %v356 = vld [vmem:[%s3 + $0x50] sm:$0xff]
    %v357 = vld [vmem:[%s3 + $0x58] sm:$0xff]
    %v358 = vld [vmem:[%s3 + $0x60] sm:$0xff]
    %v359 = vld [vmem:[%s3 + $0x68] sm:$0xff]
    %v360 = vld [vmem:[%s3 + $0x70] sm:$0xff]
    %v361 = vld [vmem:[%s4] sm:$0x1]
    %v363 = vlaneseq
    %v364 = vshrl.u32 %v363, 7
    %v365 = vsub.s32 0, %v364
    %v366 = vrot.slane %v361, %v365
    %vm368 = vcmask 982016
    %v370 = vsel %vm368, %v345, 0
    %372 = vmatprep.subr.mxu0 0.0
    %373 = vmatpush1.msra.mxu0 %v346
    %374 = vmatprep.subr.mxu0 0.0
    %375 = vmatpush1.msra.mxu0 %v347
    %376 = vmatprep.subr.mxu0 0.0
    %377 = vmatpush1.msra.mxu0 %v348
    %378 = vmatprep.subr.mxu0 0.0
    %379 = vmatpush1.msra.mxu0 %v349
    %380 = vmatprep.subr.mxu0 0.0
    %381 = vmatpush1.msra.mxu0 %v350
    %382 = vmatprep.subr.mxu0 0.0
    %383 = vmatpush1.msra.mxu0 %v351
    %384 = vmatprep.subr.mxu0 0.0
    %385 = vmatpush1.msra.mxu0 %v352
    %386 = vmatprep.subr.mxu0 0.0
    %387 = vmatpush1.msra.mxu0 %v353
    %388 = vmatprep.subr.mxu0 0.0
    %389 = vmatpush1.msra.mxu0 %v354
    %390 = vmatprep.subr.mxu0 0.0
    %391 = vmatpush1.msra.mxu0 %v355
    %392 = vmatprep.subr.mxu0 0.0
    %393 = vmatpush1.msra.mxu0 %v356
    %394 = vmatprep.subr.mxu0 0.0
    %395 = vmatpush1.msra.mxu0 %v357
    %396 = vmatprep.subr.mxu0 0.0
    %397 = vmatpush1.msra.mxu0 %v358
    %398 = vmatprep.subr.mxu0 0.0
    %399 = vmatpush1.msra.mxu0 %v359
    %400 = vmatprep.subr.mxu0 0.0
    %401 = vmatpush1.msra.mxu0 %v360
    %402 = vmatprep.subr.mxu0 0.0
    %403 = vmatpush1.msra.mxu0 0.0
    %404 = vmatprep.subr.mxu0 0.0
    %405 = vmatpush1.msra.mxu0 0.0
    %406 = vmatprep.subr.mxu0 0.0
    %407 = vmatpush1.msra.mxu0 0.0
    %408 = vmatprep.subr.mxu0 0.0
    %409 = vmatpush1.msra.mxu0 0.0
    %410 = vmatprep.subr.mxu0 0.0
    %411 = vmatpush1.msra.mxu0 0.0
    %412 = vmatprep.subr.mxu0 0.0
    %413 = vmatpush1.msra.mxu0 0.0
    %414 = vmatprep.subr.mxu0 0.0
    %415 = vmatpush1.msra.mxu0 0.0
    %416 = vmatprep.subr.mxu0 0.0
    %417 = vmatpush1.msra.mxu0 0.0
    %418 = vmatprep.subr.mxu0 0.0
    %419 = vmatpush1.msra.mxu0 0.0
    %420 = vmatprep.subr.mxu0 0.0
    %421 = vmatpush1.msra.mxu0 0.0
    %422 = vmatprep.subr.mxu0 0.0
    %423 = vmatpush1.msra.mxu0 0.0
    %424 = vmatprep.subr.mxu0 0.0
    %425 = vmatpush1.msra.mxu0 0.0
    %426 = vmatprep.subr.mxu0 0.0
    %427 = vmatpush1.msra.mxu0 0.0
    %428 = vmatprep.subr.mxu0 0.0
    %429 = vmatpush1.msra.mxu0 0.0
    %430 = vmatprep.subr.mxu0 0.0
    %431 = vmatpush1.msra.mxu0 0.0
    %432 = vmatprep.subr.mxu0 0.0
    %433 = vmatpush1.msra.mxu0 0.0
    %434 = vmatprep.subr.mxu0 0.0
    %435 = vmatpush1.msra.mxu0 0.0
    %436 = vmatprep.mubr.f32.mxu0 0.0
    %437 = vmatmul.mubr.f32.gmra.mrb[0].mxu0 %v370
    %v438 = vpop.f32.mrb[0].mxu0
    %v439 = vadd.f32 %v366, %v438
    %v440 = vpop.f32.mrb[0].mxu0
    %441 = vdwg.mxu0
    %vm442 = vcmask 74752
    %443 = vst.msk [vmem:[#allocation2] sm:$0x3] %vm442, %v439
    // Predicated region
    $region22: #{convnet_forward.7} parent=1 // pred_check
      _
    $region23: #{convnet_forward.7} parent=1 // pred_check_branch
      %445 = sbr.rel (0) target = $region25
    $region24: #{convnet_forward.7} parent=1 // pred_region
      %s447 = ssub.s32 32, 32
      %448 = vsyncadd [#allocation3], %s447
      %s450 = sshll.u32 [#allocation2], 4
      %s451 = int_to_ptr.vmem [resolvable:$true] %s450
      %453 = dma.vmem_to_hbm [thread:$0]  %s451, 32, %s5, [#allocation3]
    $region25: #{convnet_forward.7} parent=1 // pred_fallthru
      _
    // Predicated region
    $region26: #{convnet_forward.7} parent=1 // pred_check
      _
    $region27: #{convnet_forward.7} parent=1 // pred_check_branch
      %455 = sbr.rel (0) target = $region29
    $region28: #{convnet_forward.7} parent=1 // pred_region
      %456 = dma.done [#allocation3], 32
    $region29: #{convnet_forward.7} parent=1 // pred_fallthru
      _
    %457 = vsyncpa [#allocation3], 1

</llo_original>
